<compile_context>
chip_gen: v5e
topology: v5e:2x2
jax: 0.10.0
libtpu: 0.0.40
codegen_flags: <defaults>
</compile_context>

<pallas_src>
import jax
import jax.numpy as jnp
from jax.experimental import pallas as pl
from jax.experimental.pallas import tpu as pltpu

CLASSES = ['artifact', 'extrahls', 'murmur', 'normal']
NUM_CLASSES = len(CLASSES)
LANE = 128


def _round_up(n, m):
    return ((n + m - 1) // m) * m


# ----------------------------------------------------------------------------
# Kernel 1: fused conv3x3(pad=1) + bias + ReLU + MaxPool2d(2,2)
# ----------------------------------------------------------------------------
def _conv_relu_pool_kernel(p_ref, w_ref, b_ref, o_ref):
    # p_ref: (1, 4, 9*Cin, S_pad) bf16  pool-phase im2col patches for one image
    # w_ref: (Cout, 9*Cin) bf16, b_ref: (Cout, 1) f32, o_ref: (1, Cout, S_pad) bf16
    #
    # NOTE: max-over-phases THEN +bias THEN ReLU == MaxPool2d(ReLU(conv + b))
    # because the bias is phase-invariant and ReLU is monotone.  Do not reorder.
    w = w_ref[...]
    acc = jnp.dot(w, p_ref[0, 0], preferred_element_type=jnp.float32)
    for p in range(1, 4):                     # MaxPool2d(2,2) == max over phases
        acc = jnp.maximum(
            acc, jnp.dot(w, p_ref[0, p], preferred_element_type=jnp.float32))
    o_ref[0] = jnp.maximum(acc + b_ref[...], 0.0).astype(o_ref.dtype)


def conv3x3_relu_pool(patches, w_mat, b_col):
    """patches: [B, 4, 9*Cin, S_pad] bf16 (pool-phase im2col, zero lane-padded).

    Returns lane-padded channel-major pooled activations [B, Cout, S_pad] bf16.
    """
    B, _, K9, S_pad = patches.shape
    Cout = w_mat.shape[0]
    return pl.pallas_call(
        _conv_relu_pool_kernel,
        out_shape=jax.ShapeDtypeStruct((B, Cout, S_pad), jnp.bfloat16),
        grid=(B,),
        in_specs=[
            pl.BlockSpec((1, 4, K9, S_pad), lambda i: (i, 0, 0, 0)),
            pl.BlockSpec((Cout, K9), lambda i: (0, 0)),
            pl.BlockSpec((Cout, 1), lambda i: (0, 0)),
        ],
        out_specs=pl.BlockSpec((1, Cout, S_pad), lambda i: (i, 0, 0)),
        compiler_params=pltpu.CompilerParams(
            dimension_semantics=("parallel",)),
    )(patches, w_mat, b_col)


def phase_im2col(x, out_dtype=jnp.bfloat16):
    """Pool-phase im2col for conv3x3(pad=1) followed by MaxPool2d(2,2).

    Column s = hh*(W//2)+ww of phase (ph, pw) holds the 3x3 patch of the
    conv-output pixel (2*hh+ph, 2*ww+pw), so 4 matmuls + elementwise max in the
    kernel produce the *pooled* output directly.

    XLA glue kept minimal: 4 stride-2 parity decimations of the padded image,
    then every one of the 36 taps is a cheap contiguous slice of a slab.
    Returns [B, 4, 9*Cin, S_pad] (zero lane-padded) in out_dtype.
    """
    B, Cin, H, W = x.shape
    assert H % 2 == 0 and W % 2 == 0
    Hh, Wh = H // 2, W // 2
    S = Hh * Wh
    S_pad = _round_up(S, LANE)

    xp = jnp.pad(x, ((0, 0), (0, 0), (1, 1), (1, 1)))       # [B, Cin, H+2, W+2]
    # 4 parity slabs: slab[(r,c)][..., i, j] = xp[..., r + 2i, c + 2j]
    slabs = {(r, c): xp[:, :, r::2, c::2] for r in (0, 1) for c in (0, 1)}

    phases = []
    for ph in (0, 1):
        for pw in (0, 1):
            taps = []
            for kh in range(3):
                for kw in range(3):
                    ro, co = ph + kh, pw + kw                # 0..3
                    slab = slabs[(ro % 2, co % 2)]
                    tap = slab[:, :, ro // 2:ro // 2 + Hh, co // 2:co // 2 + Wh]
                    taps.append(tap.reshape(B, Cin, S))
            phases.append(jnp.stack(taps, axis=1))           # [B, 9, Cin, S]
    patches = jnp.stack(phases, axis=1).reshape(B, 4, 9 * Cin, S)
    patches = jnp.pad(patches, ((0, 0), (0, 0), (0, 0), (0, S_pad - S)))
    return patches.astype(out_dtype)


# ----------------------------------------------------------------------------
# Kernel 2: fused MLP head = fc1 (K-streamed) + ReLU + fc2 + ReLU + fc3 + LogSoftmax
# ----------------------------------------------------------------------------
def _head_kernel(x_ref, w1_ref, b1_ref, w2_ref, b2_ref, w3_ref, b3_ref,
                 o_ref, acc_ref):
    k = pl.program_id(0)

    @pl.when(k == 0)
    def _():
        acc_ref[...] = jnp.zeros_like(acc_ref)

    # fc1: bf16 activations x bf16 weight tile, f32 accumulation.
    acc_ref[...] += jnp.dot(x_ref[...], w1_ref[...],
                            preferred_element_type=jnp.float32)

    @pl.when(k == pl.num_programs(0) - 1)
    def _():
        h = jnp.maximum(acc_ref[...] + b1_ref[...], 0.0)                 # ReLU(fc1)
        h = jnp.dot(h, w2_ref[...], preferred_element_type=jnp.float32)
        h = jnp.maximum(h + b2_ref[...], 0.0)                            # ReLU(fc2)
        logits = jnp.dot(h, w3_ref[...], preferred_element_type=jnp.float32)
        logits = logits + b3_ref[...]                                    # fc3
        m = jnp.max(logits, axis=-1, keepdims=True)
        y = logits - m
        lse = jnp.log(jnp.sum(jnp.exp(y), axis=-1, keepdims=True))
        o_ref[...] = (y - lse).astype(o_ref.dtype)                       # LogSoftmax


def mlp_head(flat_pad, w1, b1, w2, b2, w3, b3, *, k_steps=2):
    """flat_pad: [B, K_pad] bf16 (lane-padded conv2 activations).

    w1 must be pre-padded/pre-cast offline to [K_pad, 128] bf16 with zero rows
    at the padded positions.
    """
    B, K_pad = flat_pad.shape
    N1, N2, N3 = w1.shape[1], w2.shape[1], w3.shape[1]
    assert K_pad % k_steps == 0
    tk = K_pad // k_steps
    assert tk % LANE == 0

    return pl.pallas_call(
        _head_kernel,
        out_shape=jax.ShapeDtypeStruct((B, N3), jnp.float32),
        grid=(k_steps,),
        in_specs=[
            pl.BlockSpec((B, tk), lambda k: (0, k)),
            pl.BlockSpec((tk, N1), lambda k: (k, 0)),
            pl.BlockSpec((1, N1), lambda k: (0, 0)),
            pl.BlockSpec((N1, N2), lambda k: (0, 0)),
            pl.BlockSpec((1, N2), lambda k: (0, 0)),
            pl.BlockSpec((N2, N3), lambda k: (0, 0)),
            pl.BlockSpec((1, N3), lambda k: (0, 0)),
        ],
        out_specs=pl.BlockSpec((B, N3), lambda k: (0, 0)),
        scratch_shapes=[pltpu.VMEM((B, N1), jnp.float32)],
        compiler_params=pltpu.CompilerParams(
            dimension_semantics=("arbitrary",)),
    )(flat_pad, w1, b1, w2, b2, w3, b3)


# ----------------------------------------------------------------------------
# Params (PyTorch-equivalent), offline kernel prep, forward
# ----------------------------------------------------------------------------
def init_params(key):
    ks = jax.random.split(key, 10)
    return {
        "conv1_w": 0.2 * jax.random.normal(ks[0], (6, 1, 3, 3), jnp.float32),
        "conv1_b": 0.1 * jax.random.normal(ks[1], (6,), jnp.float32),
        "conv2_w": 0.2 * jax.random.normal(ks[2], (16, 6, 3, 3), jnp.float32),
        "conv2_b": 0.1 * jax.random.normal(ks[3], (16,), jnp.float32),
        "fc1_w": 0.05 * jax.random.normal(ks[4], (16 * 25 * 25, 128), jnp.float32),
        "fc1_b": 0.1 * jax.random.normal(ks[5], (128,), jnp.float32),
        "fc2_w": 0.2 * jax.random.normal(ks[6], (128, 64), jnp.float32),
        "fc2_b": 0.1 * jax.random.normal(ks[7], (64,), jnp.float32),
        "fc3_w": 0.2 * jax.random.normal(ks[8], (64, NUM_CLASSES), jnp.float32),
        "fc3_b": 0.1 * jax.random.normal(ks[9], (NUM_CLASSES,), jnp.float32),
    }


def prepare_params(params):
    """One-time offline weight prep (layout + dtype) for the Pallas kernels."""
    s2 = 25 * 25                       # conv2 spatial size per channel
    s2_pad = _round_up(s2, LANE)       # 640: lane-padded conv2 output layout

    # (kh, kw, ci) ordering matches the patch K-axis built by phase_im2col.
    c1_w = jnp.transpose(params["conv1_w"], (0, 2, 3, 1)).reshape(6, 9)
    c2_w = jnp.transpose(params["conv2_w"], (0, 2, 3, 1)).reshape(16, 9 * 6)

    # fc1 rows follow PyTorch's NCHW flatten (c*625 + s).  Re-pad per channel to
    # s2_pad with ZERO rows so the lane-padded conv2 output (whose padded lanes
    # carry ReLU(bias)) is consumed with no depad slice and no garbage pickup.
    fc1 = params["fc1_w"].reshape(16, s2, 128)
    fc1 = jnp.pad(fc1, ((0, 0), (0, s2_pad - s2), (0, 0))).reshape(16 * s2_pad, 128)

    return {
        "c1_w": c1_w.astype(jnp.bfloat16),
        "c1_b": params["conv1_b"].reshape(6, 1).astype(jnp.float32),
        "c2_w": c2_w.astype(jnp.bfloat16),
        "c2_b": params["conv2_b"].reshape(16, 1).astype(jnp.float32),
        "fc1_w": fc1.astype(jnp.bfloat16),   # pre-padded, pre-cast (offline)
        "fc1_b": params["fc1_b"].reshape(1, 128).astype(jnp.float32),
        "fc2_w": params["fc2_w"].astype(jnp.float32),
        "fc2_b": params["fc2_b"].reshape(1, 64).astype(jnp.float32),
        "fc3_w": params["fc3_w"].astype(jnp.float32),
        "fc3_b": params["fc3_b"].reshape(1, NUM_CLASSES).astype(jnp.float32),
    }


def forward(prep, x_nchw):
    """Matches ImageMultiClassClassification.forward (PyTorch, NCHW input)."""
    B = x_nchw.shape[0]
    x = x_nchw.astype(jnp.bfloat16)

    p1 = phase_im2col(x)                                        # [B, 4, 9, 2560]
    y1 = conv3x3_relu_pool(p1, prep["c1_w"], prep["c1_b"])      # [B, 6, 2560] bf16
    y1 = y1[:, :, :50 * 50].reshape(B, 6, 50, 50)               # depad once (tiny)

    p2 = phase_im2col(y1)                                       # [B, 4, 54, 640]
    y2 = conv3x3_relu_pool(p2, prep["c2_w"], prep["c2_b"])      # [B, 16, 640] bf16

    # torch.nn.Flatten (NCHW) == free reshape in this lane-padded channel-major
    # layout; padded lanes map to zero fc1 weight rows.
    flat = y2.reshape(B, 16 * y2.shape[-1])                     # [B, 10240] bf16

    return mlp_head(flat, prep["fc1_w"], prep["fc1_b"],
                    prep["fc2_w"], prep["fc2_b"],
                    prep["fc3_w"], prep["fc3_b"])               # [B, 4] log-probs


# ----------------------------------------------------------------------------
# Pure-JAX reference (f32, highest precision) for correctness checking
# ----------------------------------------------------------------------------
def _ref_conv_relu_pool(x, w, b):
    y = jax.lax.conv_general_dilated(
        x, w, window_strides=(1, 1), padding=((1, 1), (1, 1)),
        dimension_numbers=("NCHW", "OIHW", "NCHW"),
        precision=jax.lax.Precision.HIGHEST)
    y = jnp.maximum(y + b.reshape(1, -1, 1, 1), 0.0)
    B, C, H, W = y.shape
    return y.reshape(B, C, H // 2, 2, W // 2, 2).max(axis=(3, 5))


def reference_forward(params, x):
    hi = jax.lax.Precision.HIGHEST
    y = _ref_conv_relu_pool(x, params["conv1_w"], params["conv1_b"])
    y = _ref_conv_relu_pool(y, params["conv2_w"], params["conv2_b"])
    flat = y.reshape(x.shape[0], -1)
    h = jnp.maximum(jnp.dot(flat, params["fc1_w"], precision=hi) + params["fc1_b"], 0.0)
    h = jnp.maximum(jnp.dot(h, params["fc2_w"], precision=hi) + params["fc2_b"], 0.0)
    logits = jnp.dot(h, params["fc3_w"], precision=hi) + params["fc3_b"]
    return jax.nn.log_softmax(logits, axis=-1)


if __name__ == "__main__":
    key = jax.random.PRNGKey(0)
    k_param, k_x = jax.random.split(key)
    params = init_params(k_param)
    prep = prepare_params(params)          # offline weight prep (once)

    # Input shape implied by fc1 = 16*25*25  ->  100x100 single-channel image.
    x = jax.random.normal(k_x, (2, 1, 100, 100), jnp.float32)

    fwd = jax.jit(forward)
    out = jax.block_until_ready(fwd(prep, x))

    assert out.shape == (2, NUM_CLASSES)
    assert bool(jnp.all(jnp.isfinite(out)))
    # log-softmax rows exponentiate and sum to 1
    assert bool(jnp.allclose(jnp.sum(jnp.exp(out), axis=-1), 1.0, atol=1e-5))

    # bf16 weight/activation streaming -> loose (but still meaningful) tolerance
    ref = reference_forward(params, x)
    assert bool(jnp.allclose(out, ref, atol=1e-1)), (out, ref)

    print("KERNEL_OK")
</pallas_src>

<mosaic_0001>
module attributes {stable_mosaic.version = 11 : i64} {
  func.func @_conv_relu_pool_kernel(%arg0: i32, %arg1: memref<1x4x9x2560xbf16, #tpu.memory_space<vmem>>, %arg2: memref<6x9xbf16, #tpu.memory_space<vmem>>, %arg3: memref<6x1xf32, #tpu.memory_space<vmem>>, %arg4: memref<1x6x2560xbf16, #tpu.memory_space<vmem>>) attributes {dimension_semantics = [#tpu.dimension_semantics<parallel>], iteration_bounds = array<i64: 2>, scalar_prefetch = 0 : i64, scratch_operands = 0 : i64, tpu.core_type = #tpu.core_type<tc>, window_params = [{transform_indices = @transform_0, window_bounds = array<i64: 1, 4, 9, 2560>}, {pipeline_mode = #tpu.pipeline_mode<synchronous>, transform_indices = @transform_1, window_bounds = array<i64: 6, 9>}, {pipeline_mode = #tpu.pipeline_mode<synchronous>, transform_indices = @transform_2, window_bounds = array<i64: 6, 1>}, {transform_indices = @transform_3, window_bounds = array<i64: 1, 6, 2560>}]} {
    %c0 = arith.constant 0 : index
    %c0_0 = arith.constant 0 : index
    %0 = vector.load %arg2[%c0, %c0_0] : memref<6x9xbf16, #tpu.memory_space<vmem>>, vector<6x9xbf16>
    %c0_1 = arith.constant 0 : index
    %c0_2 = arith.constant 0 : index
    %c0_3 = arith.constant 0 : index
    %c0_4 = arith.constant 0 : index
    %1 = vector.load %arg1[%c0_1, %c0_2, %c0_3, %c0_4] : memref<1x4x9x2560xbf16, #tpu.memory_space<vmem>>, vector<1x1x9x2560xbf16>
    %2 = vector.shape_cast %1 : vector<1x1x9x2560xbf16> to vector<9x2560xbf16>
    %cst = arith.constant dense<0.000000e+00> : vector<6x2560xf32>
    %3 = tpu.matmul %0, %2, %cst {dimension_numbers = #tpu.dot_dimension_numbers<[1], [0], [0], [1], [0, 0, 1, 1], [], []>} : vector<6x9xbf16>, vector<9x2560xbf16>, vector<6x2560xf32> -> vector<6x2560xf32>
    %c0_5 = arith.constant 0 : index
    %c1 = arith.constant 1 : index
    %c0_6 = arith.constant 0 : index
    %c0_7 = arith.constant 0 : index
    %4 = vector.load %arg1[%c0_5, %c1, %c0_6, %c0_7] : memref<1x4x9x2560xbf16, #tpu.memory_space<vmem>>, vector<1x1x9x2560xbf16>
    %5 = vector.shape_cast %4 : vector<1x1x9x2560xbf16> to vector<9x2560xbf16>
    %cst_8 = arith.constant dense<0.000000e+00> : vector<6x2560xf32>
    %6 = tpu.matmul %0, %5, %cst_8 {dimension_numbers = #tpu.dot_dimension_numbers<[1], [0], [0], [1], [0, 0, 1, 1], [], []>} : vector<6x9xbf16>, vector<9x2560xbf16>, vector<6x2560xf32> -> vector<6x2560xf32>
    %7 = arith.maximumf %3, %6 : vector<6x2560xf32>
    %c0_9 = arith.constant 0 : index
    %c2 = arith.constant 2 : index
    %c0_10 = arith.constant 0 : index
    %c0_11 = arith.constant 0 : index
    %8 = vector.load %arg1[%c0_9, %c2, %c0_10, %c0_11] : memref<1x4x9x2560xbf16, #tpu.memory_space<vmem>>, vector<1x1x9x2560xbf16>
    %9 = vector.shape_cast %8 : vector<1x1x9x2560xbf16> to vector<9x2560xbf16>
    %cst_12 = arith.constant dense<0.000000e+00> : vector<6x2560xf32>
    %10 = tpu.matmul %0, %9, %cst_12 {dimension_numbers = #tpu.dot_dimension_numbers<[1], [0], [0], [1], [0, 0, 1, 1], [], []>} : vector<6x9xbf16>, vector<9x2560xbf16>, vector<6x2560xf32> -> vector<6x2560xf32>
    %11 = arith.maximumf %7, %10 : vector<6x2560xf32>
    %c0_13 = arith.constant 0 : index
    %c3 = arith.constant 3 : index
    %c0_14 = arith.constant 0 : index
    %c0_15 = arith.constant 0 : index
    %12 = vector.load %arg1[%c0_13, %c3, %c0_14, %c0_15] : memref<1x4x9x2560xbf16, #tpu.memory_space<vmem>>, vector<1x1x9x2560xbf16>
    %13 = vector.shape_cast %12 : vector<1x1x9x2560xbf16> to vector<9x2560xbf16>
    %cst_16 = arith.constant dense<0.000000e+00> : vector<6x2560xf32>
    %14 = tpu.matmul %0, %13, %cst_16 {dimension_numbers = #tpu.dot_dimension_numbers<[1], [0], [0], [1], [0, 0, 1, 1], [], []>} : vector<6x9xbf16>, vector<9x2560xbf16>, vector<6x2560xf32> -> vector<6x2560xf32>
    %15 = arith.maximumf %11, %14 : vector<6x2560xf32>
    %c0_17 = arith.constant 0 : index
    %c0_18 = arith.constant 0 : index
    %16 = vector.load %arg3[%c0_17, %c0_18] : memref<6x1xf32, #tpu.memory_space<vmem>>, vector<6x1xf32>
    %17 = vector.broadcast %16 : vector<6x1xf32> to vector<6x2560xf32>
    %18 = arith.addf %15, %17 : vector<6x2560xf32>
    %cst_19 = arith.constant 0.000000e+00 : f32
    %19 = vector.broadcast %cst_19 : f32 to vector<6x2560xf32>
    %20 = arith.maximumf %18, %19 : vector<6x2560xf32>
    %21 = arith.truncf %20 : vector<6x2560xf32> to vector<6x2560xbf16>
    %c0_20 = arith.constant 0 : index
    %c0_21 = arith.constant 0 : index
    %c0_22 = arith.constant 0 : index
    %22 = vector.load %arg4[%c0_20, %c0_21, %c0_22] : memref<1x6x2560xbf16, #tpu.memory_space<vmem>>, vector<1x6x2560xbf16>
    %23 = vector.shape_cast %22 : vector<1x6x2560xbf16> to vector<6x2560xbf16>
    %24 = vector.shape_cast %21 : vector<6x2560xbf16> to vector<1x6x2560xbf16>
    tpu.vector_store %arg4[%c0_20, %c0_21, %c0_22], %24 {strides = array<i32>} : memref<1x6x2560xbf16, #tpu.memory_space<vmem>>, vector<1x6x2560xbf16>,
    return
  }
  func.func @transform_0(%arg0: i32) -> (i32, i32, i32, i32) {
    %c0_i32 = arith.constant 0 : i32
    %c0_i32_0 = arith.constant 0 : i32
    %c0_i32_1 = arith.constant 0 : i32
    %c0_i32_2 = arith.constant 0 : i32
    return %arg0, %c0_i32, %c0_i32_0, %c0_i32_1 : i32, i32, i32, i32
  }
  func.func @transform_1(%arg0: i32) -> (i32, i32) {
    %c0_i32 = arith.constant 0 : i32
    %c0_i32_0 = arith.constant 0 : i32
    %c0_i32_1 = arith.constant 0 : i32
    return %c0_i32, %c0_i32_0 : i32, i32
  }
  func.func @transform_2(%arg0: i32) -> (i32, i32) {
    %c0_i32 = arith.constant 0 : i32
    %c0_i32_0 = arith.constant 0 : i32
    %c0_i32_1 = arith.constant 0 : i32
    return %c0_i32, %c0_i32_0 : i32, i32
  }
  func.func @transform_3(%arg0: i32) -> (i32, i32, i32) {
    %c0_i32 = arith.constant 0 : i32
    %c0_i32_0 = arith.constant 0 : i32
    %c0_i32_1 = arith.constant 0 : i32
    return %arg0, %c0_i32, %c0_i32_0 : i32, i32, i32
  }
}

module attributes {stable_mosaic.version = 11 : i64} {
  func.func @_head_kernel(%arg0: i32, %arg1: memref<2x5120xbf16, #tpu.memory_space<vmem>>, %arg2: memref<5120x128xbf16, #tpu.memory_space<vmem>>, %arg3: memref<1x128xf32, #tpu.memory_space<vmem>>, %arg4: memref<128x64xf32, #tpu.memory_space<vmem>>, %arg5: memref<1x64xf32, #tpu.memory_space<vmem>>, %arg6: memref<64x4xf32, #tpu.memory_space<vmem>>, %arg7: memref<1x4xf32, #tpu.memory_space<vmem>>, %arg8: memref<2x4xf32, #tpu.memory_space<vmem>>, %arg9: memref<2x128xf32, #tpu.memory_space<vmem>>) attributes {dimension_semantics = [#tpu.dimension_semantics<arbitrary>], iteration_bounds = array<i64: 2>, scalar_prefetch = 0 : i64, scratch_operands = 1 : i64, tpu.core_type = #tpu.core_type<tc>, window_params = [{transform_indices = @transform_0, window_bounds = array<i64: 2, 5120>}, {transform_indices = @transform_1, window_bounds = array<i64: 5120, 128>}, {pipeline_mode = #tpu.pipeline_mode<synchronous>, transform_indices = @transform_2, window_bounds = array<i64: 1, 128>}, {pipeline_mode = #tpu.pipeline_mode<synchronous>, transform_indices = @transform_3, window_bounds = array<i64: 128, 64>}, {pipeline_mode = #tpu.pipeline_mode<synchronous>, transform_indices = @transform_4, window_bounds = array<i64: 1, 64>}, {pipeline_mode = #tpu.pipeline_mode<synchronous>, transform_indices = @transform_5, window_bounds = array<i64: 64, 4>}, {pipeline_mode = #tpu.pipeline_mode<synchronous>, transform_indices = @transform_6, window_bounds = array<i64: 1, 4>}, {pipeline_mode = #tpu.pipeline_mode<synchronous>, transform_indices = @transform_7, window_bounds = array<i64: 2, 4>}]} {
    %c0_i32 = arith.constant 0 : i32
    %0 = arith.cmpi eq, %arg0, %c0_i32 : i32
    %1 = arith.extui %0 : i1 to i32
    %c0_i32_0 = arith.constant 0 : i32
    %2 = arith.cmpi ne, %1, %c0_i32_0 : i32
    scf.if %2 {
      %cst_9 = arith.constant 0.000000e+00 : f32
      %12 = vector.broadcast %cst_9 : f32 to vector<2x128xf32>
      %c0_10 = arith.constant 0 : index
      %c0_11 = arith.constant 0 : index
      %13 = vector.load %arg9[%c0_10, %c0_11] : memref<2x128xf32, #tpu.memory_space<vmem>>, vector<2x128xf32>
      tpu.vector_store %arg9[%c0_10, %c0_11], %12 {strides = array<i32>} : memref<2x128xf32, #tpu.memory_space<vmem>>, vector<2x128xf32>,
    } else {
    }
    %c0 = arith.constant 0 : index
    %c0_1 = arith.constant 0 : index
    %3 = vector.load %arg9[%c0, %c0_1] : memref<2x128xf32, #tpu.memory_space<vmem>>, vector<2x128xf32>
    %c0_2 = arith.constant 0 : index
    %c0_3 = arith.constant 0 : index
    %4 = vector.load %arg1[%c0_2, %c0_3] : memref<2x5120xbf16, #tpu.memory_space<vmem>>, vector<2x5120xbf16>
    %c0_4 = arith.constant 0 : index
    %c0_5 = arith.constant 0 : index
    %5 = vector.load %arg2[%c0_4, %c0_5] : memref<5120x128xbf16, #tpu.memory_space<vmem>>, vector<5120x128xbf16>
    %cst = arith.constant dense<0.000000e+00> : vector<2x128xf32>
    %6 = tpu.matmul %4, %5, %cst {dimension_numbers = #tpu.dot_dimension_numbers<[1], [0], [0], [1], [0, 0, 1, 1], [], []>} : vector<2x5120xbf16>, vector<5120x128xbf16>, vector<2x128xf32> -> vector<2x128xf32>
    %7 = arith.addf %3, %6 : vector<2x128xf32>
    %c0_6 = arith.constant 0 : index
    %c0_7 = arith.constant 0 : index
    %8 = vector.load %arg9[%c0_6, %c0_7] : memref<2x128xf32, #tpu.memory_space<vmem>>, vector<2x128xf32>
    tpu.vector_store %arg9[%c0_6, %c0_7], %7 {strides = array<i32>} : memref<2x128xf32, #tpu.memory_space<vmem>>, vector<2x128xf32>,
    %c1_i32 = arith.constant 1 : i32
    %9 = arith.cmpi eq, %arg0, %c1_i32 : i32
    %10 = arith.extui %9 : i1 to i32
    %c0_i32_8 = arith.constant 0 : i32
    %11 = arith.cmpi ne, %10, %c0_i32_8 : i32
    scf.if %11 {
      %c0_9 = arith.constant 0 : index
      %c0_10 = arith.constant 0 : index
      %12 = vector.load %arg9[%c0_9, %c0_10] : memref<2x128xf32, #tpu.memory_space<vmem>>, vector<2x128xf32>
      %c0_11 = arith.constant 0 : index
      %c0_12 = arith.constant 0 : index
      %13 = vector.load %arg3[%c0_11, %c0_12] : memref<1x128xf32, #tpu.memory_space<vmem>>, vector<1x128xf32>
      %14 = vector.broadcast %13 : vector<1x128xf32> to vector<2x128xf32>
      %15 = arith.addf %12, %14 : vector<2x128xf32>
      %cst_13 = arith.constant 0.000000e+00 : f32
      %16 = vector.broadcast %cst_13 : f32 to vector<2x128xf32>
      %17 = arith.maximumf %15, %16 : vector<2x128xf32>
      %c0_14 = arith.constant 0 : index
      %c0_15 = arith.constant 0 : index
      %18 = vector.load %arg4[%c0_14, %c0_15] : memref<128x64xf32, #tpu.memory_space<vmem>>, vector<128x64xf32>
      %cst_16 = arith.constant dense<0.000000e+00> : vector<2x64xf32>
      %19 = tpu.matmul %17, %18, %cst_16 {dimension_numbers = #tpu.dot_dimension_numbers<[1], [0], [0], [1], [0, 0, 1, 1], [], []>} : vector<2x128xf32>, vector<128x64xf32>, vector<2x64xf32> -> vector<2x64xf32>
      %c0_17 = arith.constant 0 : index
      %c0_18 = arith.constant 0 : index
      %20 = vector.load %arg5[%c0_17, %c0_18] : memref<1x64xf32, #tpu.memory_space<vmem>>, vector<1x64xf32>
      %21 = vector.broadcast %20 : vector<1x64xf32> to vector<2x64xf32>
      %22 = arith.addf %19, %21 : vector<2x64xf32>
      %cst_19 = arith.constant 0.000000e+00 : f32
      %23 = vector.broadcast %cst_19 : f32 to vector<2x64xf32>
      %24 = arith.maximumf %22, %23 : vector<2x64xf32>
      %c0_20 = arith.constant 0 : index
      %c0_21 = arith.constant 0 : index
      %25 = vector.load %arg6[%c0_20, %c0_21] : memref<64x4xf32, #tpu.memory_space<vmem>>, vector<64x4xf32>
      %cst_22 = arith.constant dense<0.000000e+00> : vector<2x4xf32>
      %26 = tpu.matmul %24, %25, %cst_22 {dimension_numbers = #tpu.dot_dimension_numbers<[1], [0], [0], [1], [0, 0, 1, 1], [], []>} : vector<2x64xf32>, vector<64x4xf32>, vector<2x4xf32> -> vector<2x4xf32>
      %c0_23 = arith.constant 0 : index
      %c0_24 = arith.constant 0 : index
      %27 = vector.load %arg7[%c0_23, %c0_24] : memref<1x4xf32, #tpu.memory_space<vmem>>, vector<1x4xf32>
      %28 = vector.broadcast %27 : vector<1x4xf32> to vector<2x4xf32>
      %29 = arith.addf %26, %28 : vector<2x4xf32>
      %cst_25 = arith.constant dense<0xFF800000> : vector<2xf32>
      %30 = vector.multi_reduction <maximumf>, %29, %cst_25 [1] : vector<2x4xf32> to vector<2xf32>
      %31 = vector.shape_cast %30 : vector<2xf32> to vector<2x1xf32>
      %32 = vector.broadcast %31 : vector<2x1xf32> to vector<2x4xf32>
      %33 = arith.subf %29, %32 : vector<2x4xf32>
      %34 = math.exp %33 : vector<2x4xf32>
      %cst_26 = arith.constant dense<0.000000e+00> : vector<2xf32>
      %35 = vector.multi_reduction <add>, %34, %cst_26 [1] : vector<2x4xf32> to vector<2xf32>
      %36 = vector.shape_cast %35 : vector<2xf32> to vector<2x1xf32>
      %37 = math.log %36 : vector<2x1xf32>
      %38 = vector.broadcast %37 : vector<2x1xf32> to vector<2x4xf32>
      %39 = arith.subf %33, %38 : vector<2x4xf32>
      %c0_27 = arith.constant 0 : index
      %c0_28 = arith.constant 0 : index
      %40 = vector.load %arg8[%c0_27, %c0_28] : memref<2x4xf32, #tpu.memory_space<vmem>>, vector<2x4xf32>
      tpu.vector_store %arg8[%c0_27, %c0_28], %39 {strides = array<i32>} : memref<2x4xf32, #tpu.memory_space<vmem>>, vector<2x4xf32>,
    } else {
    }
    return
  }
  func.func @transform_0(%arg0: i32) -> (i32, i32) {
    %c0_i32 = arith.constant 0 : i32
    %c0_i32_0 = arith.constant 0 : i32
    return %c0_i32, %arg0 : i32, i32
  }
  func.func @transform_1(%arg0: i32) -> (i32, i32) {
    %c0_i32 = arith.constant 0 : i32
    %c0_i32_0 = arith.constant 0 : i32
    return %arg0, %c0_i32 : i32, i32
  }
  func.func @transform_2(%arg0: i32) -> (i32, i32) {
    %c0_i32 = arith.constant 0 : i32
    %c0_i32_0 = arith.constant 0 : i32
    %c0_i32_1 = arith.constant 0 : i32
    return %c0_i32, %c0_i32_0 : i32, i32
  }
  func.func @transform_3(%arg0: i32) -> (i32, i32) {
    %c0_i32 = arith.constant 0 : i32
    %c0_i32_0 = arith.constant 0 : i32
    %c0_i32_1 = arith.constant 0 : i32
    return %c0_i32, %c0_i32_0 : i32, i32
  }
  func.func @transform_4(%arg0: i32) -> (i32, i32) {
    %c0_i32 = arith.constant 0 : i32
    %c0_i32_0 = arith.constant 0 : i32
    %c0_i32_1 = arith.constant 0 : i32
    return %c0_i32, %c0_i32_0 : i32, i32
  }
  func.func @transform_5(%arg0: i32) -> (i32, i32) {
    %c0_i32 = arith.constant 0 : i32
    %c0_i32_0 = arith.constant 0 : i32
    %c0_i32_1 = arith.constant 0 : i32
    return %c0_i32, %c0_i32_0 : i32, i32
  }
  func.func @transform_6(%arg0: i32) -> (i32, i32) {
    %c0_i32 = arith.constant 0 : i32
    %c0_i32_0 = arith.constant 0 : i32
    %c0_i32_1 = arith.constant 0 : i32
    return %c0_i32, %c0_i32_0 : i32, i32
  }
  func.func @transform_7(%arg0: i32) -> (i32, i32) {
    %c0_i32 = arith.constant 0 : i32
    %c0_i32_0 = arith.constant 0 : i32
    %c0_i32_1 = arith.constant 0 : i32
    return %c0_i32, %c0_i32_0 : i32, i32
  }
}

module attributes {stable_mosaic.version = 11 : i64} {
  func.func @_conv_relu_pool_kernel(%arg0: i32, %arg1: memref<1x4x54x640xbf16, #tpu.memory_space<vmem>>, %arg2: memref<16x54xbf16, #tpu.memory_space<vmem>>, %arg3: memref<16x1xf32, #tpu.memory_space<vmem>>, %arg4: memref<1x16x640xbf16, #tpu.memory_space<vmem>>) attributes {dimension_semantics = [#tpu.dimension_semantics<parallel>], iteration_bounds = array<i64: 2>, scalar_prefetch = 0 : i64, scratch_operands = 0 : i64, tpu.core_type = #tpu.core_type<tc>, window_params = [{transform_indices = @transform_0, window_bounds = array<i64: 1, 4, 54, 640>}, {pipeline_mode = #tpu.pipeline_mode<synchronous>, transform_indices = @transform_1, window_bounds = array<i64: 16, 54>}, {pipeline_mode = #tpu.pipeline_mode<synchronous>, transform_indices = @transform_2, window_bounds = array<i64: 16, 1>}, {transform_indices = @transform_3, window_bounds = array<i64: 1, 16, 640>}]} {
    %c0 = arith.constant 0 : index
    %c0_0 = arith.constant 0 : index
    %0 = vector.load %arg2[%c0, %c0_0] : memref<16x54xbf16, #tpu.memory_space<vmem>>, vector<16x54xbf16>
    %c0_1 = arith.constant 0 : index
    %c0_2 = arith.constant 0 : index
    %c0_3 = arith.constant 0 : index
    %c0_4 = arith.constant 0 : index
    %1 = vector.load %arg1[%c0_1, %c0_2, %c0_3, %c0_4] : memref<1x4x54x640xbf16, #tpu.memory_space<vmem>>, vector<1x1x54x640xbf16>
    %2 = vector.shape_cast %1 : vector<1x1x54x640xbf16> to vector<54x640xbf16>
    %cst = arith.constant dense<0.000000e+00> : vector<16x640xf32>
    %3 = tpu.matmul %0, %2, %cst {dimension_numbers = #tpu.dot_dimension_numbers<[1], [0], [0], [1], [0, 0, 1, 1], [], []>} : vector<16x54xbf16>, vector<54x640xbf16>, vector<16x640xf32> -> vector<16x640xf32>
    %c0_5 = arith.constant 0 : index
    %c1 = arith.constant 1 : index
    %c0_6 = arith.constant 0 : index
    %c0_7 = arith.constant 0 : index
    %4 = vector.load %arg1[%c0_5, %c1, %c0_6, %c0_7] : memref<1x4x54x640xbf16, #tpu.memory_space<vmem>>, vector<1x1x54x640xbf16>
    %5 = vector.shape_cast %4 : vector<1x1x54x640xbf16> to vector<54x640xbf16>
    %cst_8 = arith.constant dense<0.000000e+00> : vector<16x640xf32>
    %6 = tpu.matmul %0, %5, %cst_8 {dimension_numbers = #tpu.dot_dimension_numbers<[1], [0], [0], [1], [0, 0, 1, 1], [], []>} : vector<16x54xbf16>, vector<54x640xbf16>, vector<16x640xf32> -> vector<16x640xf32>
    %7 = arith.maximumf %3, %6 : vector<16x640xf32>
    %c0_9 = arith.constant 0 : index
    %c2 = arith.constant 2 : index
    %c0_10 = arith.constant 0 : index
    %c0_11 = arith.constant 0 : index
    %8 = vector.load %arg1[%c0_9, %c2, %c0_10, %c0_11] : memref<1x4x54x640xbf16, #tpu.memory_space<vmem>>, vector<1x1x54x640xbf16>
    %9 = vector.shape_cast %8 : vector<1x1x54x640xbf16> to vector<54x640xbf16>
    %cst_12 = arith.constant dense<0.000000e+00> : vector<16x640xf32>
    %10 = tpu.matmul %0, %9, %cst_12 {dimension_numbers = #tpu.dot_dimension_numbers<[1], [0], [0], [1], [0, 0, 1, 1], [], []>} : vector<16x54xbf16>, vector<54x640xbf16>, vector<16x640xf32> -> vector<16x640xf32>
    %11 = arith.maximumf %7, %10 : vector<16x640xf32>
    %c0_13 = arith.constant 0 : index
    %c3 = arith.constant 3 : index
    %c0_14 = arith.constant 0 : index
    %c0_15 = arith.constant 0 : index
    %12 = vector.load %arg1[%c0_13, %c3, %c0_14, %c0_15] : memref<1x4x54x640xbf16, #tpu.memory_space<vmem>>, vector<1x1x54x640xbf16>
    %13 = vector.shape_cast %12 : vector<1x1x54x640xbf16> to vector<54x640xbf16>
    %cst_16 = arith.constant dense<0.000000e+00> : vector<16x640xf32>
    %14 = tpu.matmul %0, %13, %cst_16 {dimension_numbers = #tpu.dot_dimension_numbers<[1], [0], [0], [1], [0, 0, 1, 1], [], []>} : vector<16x54xbf16>, vector<54x640xbf16>, vector<16x640xf32> -> vector<16x640xf32>
    %15 = arith.maximumf %11, %14 : vector<16x640xf32>
    %c0_17 = arith.constant 0 : index
    %c0_18 = arith.constant 0 : index
    %16 = vector.load %arg3[%c0_17, %c0_18] : memref<16x1xf32, #tpu.memory_space<vmem>>, vector<16x1xf32>
    %17 = vector.broadcast %16 : vector<16x1xf32> to vector<16x640xf32>
    %18 = arith.addf %15, %17 : vector<16x640xf32>
    %cst_19 = arith.constant 0.000000e+00 : f32
    %19 = vector.broadcast %cst_19 : f32 to vector<16x640xf32>
    %20 = arith.maximumf %18, %19 : vector<16x640xf32>
    %21 = arith.truncf %20 : vector<16x640xf32> to vector<16x640xbf16>
    %c0_20 = arith.constant 0 : index
    %c0_21 = arith.constant 0 : index
    %c0_22 = arith.constant 0 : index
    %22 = vector.load %arg4[%c0_20, %c0_21, %c0_22] : memref<1x16x640xbf16, #tpu.memory_space<vmem>>, vector<1x16x640xbf16>
    %23 = vector.shape_cast %22 : vector<1x16x640xbf16> to vector<16x640xbf16>
    %24 = vector.shape_cast %21 : vector<16x640xbf16> to vector<1x16x640xbf16>
    tpu.vector_store %arg4[%c0_20, %c0_21, %c0_22], %24 {strides = array<i32>} : memref<1x16x640xbf16, #tpu.memory_space<vmem>>, vector<1x16x640xbf16>,
    return
  }
  func.func @transform_0(%arg0: i32) -> (i32, i32, i32, i32) {
    %c0_i32 = arith.constant 0 : i32
    %c0_i32_0 = arith.constant 0 : i32
    %c0_i32_1 = arith.constant 0 : i32
    %c0_i32_2 = arith.constant 0 : i32
    return %arg0, %c0_i32, %c0_i32_0, %c0_i32_1 : i32, i32, i32, i32
  }
  func.func @transform_1(%arg0: i32) -> (i32, i32) {
    %c0_i32 = arith.constant 0 : i32
    %c0_i32_0 = arith.constant 0 : i32
    %c0_i32_1 = arith.constant 0 : i32
    return %c0_i32, %c0_i32_0 : i32, i32
  }
  func.func @transform_2(%arg0: i32) -> (i32, i32) {
    %c0_i32 = arith.constant 0 : i32
    %c0_i32_0 = arith.constant 0 : i32
    %c0_i32_1 = arith.constant 0 : i32
    return %c0_i32, %c0_i32_0 : i32, i32
  }
  func.func @transform_3(%arg0: i32) -> (i32, i32, i32) {
    %c0_i32 = arith.constant 0 : i32
    %c0_i32_0 = arith.constant 0 : i32
    %c0_i32_1 = arith.constant 0 : i32
    return %arg0, %c0_i32, %c0_i32_0 : i32, i32, i32
  }
}

</mosaic_0001>

<llo_original>
// kernel: forward.3
$region0: #{forward.3}
  #allocation0 [shape = 'u32[]', space=smem, size = 0x4, offset = 0x4, fixed_abs, tag = 'smem constant byte address 0x4 - core index']
  #allocation1 [shape = 'u32[72,128]{1,0:T(1,128)}', space=vmem, size = 0x9000, scoped, tag = 'internal scratch']
  %s0 = inlined_call_operand.vmem [shape: bf16[2,4,9,2560], index: 0, kind: input, shape index: {}]
  %s1 = inlined_call_operand.vmem [shape: bf16[6,9], index: 1, kind: input, shape index: {}]
  %s2 = inlined_call_operand.vmem [shape: f32[6,1], index: 2, kind: input, shape index: {}]
  %s3 = inlined_call_operand.vmem [shape: bf16[2,6,2560], index: 3, kind: output, shape index: {}]
  %s4 = sld [smem:[#allocation0]]
  $region45: #{forward.3} parent=0
    _
  %s6 = ssub.s32 1, %s4
  %s7 = scalar_select 0, %s6, %s4
  loop: start=0, step=1, limit=4
  $region2: #{forward.3} parent=0 // loop_pre_header
    _
  $region3: #{forward.3} parent=0 // loop_header
    %s9 = sphi 0, %s13
    %p10 = scmp.ge.s32.totalorder %s9, 4
    %s19 = sphi 0, %s21
    %s22 = sphi 0, %s19
    %s23 = sphi 0, %s22
    %s39 = sphi 0, %s23
    %s43 = sphi 0, %s43
    %s45 = sphi 0, %s43
    %s46 = sphi 0, %s45
    %s60 = sphi 0, %s46
    %s64 = sphi 0, %s64
    %s66 = sphi 0, %s64
    %s67 = sphi 0, %s66
    %s81 = sphi 0, %s67
    %s87 = sphi 0, %s89
    %s90 = sphi 0, %s87
    %s91 = sphi 0, %s90
    %s107 = sphi 0, %s91
  $region4: #{forward.3} parent=0 // loop_header_branch
    %12 = sbr.rel (%p10) target = $region8
  $region5: #{forward.3} parent=0 // loop_body
    %s14 = ssub.s32 %s9, 1
    %s15 = ssub.s32 %s9, 2
    %s16 = sadd.s32 %s9, 1
    %s17 = ssub.s32 %s9, %s16
    %p18 = scmp.eq.s32.totalorder %s17, 0
    %s20 = sadd.s32 %s19, 1
    %s21 = scalar_select %p18, %s19, %s20
    %p24 = pneg %p18
    %p25 = scmp.eq.s32.totalorder %s9, 1
    %p26 = por %p24, %p25
    %p27 = scmp.ne.s32.totalorder %s19, %s22
    %p28 = scmp.eq.s32.totalorder %s9, 0
    %p29 = por %p27, %p28
    %p30 = scmp.ne.s32.totalorder %s19, %s22
    %p31 = scmp.eq.s32.totalorder %s14, 1
    %p32 = por %p30, %p31
    %p33 = scmp.ne.s32.totalorder %s22, %s23
    %p34 = scmp.eq.s32.totalorder %s14, 0
    %p35 = por %p33, %p34
    %p36 = scmp.ne.s32.totalorder %s22, %s23
    %p37 = scmp.eq.s32.totalorder %s15, 1
    %p38 = por %p36, %p37
    %p40 = scmp.ne.s32.totalorder %s23, %s39
    %p41 = scmp.eq.s32.totalorder %s15, 0
    %p42 = por %p40, %p41
    %s44 = sadd.s32 %s43, 1
    %p47 = scmp.eq.s32.totalorder %s9, 1
    %p48 = scmp.ne.s32.totalorder %s43, %s45
    %p49 = scmp.eq.s32.totalorder %s9, 0
    %p50 = por %p48, %p49
    %p51 = scmp.ne.s32.totalorder %s43, %s45
    %p52 = scmp.eq.s32.totalorder %s14, 1
    %p53 = por %p51, %p52
    %p54 = scmp.ne.s32.totalorder %s45, %s46
    %p55 = scmp.eq.s32.totalorder %s14, 0
    %p56 = por %p54, %p55
    %p57 = scmp.ne.s32.totalorder %s45, %s46
    %p58 = scmp.eq.s32.totalorder %s15, 1
    %p59 = por %p57, %p58
    %p61 = scmp.ne.s32.totalorder %s46, %s60
    %p62 = scmp.eq.s32.totalorder %s15, 0
    %p63 = por %p61, %p62
    %s65 = sadd.s32 %s64, 1
    %p68 = scmp.eq.s32.totalorder %s9, 1
    %p69 = scmp.ne.s32.totalorder %s64, %s66
    %p70 = scmp.eq.s32.totalorder %s9, 0
    %p71 = por %p69, %p70
    %p72 = scmp.ne.s32.totalorder %s64, %s66
    %p73 = scmp.eq.s32.totalorder %s14, 1
    %p74 = por %p72, %p73
    %p75 = scmp.ne.s32.totalorder %s66, %s67
    %p76 = scmp.eq.s32.totalorder %s14, 0
    %p77 = por %p75, %p76
    %p78 = scmp.ne.s32.totalorder %s66, %s67
    %p79 = scmp.eq.s32.totalorder %s15, 1
    %p80 = por %p78, %p79
    %p82 = scmp.ne.s32.totalorder %s67, %s81
    %p83 = scmp.eq.s32.totalorder %s15, 0
    %p84 = por %p82, %p83
    %s85 = ssub.s32 %s9, %s16
    %p86 = scmp.eq.s32.totalorder %s85, 0
    %s88 = sadd.s32 %s87, 1
    %s89 = scalar_select %p86, %s87, %s88
    %p92 = pneg %p86
    %p93 = scmp.eq.s32.totalorder %s9, 1
    %p94 = por %p92, %p93
    %p95 = scmp.ne.s32.totalorder %s87, %s90
    %p96 = scmp.eq.s32.totalorder %s9, 0
    %p97 = por %p95, %p96
    %p98 = scmp.ne.s32.totalorder %s87, %s90
    %p99 = scmp.eq.s32.totalorder %s14, 1
    %p100 = por %p98, %p99
    %p101 = scmp.ne.s32.totalorder %s90, %s91
    %p102 = scmp.eq.s32.totalorder %s14, 0
    %p103 = por %p101, %p102
    %p104 = scmp.ne.s32.totalorder %s90, %s91
    %p105 = scmp.eq.s32.totalorder %s15, 1
    %p106 = por %p104, %p105
    %p108 = scmp.ne.s32.totalorder %s91, %s107
    %p109 = scmp.eq.s32.totalorder %s15, 0
    %p110 = por %p108, %p109
    %p111 = scmp.le.s32.totalorder 1, %s9
    %p112 = scmp.lt.s32.totalorder %s9, 3
    %p113 = pnand %p111, %p112
    %p114 = pneg %p113
    // Predicated region
    $region9: #{forward.3} parent=5 // pred_check
      _
    $region10: #{forward.3} parent=5 // pred_check_branch
      %116 = sbr.rel (%p113) target = $region12
    $region11: #{forward.3} parent=5 // pred_region
      %s117 = ssub.s32 %s9, 1
      // Predicated region
      $region13: #{forward.3} parent=11 // pred_check
        %p118 = pneg %p56
      $region14: #{forward.3} parent=11 // pred_check_branch
        %120 = sbr.rel (%p118) target = $region16
      $region15: #{forward.3} parent=11 // pred_region
        _
      $region16: #{forward.3} parent=11 // pred_fallthru
        _
      // Predicated region
      $region17: #{forward.3} parent=11 // pred_check
        %p121 = pneg %p77
      $region18: #{forward.3} parent=11 // pred_check_branch
        %123 = sbr.rel (%p121) target = $region20
      $region19: #{forward.3} parent=11 // pred_region
        _
      $region20: #{forward.3} parent=11 // pred_fallthru
        _
    $region12: #{forward.3} parent=5 // pred_fallthru
      _
    %p124 = scmp.lt.s32.totalorder %s9, 2
    // Predicated region
    $region21: #{forward.3} parent=5 // pred_check
      %p125 = pneg %p124
    $region22: #{forward.3} parent=5 // pred_check_branch
      %127 = sbr.rel (%p125) target = $region24
    $region23: #{forward.3} parent=5 // pred_region
      // Predicated region
      $region25: #{forward.3} parent=23 // pred_check
        %p128 = pneg %p29
      $region26: #{forward.3} parent=23 // pred_check_branch
        %130 = sbr.rel (%p128) target = $region28
      $region27: #{forward.3} parent=23 // pred_region
        %p131 = scmp.lt.s32.totalorder %s9, 1
        %s132 = scalar_select %p131, %s9, 1
        %s133 = smul.addr %s132, 160
        %s134 = smul.addr %s133, 4
        %s135 = scalar_lea.vmem %s0, %s134
      $region28: #{forward.3} parent=23 // pred_fallthru
        _
    $region24: #{forward.3} parent=5 // pred_fallthru
      _
    %p136 = scmp.le.s32.totalorder 1, %s9
    %p137 = scmp.lt.s32.totalorder %s9, 3
    %p138 = pnand %p136, %p137
    %p139 = pneg %p138
    // Predicated region
    $region29: #{forward.3} parent=5 // pred_check
      _
    $region30: #{forward.3} parent=5 // pred_check_branch
      %141 = sbr.rel (%p138) target = $region32
    $region31: #{forward.3} parent=5 // pred_region
      %s142 = ssub.s32 %s9, 1
      %p143 = scmp.lt.s32.totalorder %s14, 1
      %s144 = scalar_select %p143, %s14, 1
      %s145 = smul.addr %s144, 160
      %s146 = smul.addr %s145, 4
      %s147 = scalar_lea.vmem %s0, %s146
      %p148 = pneg %p35
      %p149 = pneg %p32
      %p150 = pneg %p56
      %p151 = pneg %p53
      %p152 = pneg %p77
      %p153 = pneg %p74
      %p154 = pneg %p103
      %p155 = pneg %p100
      %p156 = scmp.lt.s32.totalorder %s14, 1
      %s157 = scalar_select %p156, %s14, 1
      %s158 = smul.addr %s157, 20
      %s159 = smul.addr %s158, 4
      %s160 = scalar_lea.vmem %s3, %s159
      %p161 = scmp.lt.s32.totalorder %s14, 1
      %s162 = scalar_select %p161, %s14, 1
      %s163 = smul.addr %s162, 160
      %s164 = smul.addr %s163, 4
      %s165 = scalar_lea.vmem %s0, %s164
      %p166 = scmp.lt.s32.totalorder %s14, 1
      %s167 = scalar_select %p166, %s14, 1
      %s168 = smul.addr %s167, 20
      %s169 = smul.addr %s168, 4
      %s170 = scalar_lea.vmem %s3, %s169
      %v172 = vld [vmem:[%s1] sm:$0x7]
      %v173 = vld [vmem:[%s165] sm:$0xff]
      %v174 = vld [vmem:[%s165 + $0x8] sm:$0xff]
      %v175 = vld [vmem:[%s165 + $0x10] sm:$0xff]
      %v176 = vld [vmem:[%s165 + $0x18] sm:$0xff]
      %v177 = vld [vmem:[%s165 + $0x20] sm:$0xff]
      %v178 = vld [vmem:[%s165 + $0x28] sm:$0xff]
      %v179 = vld [vmem:[%s165 + $0x30] sm:$0xff]
      %v180 = vld [vmem:[%s165 + $0x38] sm:$0xff]
      %v181 = vld [vmem:[%s165 + $0x40] sm:$0xff]
      %v182 = vld [vmem:[%s165 + $0x48] sm:$0xff]
      %v183 = vld [vmem:[%s165 + $0x50] sm:$0x11]
      %v184 = vld [vmem:[%s165 + $0x58] sm:$0x11]
      %v185 = vld [vmem:[%s165 + $0x60] sm:$0x11]
      %v186 = vld [vmem:[%s165 + $0x68] sm:$0x11]
      %v187 = vld [vmem:[%s165 + $0x70] sm:$0x11]
      %v188 = vld [vmem:[%s165 + $0x78] sm:$0x11]
      %v189 = vld [vmem:[%s165 + $0x80] sm:$0x11]
      %v190 = vld [vmem:[%s165 + $0x88] sm:$0x11]
      %v191 = vld [vmem:[%s165 + $0x90] sm:$0x11]
      %v192 = vld [vmem:[%s165 + $0x98] sm:$0x11]
      %v213 = vunpack.c.l.b16 %v173
      %v214 = vunpack.c.h.b16 %v173
      %v215 = vunpack.c.l.b16 %v174
      %v216 = vunpack.c.h.b16 %v174
      %v217 = vunpack.c.l.b16 %v175
      %v218 = vunpack.c.h.b16 %v175
      %v219 = vunpack.c.l.b16 %v176
      %v220 = vunpack.c.h.b16 %v176
      %v221 = vunpack.c.l.b16 %v177
      %v222 = vunpack.c.h.b16 %v177
      %v223 = vunpack.c.l.b16 %v178
      %v224 = vunpack.c.h.b16 %v178
      %v225 = vunpack.c.l.b16 %v179
      %v226 = vunpack.c.h.b16 %v179
      %v227 = vunpack.c.l.b16 %v180
      %v228 = vunpack.c.h.b16 %v180
      %v229 = vunpack.c.l.b16 %v181
      %v230 = vunpack.c.h.b16 %v181
      %v231 = vunpack.c.l.b16 %v182
      %v232 = vunpack.c.h.b16 %v182
      %v233 = vunpack.c.l.b16 %v183
      %v234 = vunpack.c.h.b16 %v183
      %v235 = vunpack.c.l.b16 %v184
      %v236 = vunpack.c.h.b16 %v184
      %v237 = vunpack.c.l.b16 %v185
      %v238 = vunpack.c.h.b16 %v185
      %v239 = vunpack.c.l.b16 %v186
      %v240 = vunpack.c.h.b16 %v186
      %v241 = vunpack.c.l.b16 %v187
      %v242 = vunpack.c.h.b16 %v187
      %v243 = vunpack.c.l.b16 %v188
      %v244 = vunpack.c.h.b16 %v188
      %v245 = vunpack.c.l.b16 %v189
      %v246 = vunpack.c.h.b16 %v189
      %v247 = vunpack.c.l.b16 %v190
      %v248 = vunpack.c.h.b16 %v190
      %v249 = vunpack.c.l.b16 %v191
      %v250 = vunpack.c.h.b16 %v191
      %v251 = vunpack.c.l.b16 %v192
      %v252 = vunpack.c.h.b16 %v192
      %v253 = vpack.c.b16 %v233, %v213
      %v254 = vpack.c.b16 %v234, %v214
      %v255 = vpack.c.b16 %v235, %v215
      %v256 = vpack.c.b16 %v236, %v216
      %v257 = vpack.c.b16 %v237, %v217
      %v258 = vpack.c.b16 %v238, %v218
      %v259 = vpack.c.b16 %v239, %v219
      %v260 = vpack.c.b16 %v240, %v220
      %v261 = vpack.c.b16 %v241, %v221
      %v262 = vpack.c.b16 %v242, %v222
      %v263 = vpack.c.b16 %v243, %v223
      %v264 = vpack.c.b16 %v244, %v224
      %v265 = vpack.c.b16 %v245, %v225
      %v266 = vpack.c.b16 %v246, %v226
      %v267 = vpack.c.b16 %v247, %v227
      %v268 = vpack.c.b16 %v248, %v228
      %v269 = vpack.c.b16 %v249, %v229
      %v270 = vpack.c.b16 %v250, %v230
      %v271 = vpack.c.b16 %v251, %v231
      %v272 = vpack.c.b16 %v252, %v232
      %vm273 = vcmask 72704
      %v275 = vsel %vm273, %v172, 0
      %vm277 = vcmask 1043456
      %vm278 = vcmask 1044480
      %v279 = vsel %vm277, 4294967295, 65535
      %v280 = vsel %vm278, %v279, 0
      %v282 = vand.u32 %v253, %v280
      %v285 = vand.u32 %v254, %v280
      %v288 = vand.u32 %v255, %v280
      %v291 = vand.u32 %v256, %v280
      %v294 = vand.u32 %v257, %v280
      %v297 = vand.u32 %v258, %v280
      %v300 = vand.u32 %v259, %v280
      %v303 = vand.u32 %v260, %v280
      %v306 = vand.u32 %v261, %v280
      %v309 = vand.u32 %v262, %v280
      %v312 = vand.u32 %v263, %v280
      %v315 = vand.u32 %v264, %v280
      %v318 = vand.u32 %v265, %v280
      %v321 = vand.u32 %v266, %v280
      %v324 = vand.u32 %v267, %v280
      %v327 = vand.u32 %v268, %v280
      %v330 = vand.u32 %v269, %v280
      %v333 = vand.u32 %v270, %v280
      %v336 = vand.u32 %v271, %v280
      %v339 = vand.u32 %v272, %v280
      %341 = vmatpush.bf16.msra.mxu0 0
      %342 = vmatpush.bf16.msra.mxu0 0
      %343 = vmatpush.bf16.msra.mxu0 0
      %344 = vmatpush.bf16.msra.mxu0 0
      %345 = vmatpush.bf16.msra.mxu0 0
      %346 = vmatpush.bf16.msra.mxu0 0
      %347 = vmatpush.bf16.msra.mxu0 0
      %348 = vmatpush.bf16.msra.mxu0 %v282
      %349 = vmatmul.bf16.gmra.mxu0 %v275
      %v350 = vpop.f32.mrf.mxu0
      %v351 = vadd.f32 0.0, %v350
      %v352 = vpop.f32.mrf.mxu0
      %353 = vdwg.mxu0
      %354 = vmatpush.bf16.msra.mxu0 0
      %355 = vmatpush.bf16.msra.mxu0 0
      %356 = vmatpush.bf16.msra.mxu0 0
      %357 = vmatpush.bf16.msra.mxu0 0
      %358 = vmatpush.bf16.msra.mxu0 0
      %359 = vmatpush.bf16.msra.mxu0 0
      %360 = vmatpush.bf16.msra.mxu0 0
      %361 = vmatpush.bf16.msra.mxu0 %v285
      %362 = vmatmul.bf16.gmra.mxu0 %v275
      %v363 = vpop.f32.mrf.mxu0
      %v364 = vadd.f32 0.0, %v363
      %v365 = vpop.f32.mrf.mxu0
      %366 = vdwg.mxu0
      %367 = vmatpush.bf16.msra.mxu0 0
      %368 = vmatpush.bf16.msra.mxu0 0
      %369 = vmatpush.bf16.msra.mxu0 0
      %370 = vmatpush.bf16.msra.mxu0 0
      %371 = vmatpush.bf16.msra.mxu0 0
      %372 = vmatpush.bf16.msra.mxu0 0
      %373 = vmatpush.bf16.msra.mxu0 0
      %374 = vmatpush.bf16.msra.mxu0 %v288
      %375 = vmatmul.bf16.gmra.mxu0 %v275
      %v376 = vpop.f32.mrf.mxu0
      %v377 = vadd.f32 0.0, %v376
      %v378 = vpop.f32.mrf.mxu0
      %379 = vdwg.mxu0
      %380 = vmatpush.bf16.msra.mxu0 0
      %381 = vmatpush.bf16.msra.mxu0 0
      %382 = vmatpush.bf16.msra.mxu0 0
      %383 = vmatpush.bf16.msra.mxu0 0
      %384 = vmatpush.bf16.msra.mxu0 0
      %385 = vmatpush.bf16.msra.mxu0 0
      %386 = vmatpush.bf16.msra.mxu0 0
      %387 = vmatpush.bf16.msra.mxu0 %v291
      %388 = vmatmul.bf16.gmra.mxu0 %v275
      %v389 = vpop.f32.mrf.mxu0
      %v390 = vadd.f32 0.0, %v389
      %v391 = vpop.f32.mrf.mxu0
      %392 = vdwg.mxu0
      %393 = vmatpush.bf16.msra.mxu0 0
      %394 = vmatpush.bf16.msra.mxu0 0
      %395 = vmatpush.bf16.msra.mxu0 0
      %396 = vmatpush.bf16.msra.mxu0 0
      %397 = vmatpush.bf16.msra.mxu0 0
      %398 = vmatpush.bf16.msra.mxu0 0
      %399 = vmatpush.bf16.msra.mxu0 0
      %400 = vmatpush.bf16.msra.mxu0 %v294
      %401 = vmatmul.bf16.gmra.mxu0 %v275
      %v402 = vpop.f32.mrf.mxu0
      %v403 = vadd.f32 0.0, %v402
      %v404 = vpop.f32.mrf.mxu0
      %405 = vdwg.mxu0
      %406 = vmatpush.bf16.msra.mxu0 0
      %407 = vmatpush.bf16.msra.mxu0 0
      %408 = vmatpush.bf16.msra.mxu0 0
      %409 = vmatpush.bf16.msra.mxu0 0
      %410 = vmatpush.bf16.msra.mxu0 0
      %411 = vmatpush.bf16.msra.mxu0 0
      %412 = vmatpush.bf16.msra.mxu0 0
      %413 = vmatpush.bf16.msra.mxu0 %v297
      %414 = vmatmul.bf16.gmra.mxu0 %v275
      %v415 = vpop.f32.mrf.mxu0
      %v416 = vadd.f32 0.0, %v415
      %v417 = vpop.f32.mrf.mxu0
      %418 = vdwg.mxu0
      %419 = vmatpush.bf16.msra.mxu0 0
      %420 = vmatpush.bf16.msra.mxu0 0
      %421 = vmatpush.bf16.msra.mxu0 0
      %422 = vmatpush.bf16.msra.mxu0 0
      %423 = vmatpush.bf16.msra.mxu0 0
      %424 = vmatpush.bf16.msra.mxu0 0
      %425 = vmatpush.bf16.msra.mxu0 0
      %426 = vmatpush.bf16.msra.mxu0 %v300
      %427 = vmatmul.bf16.gmra.mxu0 %v275
      %v428 = vpop.f32.mrf.mxu0
      %v429 = vadd.f32 0.0, %v428
      %v430 = vpop.f32.mrf.mxu0
      %431 = vdwg.mxu0
      %432 = vmatpush.bf16.msra.mxu0 0
      %433 = vmatpush.bf16.msra.mxu0 0
      %434 = vmatpush.bf16.msra.mxu0 0
      %435 = vmatpush.bf16.msra.mxu0 0
      %436 = vmatpush.bf16.msra.mxu0 0
      %437 = vmatpush.bf16.msra.mxu0 0
      %438 = vmatpush.bf16.msra.mxu0 0
      %439 = vmatpush.bf16.msra.mxu0 %v303
      %440 = vmatmul.bf16.gmra.mxu0 %v275
      %v441 = vpop.f32.mrf.mxu0
      %v442 = vadd.f32 0.0, %v441
      %v443 = vpop.f32.mrf.mxu0
      %444 = vdwg.mxu0
      %445 = vmatpush.bf16.msra.mxu0 0
      %446 = vmatpush.bf16.msra.mxu0 0
      %447 = vmatpush.bf16.msra.mxu0 0
      %448 = vmatpush.bf16.msra.mxu0 0
      %449 = vmatpush.bf16.msra.mxu0 0
      %450 = vmatpush.bf16.msra.mxu0 0
      %451 = vmatpush.bf16.msra.mxu0 0
      %452 = vmatpush.bf16.msra.mxu0 %v306
      %453 = vmatmul.bf16.gmra.mxu0 %v275
      %v454 = vpop.f32.mrf.mxu0
      %v455 = vadd.f32 0.0, %v454
      %v456 = vpop.f32.mrf.mxu0
      %457 = vdwg.mxu0
      %458 = vmatpush.bf16.msra.mxu0 0
      %459 = vmatpush.bf16.msra.mxu0 0
      %460 = vmatpush.bf16.msra.mxu0 0
      %461 = vmatpush.bf16.msra.mxu0 0
      %462 = vmatpush.bf16.msra.mxu0 0
      %463 = vmatpush.bf16.msra.mxu0 0
      %464 = vmatpush.bf16.msra.mxu0 0
      %465 = vmatpush.bf16.msra.mxu0 %v309
      %466 = vmatmul.bf16.gmra.mxu0 %v275
      %v467 = vpop.f32.mrf.mxu0
      %v468 = vadd.f32 0.0, %v467
      %v469 = vpop.f32.mrf.mxu0
      %470 = vdwg.mxu0
      %471 = vmatpush.bf16.msra.mxu0 0
      %472 = vmatpush.bf16.msra.mxu0 0
      %473 = vmatpush.bf16.msra.mxu0 0
      %474 = vmatpush.bf16.msra.mxu0 0
      %475 = vmatpush.bf16.msra.mxu0 0
      %476 = vmatpush.bf16.msra.mxu0 0
      %477 = vmatpush.bf16.msra.mxu0 0
      %478 = vmatpush.bf16.msra.mxu0 %v312
      %479 = vmatmul.bf16.gmra.mxu0 %v275
      %v480 = vpop.f32.mrf.mxu0
      %v481 = vadd.f32 0.0, %v480
      %v482 = vpop.f32.mrf.mxu0
      %483 = vdwg.mxu0
      %484 = vmatpush.bf16.msra.mxu0 0
      %485 = vmatpush.bf16.msra.mxu0 0
      %486 = vmatpush.bf16.msra.mxu0 0
      %487 = vmatpush.bf16.msra.mxu0 0
      %488 = vmatpush.bf16.msra.mxu0 0
      %489 = vmatpush.bf16.msra.mxu0 0
      %490 = vmatpush.bf16.msra.mxu0 0
      %491 = vmatpush.bf16.msra.mxu0 %v315
      %492 = vmatmul.bf16.gmra.mxu0 %v275
      %v493 = vpop.f32.mrf.mxu0
      %v494 = vadd.f32 0.0, %v493
      %v495 = vpop.f32.mrf.mxu0
      %496 = vdwg.mxu0
      %497 = vmatpush.bf16.msra.mxu0 0
      %498 = vmatpush.bf16.msra.mxu0 0
      %499 = vmatpush.bf16.msra.mxu0 0
      %500 = vmatpush.bf16.msra.mxu0 0
      %501 = vmatpush.bf16.msra.mxu0 0
      %502 = vmatpush.bf16.msra.mxu0 0
      %503 = vmatpush.bf16.msra.mxu0 0
      %504 = vmatpush.bf16.msra.mxu0 %v318
      %505 = vmatmul.bf16.gmra.mxu0 %v275
      %v506 = vpop.f32.mrf.mxu0
      %v507 = vadd.f32 0.0, %v506
      %v508 = vpop.f32.mrf.mxu0
      %509 = vdwg.mxu0
      %510 = vmatpush.bf16.msra.mxu0 0
      %511 = vmatpush.bf16.msra.mxu0 0
      %512 = vmatpush.bf16.msra.mxu0 0
      %513 = vmatpush.bf16.msra.mxu0 0
      %514 = vmatpush.bf16.msra.mxu0 0
      %515 = vmatpush.bf16.msra.mxu0 0
      %516 = vmatpush.bf16.msra.mxu0 0
      %517 = vmatpush.bf16.msra.mxu0 %v321
      %518 = vmatmul.bf16.gmra.mxu0 %v275
      %v519 = vpop.f32.mrf.mxu0
      %v520 = vadd.f32 0.0, %v519
      %v521 = vpop.f32.mrf.mxu0
      %522 = vdwg.mxu0
      %523 = vmatpush.bf16.msra.mxu0 0
      %524 = vmatpush.bf16.msra.mxu0 0
      %525 = vmatpush.bf16.msra.mxu0 0
      %526 = vmatpush.bf16.msra.mxu0 0
      %527 = vmatpush.bf16.msra.mxu0 0
      %528 = vmatpush.bf16.msra.mxu0 0
      %529 = vmatpush.bf16.msra.mxu0 0
      %530 = vmatpush.bf16.msra.mxu0 %v324
      %531 = vmatmul.bf16.gmra.mxu0 %v275
      %v532 = vpop.f32.mrf.mxu0
      %v533 = vadd.f32 0.0, %v532
      %v534 = vpop.f32.mrf.mxu0
      %535 = vdwg.mxu0
      %536 = vmatpush.bf16.msra.mxu0 0
      %537 = vmatpush.bf16.msra.mxu0 0
      %538 = vmatpush.bf16.msra.mxu0 0
      %539 = vmatpush.bf16.msra.mxu0 0
      %540 = vmatpush.bf16.msra.mxu0 0
      %541 = vmatpush.bf16.msra.mxu0 0
      %542 = vmatpush.bf16.msra.mxu0 0
      %543 = vmatpush.bf16.msra.mxu0 %v327
      %544 = vmatmul.bf16.gmra.mxu0 %v275
      %v545 = vpop.f32.mrf.mxu0
      %v546 = vadd.f32 0.0, %v545
      %v547 = vpop.f32.mrf.mxu0
      %548 = vdwg.mxu0
      %549 = vmatpush.bf16.msra.mxu0 0
      %550 = vmatpush.bf16.msra.mxu0 0
      %551 = vmatpush.bf16.msra.mxu0 0
      %552 = vmatpush.bf16.msra.mxu0 0
      %553 = vmatpush.bf16.msra.mxu0 0
      %554 = vmatpush.bf16.msra.mxu0 0
      %555 = vmatpush.bf16.msra.mxu0 0
      %556 = vmatpush.bf16.msra.mxu0 %v330
      %557 = vmatmul.bf16.gmra.mxu0 %v275
      %v558 = vpop.f32.mrf.mxu0
      %v559 = vadd.f32 0.0, %v558
      %v560 = vpop.f32.mrf.mxu0
      %561 = vdwg.mxu0
      %562 = vmatpush.bf16.msra.mxu0 0
      %563 = vmatpush.bf16.msra.mxu0 0
      %564 = vmatpush.bf16.msra.mxu0 0
      %565 = vmatpush.bf16.msra.mxu0 0
      %566 = vmatpush.bf16.msra.mxu0 0
      %567 = vmatpush.bf16.msra.mxu0 0
      %568 = vmatpush.bf16.msra.mxu0 0
      %569 = vmatpush.bf16.msra.mxu0 %v333
      %570 = vmatmul.bf16.gmra.mxu0 %v275
      %v571 = vpop.f32.mrf.mxu0
      %v572 = vadd.f32 0.0, %v571
      %v573 = vpop.f32.mrf.mxu0
      %574 = vdwg.mxu0
      %575 = vmatpush.bf16.msra.mxu0 0
      %576 = vmatpush.bf16.msra.mxu0 0
      %577 = vmatpush.bf16.msra.mxu0 0
      %578 = vmatpush.bf16.msra.mxu0 0
      %579 = vmatpush.bf16.msra.mxu0 0
      %580 = vmatpush.bf16.msra.mxu0 0
      %581 = vmatpush.bf16.msra.mxu0 0
      %582 = vmatpush.bf16.msra.mxu0 %v336
      %583 = vmatmul.bf16.gmra.mxu0 %v275
      %v584 = vpop.f32.mrf.mxu0
      %v585 = vadd.f32 0.0, %v584
      %v586 = vpop.f32.mrf.mxu0
      %587 = vdwg.mxu0
      %588 = vmatpush.bf16.msra.mxu0 0
      %589 = vmatpush.bf16.msra.mxu0 0
      %590 = vmatpush.bf16.msra.mxu0 0
      %591 = vmatpush.bf16.msra.mxu0 0
      %592 = vmatpush.bf16.msra.mxu0 0
      %593 = vmatpush.bf16.msra.mxu0 0
      %594 = vmatpush.bf16.msra.mxu0 0
      %595 = vmatpush.bf16.msra.mxu0 %v339
      %596 = vmatmul.bf16.gmra.mxu0 %v275
      %v597 = vpop.f32.mrf.mxu0
      %v598 = vadd.f32 0.0, %v597
      %v599 = vpop.f32.mrf.mxu0
      %600 = vdwg.mxu0
      %s601 = scalar_lea.vmem %s165, 160
      %v602 = vld [vmem:[%s601] sm:$0xff]
      %v603 = vld [vmem:[%s601 + $0x8] sm:$0xff]
      %v604 = vld [vmem:[%s601 + $0x10] sm:$0xff]
      %v605 = vld [vmem:[%s601 + $0x18] sm:$0xff]
      %v606 = vld [vmem:[%s601 + $0x20] sm:$0xff]
      %v607 = vld [vmem:[%s601 + $0x28] sm:$0xff]
      %v608 = vld [vmem:[%s601 + $0x30] sm:$0xff]
      %v609 = vld [vmem:[%s601 + $0x38] sm:$0xff]
      %v610 = vld [vmem:[%s601 + $0x40] sm:$0xff]
      %v611 = vld [vmem:[%s601 + $0x48] sm:$0xff]
      %v612 = vld [vmem:[%s601 + $0x50] sm:$0x11]
      %v613 = vld [vmem:[%s601 + $0x58] sm:$0x11]
      %v614 = vld [vmem:[%s601 + $0x60] sm:$0x11]
      %v615 = vld [vmem:[%s601 + $0x68] sm:$0x11]
      %v616 = vld [vmem:[%s601 + $0x70] sm:$0x11]
      %v617 = vld [vmem:[%s601 + $0x78] sm:$0x11]
      %v618 = vld [vmem:[%s601 + $0x80] sm:$0x11]
      %v619 = vld [vmem:[%s601 + $0x88] sm:$0x11]
      %v620 = vld [vmem:[%s601 + $0x90] sm:$0x11]
      %v621 = vld [vmem:[%s601 + $0x98] sm:$0x11]
      %v642 = vunpack.c.l.b16 %v602
      %v643 = vunpack.c.h.b16 %v602
      %v644 = vunpack.c.l.b16 %v603
      %v645 = vunpack.c.h.b16 %v603
      %v646 = vunpack.c.l.b16 %v604
      %v647 = vunpack.c.h.b16 %v604
      %v648 = vunpack.c.l.b16 %v605
      %v649 = vunpack.c.h.b16 %v605
      %v650 = vunpack.c.l.b16 %v606
      %v651 = vunpack.c.h.b16 %v606
      %v652 = vunpack.c.l.b16 %v607
      %v653 = vunpack.c.h.b16 %v607
      %v654 = vunpack.c.l.b16 %v608
      %v655 = vunpack.c.h.b16 %v608
      %v656 = vunpack.c.l.b16 %v609
      %v657 = vunpack.c.h.b16 %v609
      %v658 = vunpack.c.l.b16 %v610
      %v659 = vunpack.c.h.b16 %v610
      %v660 = vunpack.c.l.b16 %v611
      %v661 = vunpack.c.h.b16 %v611
      %v662 = vunpack.c.l.b16 %v612
      %v663 = vunpack.c.h.b16 %v612
      %v664 = vunpack.c.l.b16 %v613
      %v665 = vunpack.c.h.b16 %v613
      %v666 = vunpack.c.l.b16 %v614
      %v667 = vunpack.c.h.b16 %v614
      %v668 = vunpack.c.l.b16 %v615
      %v669 = vunpack.c.h.b16 %v615
      %v670 = vunpack.c.l.b16 %v616
      %v671 = vunpack.c.h.b16 %v616
      %v672 = vunpack.c.l.b16 %v617
      %v673 = vunpack.c.h.b16 %v617
      %v674 = vunpack.c.l.b16 %v618
      %v675 = vunpack.c.h.b16 %v618
      %v676 = vunpack.c.l.b16 %v619
      %v677 = vunpack.c.h.b16 %v619
      %v678 = vunpack.c.l.b16 %v620
      %v679 = vunpack.c.h.b16 %v620
      %v680 = vunpack.c.l.b16 %v621
      %v681 = vunpack.c.h.b16 %v621
      %v682 = vpack.c.b16 %v662, %v642
      %v683 = vpack.c.b16 %v663, %v643
      %v684 = vpack.c.b16 %v664, %v644
      %v685 = vpack.c.b16 %v665, %v645
      %v686 = vpack.c.b16 %v666, %v646
      %v687 = vpack.c.b16 %v667, %v647
      %v688 = vpack.c.b16 %v668, %v648
      %v689 = vpack.c.b16 %v669, %v649
      %v690 = vpack.c.b16 %v670, %v650
      %v691 = vpack.c.b16 %v671, %v651
      %v692 = vpack.c.b16 %v672, %v652
      %v693 = vpack.c.b16 %v673, %v653
      %v694 = vpack.c.b16 %v674, %v654
      %v695 = vpack.c.b16 %v675, %v655
      %v696 = vpack.c.b16 %v676, %v656
      %v697 = vpack.c.b16 %v677, %v657
      %v698 = vpack.c.b16 %v678, %v658
      %v699 = vpack.c.b16 %v679, %v659
      %v700 = vpack.c.b16 %v680, %v660
      %v701 = vpack.c.b16 %v681, %v661
      %v703 = vand.u32 %v682, %v280
      %v706 = vand.u32 %v683, %v280
      %v709 = vand.u32 %v684, %v280
      %v712 = vand.u32 %v685, %v280
      %v715 = vand.u32 %v686, %v280
      %v718 = vand.u32 %v687, %v280
      %v721 = vand.u32 %v688, %v280
      %v724 = vand.u32 %v689, %v280
      %v727 = vand.u32 %v690, %v280
      %v730 = vand.u32 %v691, %v280
      %v733 = vand.u32 %v692, %v280
      %v736 = vand.u32 %v693, %v280
      %v739 = vand.u32 %v694, %v280
      %v742 = vand.u32 %v695, %v280
      %v745 = vand.u32 %v696, %v280
      %v748 = vand.u32 %v697, %v280
      %v751 = vand.u32 %v698, %v280
      %v754 = vand.u32 %v699, %v280
      %v757 = vand.u32 %v700, %v280
      %v760 = vand.u32 %v701, %v280
      %762 = vmatpush.bf16.msra.mxu0 0
      %763 = vmatpush.bf16.msra.mxu0 0
      %764 = vmatpush.bf16.msra.mxu0 0
      %765 = vmatpush.bf16.msra.mxu0 0
      %766 = vmatpush.bf16.msra.mxu0 0
      %767 = vmatpush.bf16.msra.mxu0 0
      %768 = vmatpush.bf16.msra.mxu0 0
      %769 = vmatpush.bf16.msra.mxu0 %v703
      %770 = vmatmul.bf16.gmra.mxu0 %v275
      %v771 = vpop.f32.mrf.mxu0
      %v772 = vadd.f32 0.0, %v771
      %v773 = vpop.f32.mrf.mxu0
      %774 = vdwg.mxu0
      %775 = vmatpush.bf16.msra.mxu0 0
      %776 = vmatpush.bf16.msra.mxu0 0
      %777 = vmatpush.bf16.msra.mxu0 0
      %778 = vmatpush.bf16.msra.mxu0 0
      %779 = vmatpush.bf16.msra.mxu0 0
      %780 = vmatpush.bf16.msra.mxu0 0
      %781 = vmatpush.bf16.msra.mxu0 0
      %782 = vmatpush.bf16.msra.mxu0 %v706
      %783 = vmatmul.bf16.gmra.mxu0 %v275
      %v784 = vpop.f32.mrf.mxu0
      %v785 = vadd.f32 0.0, %v784
      %v786 = vpop.f32.mrf.mxu0
      %787 = vdwg.mxu0
      %788 = vmatpush.bf16.msra.mxu0 0
      %789 = vmatpush.bf16.msra.mxu0 0
      %790 = vmatpush.bf16.msra.mxu0 0
      %791 = vmatpush.bf16.msra.mxu0 0
      %792 = vmatpush.bf16.msra.mxu0 0
      %793 = vmatpush.bf16.msra.mxu0 0
      %794 = vmatpush.bf16.msra.mxu0 0
      %795 = vmatpush.bf16.msra.mxu0 %v709
      %796 = vmatmul.bf16.gmra.mxu0 %v275
      %v797 = vpop.f32.mrf.mxu0
      %v798 = vadd.f32 0.0, %v797
      %v799 = vpop.f32.mrf.mxu0
      %800 = vdwg.mxu0
      %801 = vmatpush.bf16.msra.mxu0 0
      %802 = vmatpush.bf16.msra.mxu0 0
      %803 = vmatpush.bf16.msra.mxu0 0
      %804 = vmatpush.bf16.msra.mxu0 0
      %805 = vmatpush.bf16.msra.mxu0 0
      %806 = vmatpush.bf16.msra.mxu0 0
      %807 = vmatpush.bf16.msra.mxu0 0
      %808 = vmatpush.bf16.msra.mxu0 %v712
      %809 = vmatmul.bf16.gmra.mxu0 %v275
      %v810 = vpop.f32.mrf.mxu0
      %v811 = vadd.f32 0.0, %v810
      %v812 = vpop.f32.mrf.mxu0
      %813 = vdwg.mxu0
      %814 = vmatpush.bf16.msra.mxu0 0
      %815 = vmatpush.bf16.msra.mxu0 0
      %816 = vmatpush.bf16.msra.mxu0 0
      %817 = vmatpush.bf16.msra.mxu0 0
      %818 = vmatpush.bf16.msra.mxu0 0
      %819 = vmatpush.bf16.msra.mxu0 0
      %820 = vmatpush.bf16.msra.mxu0 0
      %821 = vmatpush.bf16.msra.mxu0 %v715
      %822 = vmatmul.bf16.gmra.mxu0 %v275
      %v823 = vpop.f32.mrf.mxu0
      %v824 = vadd.f32 0.0, %v823
      %v825 = vpop.f32.mrf.mxu0
      %826 = vdwg.mxu0
      %827 = vmatpush.bf16.msra.mxu0 0
      %828 = vmatpush.bf16.msra.mxu0 0
      %829 = vmatpush.bf16.msra.mxu0 0
      %830 = vmatpush.bf16.msra.mxu0 0
      %831 = vmatpush.bf16.msra.mxu0 0
      %832 = vmatpush.bf16.msra.mxu0 0
      %833 = vmatpush.bf16.msra.mxu0 0
      %834 = vmatpush.bf16.msra.mxu0 %v718
      %835 = vmatmul.bf16.gmra.mxu0 %v275
      %v836 = vpop.f32.mrf.mxu0
      %v837 = vadd.f32 0.0, %v836
      %v838 = vpop.f32.mrf.mxu0
      %839 = vdwg.mxu0
      %840 = vmatpush.bf16.msra.mxu0 0
      %841 = vmatpush.bf16.msra.mxu0 0
      %842 = vmatpush.bf16.msra.mxu0 0
      %843 = vmatpush.bf16.msra.mxu0 0
      %844 = vmatpush.bf16.msra.mxu0 0
      %845 = vmatpush.bf16.msra.mxu0 0
      %846 = vmatpush.bf16.msra.mxu0 0
      %847 = vmatpush.bf16.msra.mxu0 %v721
      %848 = vmatmul.bf16.gmra.mxu0 %v275
      %v849 = vpop.f32.mrf.mxu0
      %v850 = vadd.f32 0.0, %v849
      %v851 = vpop.f32.mrf.mxu0
      %852 = vdwg.mxu0
      %853 = vmatpush.bf16.msra.mxu0 0
      %854 = vmatpush.bf16.msra.mxu0 0
      %855 = vmatpush.bf16.msra.mxu0 0
      %856 = vmatpush.bf16.msra.mxu0 0
      %857 = vmatpush.bf16.msra.mxu0 0
      %858 = vmatpush.bf16.msra.mxu0 0
      %859 = vmatpush.bf16.msra.mxu0 0
      %860 = vmatpush.bf16.msra.mxu0 %v724
      %861 = vmatmul.bf16.gmra.mxu0 %v275
      %v862 = vpop.f32.mrf.mxu0
      %v863 = vadd.f32 0.0, %v862
      %v864 = vpop.f32.mrf.mxu0
      %865 = vdwg.mxu0
      %866 = vmatpush.bf16.msra.mxu0 0
      %867 = vmatpush.bf16.msra.mxu0 0
      %868 = vmatpush.bf16.msra.mxu0 0
      %869 = vmatpush.bf16.msra.mxu0 0
      %870 = vmatpush.bf16.msra.mxu0 0
      %871 = vmatpush.bf16.msra.mxu0 0
      %872 = vmatpush.bf16.msra.mxu0 0
      %873 = vmatpush.bf16.msra.mxu0 %v727
      %874 = vmatmul.bf16.gmra.mxu0 %v275
      %v875 = vpop.f32.mrf.mxu0
      %v876 = vadd.f32 0.0, %v875
      %v877 = vpop.f32.mrf.mxu0
      %878 = vdwg.mxu0
      %879 = vmatpush.bf16.msra.mxu0 0
      %880 = vmatpush.bf16.msra.mxu0 0
      %881 = vmatpush.bf16.msra.mxu0 0
      %882 = vmatpush.bf16.msra.mxu0 0
      %883 = vmatpush.bf16.msra.mxu0 0
      %884 = vmatpush.bf16.msra.mxu0 0
      %885 = vmatpush.bf16.msra.mxu0 0
      %886 = vmatpush.bf16.msra.mxu0 %v730
      %887 = vmatmul.bf16.gmra.mxu0 %v275
      %v888 = vpop.f32.mrf.mxu0
      %v889 = vadd.f32 0.0, %v888
      %v890 = vpop.f32.mrf.mxu0
      %891 = vdwg.mxu0
      %892 = vmatpush.bf16.msra.mxu0 0
      %893 = vmatpush.bf16.msra.mxu0 0
      %894 = vmatpush.bf16.msra.mxu0 0
      %895 = vmatpush.bf16.msra.mxu0 0
      %896 = vmatpush.bf16.msra.mxu0 0
      %897 = vmatpush.bf16.msra.mxu0 0
      %898 = vmatpush.bf16.msra.mxu0 0
      %899 = vmatpush.bf16.msra.mxu0 %v733
      %900 = vmatmul.bf16.gmra.mxu0 %v275
      %v901 = vpop.f32.mrf.mxu0
      %v902 = vadd.f32 0.0, %v901
      %v903 = vpop.f32.mrf.mxu0
      %904 = vdwg.mxu0
      %905 = vmatpush.bf16.msra.mxu0 0
      %906 = vmatpush.bf16.msra.mxu0 0
      %907 = vmatpush.bf16.msra.mxu0 0
      %908 = vmatpush.bf16.msra.mxu0 0
      %909 = vmatpush.bf16.msra.mxu0 0
      %910 = vmatpush.bf16.msra.mxu0 0
      %911 = vmatpush.bf16.msra.mxu0 0
      %912 = vmatpush.bf16.msra.mxu0 %v736
      %913 = vmatmul.bf16.gmra.mxu0 %v275
      %v914 = vpop.f32.mrf.mxu0
      %v915 = vadd.f32 0.0, %v914
      %v916 = vpop.f32.mrf.mxu0
      %917 = vdwg.mxu0
      %918 = vmatpush.bf16.msra.mxu0 0
      %919 = vmatpush.bf16.msra.mxu0 0
      %920 = vmatpush.bf16.msra.mxu0 0
      %921 = vmatpush.bf16.msra.mxu0 0
      %922 = vmatpush.bf16.msra.mxu0 0
      %923 = vmatpush.bf16.msra.mxu0 0
      %924 = vmatpush.bf16.msra.mxu0 0
      %925 = vmatpush.bf16.msra.mxu0 %v739
      %926 = vmatmul.bf16.gmra.mxu0 %v275
      %v927 = vpop.f32.mrf.mxu0
      %v928 = vadd.f32 0.0, %v927
      %v929 = vpop.f32.mrf.mxu0
      %930 = vdwg.mxu0
      %931 = vmatpush.bf16.msra.mxu0 0
      %932 = vmatpush.bf16.msra.mxu0 0
      %933 = vmatpush.bf16.msra.mxu0 0
      %934 = vmatpush.bf16.msra.mxu0 0
      %935 = vmatpush.bf16.msra.mxu0 0
      %936 = vmatpush.bf16.msra.mxu0 0
      %937 = vmatpush.bf16.msra.mxu0 0
      %938 = vmatpush.bf16.msra.mxu0 %v742
      %939 = vmatmul.bf16.gmra.mxu0 %v275
      %v940 = vpop.f32.mrf.mxu0
      %v941 = vadd.f32 0.0, %v940
      %v942 = vpop.f32.mrf.mxu0
      %943 = vdwg.mxu0
      %944 = vmatpush.bf16.msra.mxu0 0
      %945 = vmatpush.bf16.msra.mxu0 0
      %946 = vmatpush.bf16.msra.mxu0 0
      %947 = vmatpush.bf16.msra.mxu0 0
      %948 = vmatpush.bf16.msra.mxu0 0
      %949 = vmatpush.bf16.msra.mxu0 0
      %950 = vmatpush.bf16.msra.mxu0 0
      %951 = vmatpush.bf16.msra.mxu0 %v745
      %952 = vmatmul.bf16.gmra.mxu0 %v275
      %v953 = vpop.f32.mrf.mxu0
      %v954 = vadd.f32 0.0, %v953
      %v955 = vpop.f32.mrf.mxu0
      %956 = vdwg.mxu0
      %957 = vmatpush.bf16.msra.mxu0 0
      %958 = vmatpush.bf16.msra.mxu0 0
      %959 = vmatpush.bf16.msra.mxu0 0
      %960 = vmatpush.bf16.msra.mxu0 0
      %961 = vmatpush.bf16.msra.mxu0 0
      %962 = vmatpush.bf16.msra.mxu0 0
      %963 = vmatpush.bf16.msra.mxu0 0
      %964 = vmatpush.bf16.msra.mxu0 %v748
      %965 = vmatmul.bf16.gmra.mxu0 %v275
      %v966 = vpop.f32.mrf.mxu0
      %v967 = vadd.f32 0.0, %v966
      %v968 = vpop.f32.mrf.mxu0
      %969 = vdwg.mxu0
      %970 = vmatpush.bf16.msra.mxu0 0
      %971 = vmatpush.bf16.msra.mxu0 0
      %972 = vmatpush.bf16.msra.mxu0 0
      %973 = vmatpush.bf16.msra.mxu0 0
      %974 = vmatpush.bf16.msra.mxu0 0
      %975 = vmatpush.bf16.msra.mxu0 0
      %976 = vmatpush.bf16.msra.mxu0 0
      %977 = vmatpush.bf16.msra.mxu0 %v751
      %978 = vmatmul.bf16.gmra.mxu0 %v275
      %v979 = vpop.f32.mrf.mxu0
      %v980 = vadd.f32 0.0, %v979
      %v981 = vpop.f32.mrf.mxu0
      %982 = vdwg.mxu0
      %983 = vmatpush.bf16.msra.mxu0 0
      %984 = vmatpush.bf16.msra.mxu0 0
      %985 = vmatpush.bf16.msra.mxu0 0
      %986 = vmatpush.bf16.msra.mxu0 0
      %987 = vmatpush.bf16.msra.mxu0 0
      %988 = vmatpush.bf16.msra.mxu0 0
      %989 = vmatpush.bf16.msra.mxu0 0
      %990 = vmatpush.bf16.msra.mxu0 %v754
      %991 = vmatmul.bf16.gmra.mxu0 %v275
      %v992 = vpop.f32.mrf.mxu0
      %v993 = vadd.f32 0.0, %v992
      %v994 = vpop.f32.mrf.mxu0
      %995 = vdwg.mxu0
      %996 = vmatpush.bf16.msra.mxu0 0
      %997 = vmatpush.bf16.msra.mxu0 0
      %998 = vmatpush.bf16.msra.mxu0 0
      %999 = vmatpush.bf16.msra.mxu0 0
      %1000 = vmatpush.bf16.msra.mxu0 0
      %1001 = vmatpush.bf16.msra.mxu0 0
      %1002 = vmatpush.bf16.msra.mxu0 0
      %1003 = vmatpush.bf16.msra.mxu0 %v757
      %1004 = vmatmul.bf16.gmra.mxu0 %v275
      %v1005 = vpop.f32.mrf.mxu0
      %v1006 = vadd.f32 0.0, %v1005
      %v1007 = vpop.f32.mrf.mxu0
      %1008 = vdwg.mxu0
      %1009 = vmatpush.bf16.msra.mxu0 0
      %1010 = vmatpush.bf16.msra.mxu0 0
      %1011 = vmatpush.bf16.msra.mxu0 0
      %1012 = vmatpush.bf16.msra.mxu0 0
      %1013 = vmatpush.bf16.msra.mxu0 0
      %1014 = vmatpush.bf16.msra.mxu0 0
      %1015 = vmatpush.bf16.msra.mxu0 0
      %1016 = vmatpush.bf16.msra.mxu0 %v760
      %1017 = vmatmul.bf16.gmra.mxu0 %v275
      %v1018 = vpop.f32.mrf.mxu0
      %v1019 = vadd.f32 0.0, %v1018
      %v1020 = vpop.f32.mrf.mxu0
      %1021 = vdwg.mxu0
      %v1022 = vmax.f32 %v351, %v772
      %v1023 = vmax.f32 %v364, %v785
      %v1024 = vmax.f32 %v377, %v798
      %v1025 = vmax.f32 %v390, %v811
      %v1026 = vmax.f32 %v403, %v824
      %v1027 = vmax.f32 %v416, %v837
      %v1028 = vmax.f32 %v429, %v850
      %v1029 = vmax.f32 %v442, %v863
      %v1030 = vmax.f32 %v455, %v876
      %v1031 = vmax.f32 %v468, %v889
      %v1032 = vmax.f32 %v481, %v902
      %v1033 = vmax.f32 %v494, %v915
      %v1034 = vmax.f32 %v507, %v928
      %v1035 = vmax.f32 %v520, %v941
      %v1036 = vmax.f32 %v533, %v954
      %v1037 = vmax.f32 %v546, %v967
      %v1038 = vmax.f32 %v559, %v980
      %v1039 = vmax.f32 %v572, %v993
      %v1040 = vmax.f32 %v585, %v1006
      %v1041 = vmax.f32 %v598, %v1019
      %s1042 = scalar_lea.vmem %s165, 320
      %v1043 = vld [vmem:[%s1042] sm:$0xff]
      %v1044 = vld [vmem:[%s1042 + $0x8] sm:$0xff]
      %v1045 = vld [vmem:[%s1042 + $0x10] sm:$0xff]
      %v1046 = vld [vmem:[%s1042 + $0x18] sm:$0xff]
      %v1047 = vld [vmem:[%s1042 + $0x20] sm:$0xff]
      %v1048 = vld [vmem:[%s1042 + $0x28] sm:$0xff]
      %v1049 = vld [vmem:[%s1042 + $0x30] sm:$0xff]
      %v1050 = vld [vmem:[%s1042 + $0x38] sm:$0xff]
      %v1051 = vld [vmem:[%s1042 + $0x40] sm:$0xff]
      %v1052 = vld [vmem:[%s1042 + $0x48] sm:$0xff]
      %v1053 = vld [vmem:[%s1042 + $0x50] sm:$0x11]
      %v1054 = vld [vmem:[%s1042 + $0x58] sm:$0x11]
      %v1055 = vld [vmem:[%s1042 + $0x60] sm:$0x11]
      %v1056 = vld [vmem:[%s1042 + $0x68] sm:$0x11]
      %v1057 = vld [vmem:[%s1042 + $0x70] sm:$0x11]
      %v1058 = vld [vmem:[%s1042 + $0x78] sm:$0x11]
      %v1059 = vld [vmem:[%s1042 + $0x80] sm:$0x11]
      %v1060 = vld [vmem:[%s1042 + $0x88] sm:$0x11]
      %v1061 = vld [vmem:[%s1042 + $0x90] sm:$0x11]
      %v1062 = vld [vmem:[%s1042 + $0x98] sm:$0x11]
      %v1083 = vunpack.c.l.b16 %v1043
      %v1084 = vunpack.c.h.b16 %v1043
      %v1085 = vunpack.c.l.b16 %v1044
      %v1086 = vunpack.c.h.b16 %v1044
      %v1087 = vunpack.c.l.b16 %v1045
      %v1088 = vunpack.c.h.b16 %v1045
      %v1089 = vunpack.c.l.b16 %v1046
      %v1090 = vunpack.c.h.b16 %v1046
      %v1091 = vunpack.c.l.b16 %v1047
      %v1092 = vunpack.c.h.b16 %v1047
      %v1093 = vunpack.c.l.b16 %v1048
      %v1094 = vunpack.c.h.b16 %v1048
      %v1095 = vunpack.c.l.b16 %v1049
      %v1096 = vunpack.c.h.b16 %v1049
      %v1097 = vunpack.c.l.b16 %v1050
      %v1098 = vunpack.c.h.b16 %v1050
      %v1099 = vunpack.c.l.b16 %v1051
      %v1100 = vunpack.c.h.b16 %v1051
      %v1101 = vunpack.c.l.b16 %v1052
      %v1102 = vunpack.c.h.b16 %v1052
      %v1103 = vunpack.c.l.b16 %v1053
      %v1104 = vunpack.c.h.b16 %v1053
      %v1105 = vunpack.c.l.b16 %v1054
      %v1106 = vunpack.c.h.b16 %v1054
      %v1107 = vunpack.c.l.b16 %v1055
      %v1108 = vunpack.c.h.b16 %v1055
      %v1109 = vunpack.c.l.b16 %v1056
      %v1110 = vunpack.c.h.b16 %v1056
      %v1111 = vunpack.c.l.b16 %v1057
      %v1112 = vunpack.c.h.b16 %v1057
      %v1113 = vunpack.c.l.b16 %v1058
      %v1114 = vunpack.c.h.b16 %v1058
      %v1115 = vunpack.c.l.b16 %v1059
      %v1116 = vunpack.c.h.b16 %v1059
      %v1117 = vunpack.c.l.b16 %v1060
      %v1118 = vunpack.c.h.b16 %v1060
      %v1119 = vunpack.c.l.b16 %v1061
      %v1120 = vunpack.c.h.b16 %v1061
      %v1121 = vunpack.c.l.b16 %v1062
      %v1122 = vunpack.c.h.b16 %v1062
      %v1123 = vpack.c.b16 %v1103, %v1083
      %v1124 = vpack.c.b16 %v1104, %v1084
      %v1125 = vpack.c.b16 %v1105, %v1085
      %v1126 = vpack.c.b16 %v1106, %v1086
      %v1127 = vpack.c.b16 %v1107, %v1087
      %v1128 = vpack.c.b16 %v1108, %v1088
      %v1129 = vpack.c.b16 %v1109, %v1089
      %v1130 = vpack.c.b16 %v1110, %v1090
      %v1131 = vpack.c.b16 %v1111, %v1091
      %v1132 = vpack.c.b16 %v1112, %v1092
      %v1133 = vpack.c.b16 %v1113, %v1093
      %v1134 = vpack.c.b16 %v1114, %v1094
      %v1135 = vpack.c.b16 %v1115, %v1095
      %v1136 = vpack.c.b16 %v1116, %v1096
      %v1137 = vpack.c.b16 %v1117, %v1097
      %v1138 = vpack.c.b16 %v1118, %v1098
      %v1139 = vpack.c.b16 %v1119, %v1099
      %v1140 = vpack.c.b16 %v1120, %v1100
      %v1141 = vpack.c.b16 %v1121, %v1101
      %v1142 = vpack.c.b16 %v1122, %v1102
      %v1144 = vand.u32 %v1123, %v280
      %v1147 = vand.u32 %v1124, %v280
      %v1150 = vand.u32 %v1125, %v280
      %v1153 = vand.u32 %v1126, %v280
      %v1156 = vand.u32 %v1127, %v280
      %v1159 = vand.u32 %v1128, %v280
      %v1162 = vand.u32 %v1129, %v280
      %v1165 = vand.u32 %v1130, %v280
      %v1168 = vand.u32 %v1131, %v280
      %v1171 = vand.u32 %v1132, %v280
      %v1174 = vand.u32 %v1133, %v280
      %v1177 = vand.u32 %v1134, %v280
      %v1180 = vand.u32 %v1135, %v280
      %v1183 = vand.u32 %v1136, %v280
      %v1186 = vand.u32 %v1137, %v280
      %v1189 = vand.u32 %v1138, %v280
      %v1192 = vand.u32 %v1139, %v280
      %v1195 = vand.u32 %v1140, %v280
      %v1198 = vand.u32 %v1141, %v280
      %v1201 = vand.u32 %v1142, %v280
      %1203 = vmatpush.bf16.msra.mxu0 0
      %1204 = vmatpush.bf16.msra.mxu0 0
      %1205 = vmatpush.bf16.msra.mxu0 0
      %1206 = vmatpush.bf16.msra.mxu0 0
      %1207 = vmatpush.bf16.msra.mxu0 0
      %1208 = vmatpush.bf16.msra.mxu0 0
      %1209 = vmatpush.bf16.msra.mxu0 0
      %1210 = vmatpush.bf16.msra.mxu0 %v1144
      %1211 = vmatmul.bf16.gmra.mxu0 %v275
      %v1212 = vpop.f32.mrf.mxu0
      %v1213 = vadd.f32 0.0, %v1212
      %v1214 = vpop.f32.mrf.mxu0
      %1215 = vdwg.mxu0
      %1216 = vmatpush.bf16.msra.mxu0 0
      %1217 = vmatpush.bf16.msra.mxu0 0
      %1218 = vmatpush.bf16.msra.mxu0 0
      %1219 = vmatpush.bf16.msra.mxu0 0
      %1220 = vmatpush.bf16.msra.mxu0 0
      %1221 = vmatpush.bf16.msra.mxu0 0
      %1222 = vmatpush.bf16.msra.mxu0 0
      %1223 = vmatpush.bf16.msra.mxu0 %v1147
      %1224 = vmatmul.bf16.gmra.mxu0 %v275
      %v1225 = vpop.f32.mrf.mxu0
      %v1226 = vadd.f32 0.0, %v1225
      %v1227 = vpop.f32.mrf.mxu0
      %1228 = vdwg.mxu0
      %1229 = vmatpush.bf16.msra.mxu0 0
      %1230 = vmatpush.bf16.msra.mxu0 0
      %1231 = vmatpush.bf16.msra.mxu0 0
      %1232 = vmatpush.bf16.msra.mxu0 0
      %1233 = vmatpush.bf16.msra.mxu0 0
      %1234 = vmatpush.bf16.msra.mxu0 0
      %1235 = vmatpush.bf16.msra.mxu0 0
      %1236 = vmatpush.bf16.msra.mxu0 %v1150
      %1237 = vmatmul.bf16.gmra.mxu0 %v275
      %v1238 = vpop.f32.mrf.mxu0
      %v1239 = vadd.f32 0.0, %v1238
      %v1240 = vpop.f32.mrf.mxu0
      %1241 = vdwg.mxu0
      %1242 = vmatpush.bf16.msra.mxu0 0
      %1243 = vmatpush.bf16.msra.mxu0 0
      %1244 = vmatpush.bf16.msra.mxu0 0
      %1245 = vmatpush.bf16.msra.mxu0 0
      %1246 = vmatpush.bf16.msra.mxu0 0
      %1247 = vmatpush.bf16.msra.mxu0 0
      %1248 = vmatpush.bf16.msra.mxu0 0
      %1249 = vmatpush.bf16.msra.mxu0 %v1153
      %1250 = vmatmul.bf16.gmra.mxu0 %v275
      %v1251 = vpop.f32.mrf.mxu0
      %v1252 = vadd.f32 0.0, %v1251
      %v1253 = vpop.f32.mrf.mxu0
      %1254 = vdwg.mxu0
      %1255 = vmatpush.bf16.msra.mxu0 0
      %1256 = vmatpush.bf16.msra.mxu0 0
      %1257 = vmatpush.bf16.msra.mxu0 0
      %1258 = vmatpush.bf16.msra.mxu0 0
      %1259 = vmatpush.bf16.msra.mxu0 0
      %1260 = vmatpush.bf16.msra.mxu0 0
      %1261 = vmatpush.bf16.msra.mxu0 0
      %1262 = vmatpush.bf16.msra.mxu0 %v1156
      %1263 = vmatmul.bf16.gmra.mxu0 %v275
      %v1264 = vpop.f32.mrf.mxu0
      %v1265 = vadd.f32 0.0, %v1264
      %v1266 = vpop.f32.mrf.mxu0
      %1267 = vdwg.mxu0
      %1268 = vmatpush.bf16.msra.mxu0 0
      %1269 = vmatpush.bf16.msra.mxu0 0
      %1270 = vmatpush.bf16.msra.mxu0 0
      %1271 = vmatpush.bf16.msra.mxu0 0
      %1272 = vmatpush.bf16.msra.mxu0 0
      %1273 = vmatpush.bf16.msra.mxu0 0
      %1274 = vmatpush.bf16.msra.mxu0 0
      %1275 = vmatpush.bf16.msra.mxu0 %v1159
      %1276 = vmatmul.bf16.gmra.mxu0 %v275
      %v1277 = vpop.f32.mrf.mxu0
      %v1278 = vadd.f32 0.0, %v1277
      %v1279 = vpop.f32.mrf.mxu0
      %1280 = vdwg.mxu0
      %1281 = vmatpush.bf16.msra.mxu0 0
      %1282 = vmatpush.bf16.msra.mxu0 0
      %1283 = vmatpush.bf16.msra.mxu0 0
      %1284 = vmatpush.bf16.msra.mxu0 0
      %1285 = vmatpush.bf16.msra.mxu0 0
      %1286 = vmatpush.bf16.msra.mxu0 0
      %1287 = vmatpush.bf16.msra.mxu0 0
      %1288 = vmatpush.bf16.msra.mxu0 %v1162
      %1289 = vmatmul.bf16.gmra.mxu0 %v275
      %v1290 = vpop.f32.mrf.mxu0
      %v1291 = vadd.f32 0.0, %v1290
      %v1292 = vpop.f32.mrf.mxu0
      %1293 = vdwg.mxu0
      %1294 = vmatpush.bf16.msra.mxu0 0
      %1295 = vmatpush.bf16.msra.mxu0 0
      %1296 = vmatpush.bf16.msra.mxu0 0
      %1297 = vmatpush.bf16.msra.mxu0 0
      %1298 = vmatpush.bf16.msra.mxu0 0
      %1299 = vmatpush.bf16.msra.mxu0 0
      %1300 = vmatpush.bf16.msra.mxu0 0
      %1301 = vmatpush.bf16.msra.mxu0 %v1165
      %1302 = vmatmul.bf16.gmra.mxu0 %v275
      %v1303 = vpop.f32.mrf.mxu0
      %v1304 = vadd.f32 0.0, %v1303
      %v1305 = vpop.f32.mrf.mxu0
      %1306 = vdwg.mxu0
      %1307 = vmatpush.bf16.msra.mxu0 0
      %1308 = vmatpush.bf16.msra.mxu0 0
      %1309 = vmatpush.bf16.msra.mxu0 0
      %1310 = vmatpush.bf16.msra.mxu0 0
      %1311 = vmatpush.bf16.msra.mxu0 0
      %1312 = vmatpush.bf16.msra.mxu0 0
      %1313 = vmatpush.bf16.msra.mxu0 0
      %1314 = vmatpush.bf16.msra.mxu0 %v1168
      %1315 = vmatmul.bf16.gmra.mxu0 %v275
      %v1316 = vpop.f32.mrf.mxu0
      %v1317 = vadd.f32 0.0, %v1316
      %v1318 = vpop.f32.mrf.mxu0
      %1319 = vdwg.mxu0
      %1320 = vmatpush.bf16.msra.mxu0 0
      %1321 = vmatpush.bf16.msra.mxu0 0
      %1322 = vmatpush.bf16.msra.mxu0 0
      %1323 = vmatpush.bf16.msra.mxu0 0
      %1324 = vmatpush.bf16.msra.mxu0 0
      %1325 = vmatpush.bf16.msra.mxu0 0
      %1326 = vmatpush.bf16.msra.mxu0 0
      %1327 = vmatpush.bf16.msra.mxu0 %v1171
      %1328 = vmatmul.bf16.gmra.mxu0 %v275
      %v1329 = vpop.f32.mrf.mxu0
      %v1330 = vadd.f32 0.0, %v1329
      %v1331 = vpop.f32.mrf.mxu0
      %1332 = vdwg.mxu0
      %1333 = vmatpush.bf16.msra.mxu0 0
      %1334 = vmatpush.bf16.msra.mxu0 0
      %1335 = vmatpush.bf16.msra.mxu0 0
      %1336 = vmatpush.bf16.msra.mxu0 0
      %1337 = vmatpush.bf16.msra.mxu0 0
      %1338 = vmatpush.bf16.msra.mxu0 0
      %1339 = vmatpush.bf16.msra.mxu0 0
      %1340 = vmatpush.bf16.msra.mxu0 %v1174
      %1341 = vmatmul.bf16.gmra.mxu0 %v275
      %v1342 = vpop.f32.mrf.mxu0
      %v1343 = vadd.f32 0.0, %v1342
      %v1344 = vpop.f32.mrf.mxu0
      %1345 = vdwg.mxu0
      %1346 = vmatpush.bf16.msra.mxu0 0
      %1347 = vmatpush.bf16.msra.mxu0 0
      %1348 = vmatpush.bf16.msra.mxu0 0
      %1349 = vmatpush.bf16.msra.mxu0 0
      %1350 = vmatpush.bf16.msra.mxu0 0
      %1351 = vmatpush.bf16.msra.mxu0 0
      %1352 = vmatpush.bf16.msra.mxu0 0
      %1353 = vmatpush.bf16.msra.mxu0 %v1177
      %1354 = vmatmul.bf16.gmra.mxu0 %v275
      %v1355 = vpop.f32.mrf.mxu0
      %v1356 = vadd.f32 0.0, %v1355
      %v1357 = vpop.f32.mrf.mxu0
      %1358 = vdwg.mxu0
      %1359 = vmatpush.bf16.msra.mxu0 0
      %1360 = vmatpush.bf16.msra.mxu0 0
      %1361 = vmatpush.bf16.msra.mxu0 0
      %1362 = vmatpush.bf16.msra.mxu0 0
      %1363 = vmatpush.bf16.msra.mxu0 0
      %1364 = vmatpush.bf16.msra.mxu0 0
      %1365 = vmatpush.bf16.msra.mxu0 0
      %1366 = vmatpush.bf16.msra.mxu0 %v1180
      %1367 = vmatmul.bf16.gmra.mxu0 %v275
      %v1368 = vpop.f32.mrf.mxu0
      %v1369 = vadd.f32 0.0, %v1368
      %v1370 = vpop.f32.mrf.mxu0
      %1371 = vdwg.mxu0
      %1372 = vmatpush.bf16.msra.mxu0 0
      %1373 = vmatpush.bf16.msra.mxu0 0
      %1374 = vmatpush.bf16.msra.mxu0 0
      %1375 = vmatpush.bf16.msra.mxu0 0
      %1376 = vmatpush.bf16.msra.mxu0 0
      %1377 = vmatpush.bf16.msra.mxu0 0
      %1378 = vmatpush.bf16.msra.mxu0 0
      %1379 = vmatpush.bf16.msra.mxu0 %v1183
      %1380 = vmatmul.bf16.gmra.mxu0 %v275
      %v1381 = vpop.f32.mrf.mxu0
      %v1382 = vadd.f32 0.0, %v1381
      %v1383 = vpop.f32.mrf.mxu0
      %1384 = vdwg.mxu0
      %1385 = vmatpush.bf16.msra.mxu0 0
      %1386 = vmatpush.bf16.msra.mxu0 0
      %1387 = vmatpush.bf16.msra.mxu0 0
      %1388 = vmatpush.bf16.msra.mxu0 0
      %1389 = vmatpush.bf16.msra.mxu0 0
      %1390 = vmatpush.bf16.msra.mxu0 0
      %1391 = vmatpush.bf16.msra.mxu0 0
      %1392 = vmatpush.bf16.msra.mxu0 %v1186
      %1393 = vmatmul.bf16.gmra.mxu0 %v275
      %v1394 = vpop.f32.mrf.mxu0
      %v1395 = vadd.f32 0.0, %v1394
      %v1396 = vpop.f32.mrf.mxu0
      %1397 = vdwg.mxu0
      %1398 = vmatpush.bf16.msra.mxu0 0
      %1399 = vmatpush.bf16.msra.mxu0 0
      %1400 = vmatpush.bf16.msra.mxu0 0
      %1401 = vmatpush.bf16.msra.mxu0 0
      %1402 = vmatpush.bf16.msra.mxu0 0
      %1403 = vmatpush.bf16.msra.mxu0 0
      %1404 = vmatpush.bf16.msra.mxu0 0
      %1405 = vmatpush.bf16.msra.mxu0 %v1189
      %1406 = vmatmul.bf16.gmra.mxu0 %v275
      %v1407 = vpop.f32.mrf.mxu0
      %v1408 = vadd.f32 0.0, %v1407
      %v1409 = vpop.f32.mrf.mxu0
      %1410 = vdwg.mxu0
      %1411 = vmatpush.bf16.msra.mxu0 0
      %1412 = vmatpush.bf16.msra.mxu0 0
      %1413 = vmatpush.bf16.msra.mxu0 0
      %1414 = vmatpush.bf16.msra.mxu0 0
      %1415 = vmatpush.bf16.msra.mxu0 0
      %1416 = vmatpush.bf16.msra.mxu0 0
      %1417 = vmatpush.bf16.msra.mxu0 0
      %1418 = vmatpush.bf16.msra.mxu0 %v1192
      %1419 = vmatmul.bf16.gmra.mxu0 %v275
      %v1420 = vpop.f32.mrf.mxu0
      %v1421 = vadd.f32 0.0, %v1420
      %v1422 = vpop.f32.mrf.mxu0
      %1423 = vdwg.mxu0
      %1424 = vmatpush.bf16.msra.mxu0 0
      %1425 = vmatpush.bf16.msra.mxu0 0
      %1426 = vmatpush.bf16.msra.mxu0 0
      %1427 = vmatpush.bf16.msra.mxu0 0
      %1428 = vmatpush.bf16.msra.mxu0 0
      %1429 = vmatpush.bf16.msra.mxu0 0
      %1430 = vmatpush.bf16.msra.mxu0 0
      %1431 = vmatpush.bf16.msra.mxu0 %v1195
      %1432 = vmatmul.bf16.gmra.mxu0 %v275
      %v1433 = vpop.f32.mrf.mxu0
      %v1434 = vadd.f32 0.0, %v1433
      %v1435 = vpop.f32.mrf.mxu0
      %1436 = vdwg.mxu0
      %1437 = vmatpush.bf16.msra.mxu0 0
      %1438 = vmatpush.bf16.msra.mxu0 0
      %1439 = vmatpush.bf16.msra.mxu0 0
      %1440 = vmatpush.bf16.msra.mxu0 0
      %1441 = vmatpush.bf16.msra.mxu0 0
      %1442 = vmatpush.bf16.msra.mxu0 0
      %1443 = vmatpush.bf16.msra.mxu0 0
      %1444 = vmatpush.bf16.msra.mxu0 %v1198
      %1445 = vmatmul.bf16.gmra.mxu0 %v275
      %v1446 = vpop.f32.mrf.mxu0
      %v1447 = vadd.f32 0.0, %v1446
      %v1448 = vpop.f32.mrf.mxu0
      %1449 = vdwg.mxu0
      %1450 = vmatpush.bf16.msra.mxu0 0
      %1451 = vmatpush.bf16.msra.mxu0 0
      %1452 = vmatpush.bf16.msra.mxu0 0
      %1453 = vmatpush.bf16.msra.mxu0 0
      %1454 = vmatpush.bf16.msra.mxu0 0
      %1455 = vmatpush.bf16.msra.mxu0 0
      %1456 = vmatpush.bf16.msra.mxu0 0
      %1457 = vmatpush.bf16.msra.mxu0 %v1201
      %1458 = vmatmul.bf16.gmra.mxu0 %v275
      %v1459 = vpop.f32.mrf.mxu0
      %v1460 = vadd.f32 0.0, %v1459
      %v1461 = vpop.f32.mrf.mxu0
      %1462 = vdwg.mxu0
      %v1463 = vmax.f32 %v1022, %v1213
      %v1464 = vmax.f32 %v1023, %v1226
      %v1465 = vmax.f32 %v1024, %v1239
      %v1466 = vmax.f32 %v1025, %v1252
      %v1467 = vmax.f32 %v1026, %v1265
      %v1468 = vmax.f32 %v1027, %v1278
      %v1469 = vmax.f32 %v1028, %v1291
      %v1470 = vmax.f32 %v1029, %v1304
      %v1471 = vmax.f32 %v1030, %v1317
      %v1472 = vmax.f32 %v1031, %v1330
      %v1473 = vmax.f32 %v1032, %v1343
      %v1474 = vmax.f32 %v1033, %v1356
      %v1475 = vmax.f32 %v1034, %v1369
      %v1476 = vmax.f32 %v1035, %v1382
      %v1477 = vmax.f32 %v1036, %v1395
      %v1478 = vmax.f32 %v1037, %v1408
      %v1479 = vmax.f32 %v1038, %v1421
      %v1480 = vmax.f32 %v1039, %v1434
      %v1481 = vmax.f32 %v1040, %v1447
      %v1482 = vmax.f32 %v1041, %v1460
      %s1483 = scalar_lea.vmem %s165, 480
      %v1484 = vld [vmem:[%s1483] sm:$0xff]
      %v1485 = vld [vmem:[%s1483 + $0x8] sm:$0xff]
      %v1486 = vld [vmem:[%s1483 + $0x10] sm:$0xff]
      %v1487 = vld [vmem:[%s1483 + $0x18] sm:$0xff]
      %v1488 = vld [vmem:[%s1483 + $0x20] sm:$0xff]
      %v1489 = vld [vmem:[%s1483 + $0x28] sm:$0xff]
      %v1490 = vld [vmem:[%s1483 + $0x30] sm:$0xff]
      %v1491 = vld [vmem:[%s1483 + $0x38] sm:$0xff]
      %v1492 = vld [vmem:[%s1483 + $0x40] sm:$0xff]
      %v1493 = vld [vmem:[%s1483 + $0x48] sm:$0xff]
      %v1494 = vld [vmem:[%s1483 + $0x50] sm:$0x11]
      %v1495 = vld [vmem:[%s1483 + $0x58] sm:$0x11]
      %v1496 = vld [vmem:[%s1483 + $0x60] sm:$0x11]
      %v1497 = vld [vmem:[%s1483 + $0x68] sm:$0x11]
      %v1498 = vld [vmem:[%s1483 + $0x70] sm:$0x11]
      %v1499 = vld [vmem:[%s1483 + $0x78] sm:$0x11]
      %v1500 = vld [vmem:[%s1483 + $0x80] sm:$0x11]
      %v1501 = vld [vmem:[%s1483 + $0x88] sm:$0x11]
      %v1502 = vld [vmem:[%s1483 + $0x90] sm:$0x11]
      %v1503 = vld [vmem:[%s1483 + $0x98] sm:$0x11]
      %v1524 = vunpack.c.l.b16 %v1484
      %v1525 = vunpack.c.h.b16 %v1484
      %v1526 = vunpack.c.l.b16 %v1485
      %v1527 = vunpack.c.h.b16 %v1485
      %v1528 = vunpack.c.l.b16 %v1486
      %v1529 = vunpack.c.h.b16 %v1486
      %v1530 = vunpack.c.l.b16 %v1487
      %v1531 = vunpack.c.h.b16 %v1487
      %v1532 = vunpack.c.l.b16 %v1488
      %v1533 = vunpack.c.h.b16 %v1488
      %v1534 = vunpack.c.l.b16 %v1489
      %v1535 = vunpack.c.h.b16 %v1489
      %v1536 = vunpack.c.l.b16 %v1490
      %v1537 = vunpack.c.h.b16 %v1490
      %v1538 = vunpack.c.l.b16 %v1491
      %v1539 = vunpack.c.h.b16 %v1491
      %v1540 = vunpack.c.l.b16 %v1492
      %v1541 = vunpack.c.h.b16 %v1492
      %v1542 = vunpack.c.l.b16 %v1493
      %v1543 = vunpack.c.h.b16 %v1493
      %v1544 = vunpack.c.l.b16 %v1494
      %v1545 = vunpack.c.h.b16 %v1494
      %v1546 = vunpack.c.l.b16 %v1495
      %v1547 = vunpack.c.h.b16 %v1495
      %v1548 = vunpack.c.l.b16 %v1496
      %v1549 = vunpack.c.h.b16 %v1496
      %v1550 = vunpack.c.l.b16 %v1497
      %v1551 = vunpack.c.h.b16 %v1497
      %v1552 = vunpack.c.l.b16 %v1498
      %v1553 = vunpack.c.h.b16 %v1498
      %v1554 = vunpack.c.l.b16 %v1499
      %v1555 = vunpack.c.h.b16 %v1499
      %v1556 = vunpack.c.l.b16 %v1500
      %v1557 = vunpack.c.h.b16 %v1500
      %v1558 = vunpack.c.l.b16 %v1501
      %v1559 = vunpack.c.h.b16 %v1501
      %v1560 = vunpack.c.l.b16 %v1502
      %v1561 = vunpack.c.h.b16 %v1502
      %v1562 = vunpack.c.l.b16 %v1503
      %v1563 = vunpack.c.h.b16 %v1503
      %v1564 = vpack.c.b16 %v1544, %v1524
      %v1565 = vpack.c.b16 %v1545, %v1525
      %v1566 = vpack.c.b16 %v1546, %v1526
      %v1567 = vpack.c.b16 %v1547, %v1527
      %v1568 = vpack.c.b16 %v1548, %v1528
      %v1569 = vpack.c.b16 %v1549, %v1529
      %v1570 = vpack.c.b16 %v1550, %v1530
      %v1571 = vpack.c.b16 %v1551, %v1531
      %v1572 = vpack.c.b16 %v1552, %v1532
      %v1573 = vpack.c.b16 %v1553, %v1533
      %v1574 = vpack.c.b16 %v1554, %v1534
      %v1575 = vpack.c.b16 %v1555, %v1535
      %v1576 = vpack.c.b16 %v1556, %v1536
      %v1577 = vpack.c.b16 %v1557, %v1537
      %v1578 = vpack.c.b16 %v1558, %v1538
      %v1579 = vpack.c.b16 %v1559, %v1539
      %v1580 = vpack.c.b16 %v1560, %v1540
      %v1581 = vpack.c.b16 %v1561, %v1541
      %v1582 = vpack.c.b16 %v1562, %v1542
      %v1583 = vpack.c.b16 %v1563, %v1543
      %v1585 = vand.u32 %v1564, %v280
      %v1588 = vand.u32 %v1565, %v280
      %v1591 = vand.u32 %v1566, %v280
      %v1594 = vand.u32 %v1567, %v280
      %v1597 = vand.u32 %v1568, %v280
      %v1600 = vand.u32 %v1569, %v280
      %v1603 = vand.u32 %v1570, %v280
      %v1606 = vand.u32 %v1571, %v280
      %v1609 = vand.u32 %v1572, %v280
      %v1612 = vand.u32 %v1573, %v280
      %v1615 = vand.u32 %v1574, %v280
      %v1618 = vand.u32 %v1575, %v280
      %v1621 = vand.u32 %v1576, %v280
      %v1624 = vand.u32 %v1577, %v280
      %v1627 = vand.u32 %v1578, %v280
      %v1630 = vand.u32 %v1579, %v280
      %v1633 = vand.u32 %v1580, %v280
      %v1636 = vand.u32 %v1581, %v280
      %v1639 = vand.u32 %v1582, %v280
      %v1642 = vand.u32 %v1583, %v280
      %1644 = vmatpush.bf16.msra.mxu0 0
      %1645 = vmatpush.bf16.msra.mxu0 0
      %1646 = vmatpush.bf16.msra.mxu0 0
      %1647 = vmatpush.bf16.msra.mxu0 0
      %1648 = vmatpush.bf16.msra.mxu0 0
      %1649 = vmatpush.bf16.msra.mxu0 0
      %1650 = vmatpush.bf16.msra.mxu0 0
      %1651 = vmatpush.bf16.msra.mxu0 %v1585
      %1652 = vmatmul.bf16.gmra.mxu0 %v275
      %v1653 = vpop.f32.mrf.mxu0
      %v1654 = vadd.f32 0.0, %v1653
      %v1655 = vpop.f32.mrf.mxu0
      %1656 = vdwg.mxu0
      %1657 = vmatpush.bf16.msra.mxu0 0
      %1658 = vmatpush.bf16.msra.mxu0 0
      %1659 = vmatpush.bf16.msra.mxu0 0
      %1660 = vmatpush.bf16.msra.mxu0 0
      %1661 = vmatpush.bf16.msra.mxu0 0
      %1662 = vmatpush.bf16.msra.mxu0 0
      %1663 = vmatpush.bf16.msra.mxu0 0
      %1664 = vmatpush.bf16.msra.mxu0 %v1588
      %1665 = vmatmul.bf16.gmra.mxu0 %v275
      %v1666 = vpop.f32.mrf.mxu0
      %v1667 = vadd.f32 0.0, %v1666
      %v1668 = vpop.f32.mrf.mxu0
      %1669 = vdwg.mxu0
      %1670 = vmatpush.bf16.msra.mxu0 0
      %1671 = vmatpush.bf16.msra.mxu0 0
      %1672 = vmatpush.bf16.msra.mxu0 0
      %1673 = vmatpush.bf16.msra.mxu0 0
      %1674 = vmatpush.bf16.msra.mxu0 0
      %1675 = vmatpush.bf16.msra.mxu0 0
      %1676 = vmatpush.bf16.msra.mxu0 0
      %1677 = vmatpush.bf16.msra.mxu0 %v1591
      %1678 = vmatmul.bf16.gmra.mxu0 %v275
      %v1679 = vpop.f32.mrf.mxu0
      %v1680 = vadd.f32 0.0, %v1679
      %v1681 = vpop.f32.mrf.mxu0
      %1682 = vdwg.mxu0
      %1683 = vmatpush.bf16.msra.mxu0 0
      %1684 = vmatpush.bf16.msra.mxu0 0
      %1685 = vmatpush.bf16.msra.mxu0 0
      %1686 = vmatpush.bf16.msra.mxu0 0
      %1687 = vmatpush.bf16.msra.mxu0 0
      %1688 = vmatpush.bf16.msra.mxu0 0
      %1689 = vmatpush.bf16.msra.mxu0 0
      %1690 = vmatpush.bf16.msra.mxu0 %v1594
      %1691 = vmatmul.bf16.gmra.mxu0 %v275
      %v1692 = vpop.f32.mrf.mxu0
      %v1693 = vadd.f32 0.0, %v1692
      %v1694 = vpop.f32.mrf.mxu0
      %1695 = vdwg.mxu0
      %1696 = vmatpush.bf16.msra.mxu0 0
      %1697 = vmatpush.bf16.msra.mxu0 0
      %1698 = vmatpush.bf16.msra.mxu0 0
      %1699 = vmatpush.bf16.msra.mxu0 0
      %1700 = vmatpush.bf16.msra.mxu0 0
      %1701 = vmatpush.bf16.msra.mxu0 0
      %1702 = vmatpush.bf16.msra.mxu0 0
      %1703 = vmatpush.bf16.msra.mxu0 %v1597
      %1704 = vmatmul.bf16.gmra.mxu0 %v275
      %v1705 = vpop.f32.mrf.mxu0
      %v1706 = vadd.f32 0.0, %v1705
      %v1707 = vpop.f32.mrf.mxu0
      %1708 = vdwg.mxu0
      %1709 = vmatpush.bf16.msra.mxu0 0
      %1710 = vmatpush.bf16.msra.mxu0 0
      %1711 = vmatpush.bf16.msra.mxu0 0
      %1712 = vmatpush.bf16.msra.mxu0 0
      %1713 = vmatpush.bf16.msra.mxu0 0
      %1714 = vmatpush.bf16.msra.mxu0 0
      %1715 = vmatpush.bf16.msra.mxu0 0
      %1716 = vmatpush.bf16.msra.mxu0 %v1600
      %1717 = vmatmul.bf16.gmra.mxu0 %v275
      %v1718 = vpop.f32.mrf.mxu0
      %v1719 = vadd.f32 0.0, %v1718
      %v1720 = vpop.f32.mrf.mxu0
      %1721 = vdwg.mxu0
      %1722 = vmatpush.bf16.msra.mxu0 0
      %1723 = vmatpush.bf16.msra.mxu0 0
      %1724 = vmatpush.bf16.msra.mxu0 0
      %1725 = vmatpush.bf16.msra.mxu0 0
      %1726 = vmatpush.bf16.msra.mxu0 0
      %1727 = vmatpush.bf16.msra.mxu0 0
      %1728 = vmatpush.bf16.msra.mxu0 0
      %1729 = vmatpush.bf16.msra.mxu0 %v1603
      %1730 = vmatmul.bf16.gmra.mxu0 %v275
      %v1731 = vpop.f32.mrf.mxu0
      %v1732 = vadd.f32 0.0, %v1731
      %v1733 = vpop.f32.mrf.mxu0
      %1734 = vdwg.mxu0
      %1735 = vmatpush.bf16.msra.mxu0 0
      %1736 = vmatpush.bf16.msra.mxu0 0
      %1737 = vmatpush.bf16.msra.mxu0 0
      %1738 = vmatpush.bf16.msra.mxu0 0
      %1739 = vmatpush.bf16.msra.mxu0 0
      %1740 = vmatpush.bf16.msra.mxu0 0
      %1741 = vmatpush.bf16.msra.mxu0 0
      %1742 = vmatpush.bf16.msra.mxu0 %v1606
      %1743 = vmatmul.bf16.gmra.mxu0 %v275
      %v1744 = vpop.f32.mrf.mxu0
      %v1745 = vadd.f32 0.0, %v1744
      %v1746 = vpop.f32.mrf.mxu0
      %1747 = vdwg.mxu0
      %1748 = vmatpush.bf16.msra.mxu0 0
      %1749 = vmatpush.bf16.msra.mxu0 0
      %1750 = vmatpush.bf16.msra.mxu0 0
      %1751 = vmatpush.bf16.msra.mxu0 0
      %1752 = vmatpush.bf16.msra.mxu0 0
      %1753 = vmatpush.bf16.msra.mxu0 0
      %1754 = vmatpush.bf16.msra.mxu0 0
      %1755 = vmatpush.bf16.msra.mxu0 %v1609
      %1756 = vmatmul.bf16.gmra.mxu0 %v275
      %v1757 = vpop.f32.mrf.mxu0
      %v1758 = vadd.f32 0.0, %v1757
      %v1759 = vpop.f32.mrf.mxu0
      %1760 = vdwg.mxu0
      %1761 = vmatpush.bf16.msra.mxu0 0
      %1762 = vmatpush.bf16.msra.mxu0 0
      %1763 = vmatpush.bf16.msra.mxu0 0
      %1764 = vmatpush.bf16.msra.mxu0 0
      %1765 = vmatpush.bf16.msra.mxu0 0
      %1766 = vmatpush.bf16.msra.mxu0 0
      %1767 = vmatpush.bf16.msra.mxu0 0
      %1768 = vmatpush.bf16.msra.mxu0 %v1612
      %1769 = vmatmul.bf16.gmra.mxu0 %v275
      %v1770 = vpop.f32.mrf.mxu0
      %v1771 = vadd.f32 0.0, %v1770
      %v1772 = vpop.f32.mrf.mxu0
      %1773 = vdwg.mxu0
      %1774 = vmatpush.bf16.msra.mxu0 0
      %1775 = vmatpush.bf16.msra.mxu0 0
      %1776 = vmatpush.bf16.msra.mxu0 0
      %1777 = vmatpush.bf16.msra.mxu0 0
      %1778 = vmatpush.bf16.msra.mxu0 0
      %1779 = vmatpush.bf16.msra.mxu0 0
      %1780 = vmatpush.bf16.msra.mxu0 0
      %1781 = vmatpush.bf16.msra.mxu0 %v1615
      %1782 = vmatmul.bf16.gmra.mxu0 %v275
      %v1783 = vpop.f32.mrf.mxu0
      %v1784 = vadd.f32 0.0, %v1783
      %v1785 = vpop.f32.mrf.mxu0
      %1786 = vdwg.mxu0
      %1787 = vmatpush.bf16.msra.mxu0 0
      %1788 = vmatpush.bf16.msra.mxu0 0
      %1789 = vmatpush.bf16.msra.mxu0 0
      %1790 = vmatpush.bf16.msra.mxu0 0
      %1791 = vmatpush.bf16.msra.mxu0 0
      %1792 = vmatpush.bf16.msra.mxu0 0
      %1793 = vmatpush.bf16.msra.mxu0 0
      %1794 = vmatpush.bf16.msra.mxu0 %v1618
      %1795 = vmatmul.bf16.gmra.mxu0 %v275
      %v1796 = vpop.f32.mrf.mxu0
      %v1797 = vadd.f32 0.0, %v1796
      %v1798 = vpop.f32.mrf.mxu0
      %1799 = vdwg.mxu0
      %1800 = vmatpush.bf16.msra.mxu0 0
      %1801 = vmatpush.bf16.msra.mxu0 0
      %1802 = vmatpush.bf16.msra.mxu0 0
      %1803 = vmatpush.bf16.msra.mxu0 0
      %1804 = vmatpush.bf16.msra.mxu0 0
      %1805 = vmatpush.bf16.msra.mxu0 0
      %1806 = vmatpush.bf16.msra.mxu0 0
      %1807 = vmatpush.bf16.msra.mxu0 %v1621
      %1808 = vmatmul.bf16.gmra.mxu0 %v275
      %v1809 = vpop.f32.mrf.mxu0
      %v1810 = vadd.f32 0.0, %v1809
      %v1811 = vpop.f32.mrf.mxu0
      %1812 = vdwg.mxu0
      %1813 = vmatpush.bf16.msra.mxu0 0
      %1814 = vmatpush.bf16.msra.mxu0 0
      %1815 = vmatpush.bf16.msra.mxu0 0
      %1816 = vmatpush.bf16.msra.mxu0 0
      %1817 = vmatpush.bf16.msra.mxu0 0
      %1818 = vmatpush.bf16.msra.mxu0 0
      %1819 = vmatpush.bf16.msra.mxu0 0
      %1820 = vmatpush.bf16.msra.mxu0 %v1624
      %1821 = vmatmul.bf16.gmra.mxu0 %v275
      %v1822 = vpop.f32.mrf.mxu0
      %v1823 = vadd.f32 0.0, %v1822
      %v1824 = vpop.f32.mrf.mxu0
      %1825 = vdwg.mxu0
      %1826 = vmatpush.bf16.msra.mxu0 0
      %1827 = vmatpush.bf16.msra.mxu0 0
      %1828 = vmatpush.bf16.msra.mxu0 0
      %1829 = vmatpush.bf16.msra.mxu0 0
      %1830 = vmatpush.bf16.msra.mxu0 0
      %1831 = vmatpush.bf16.msra.mxu0 0
      %1832 = vmatpush.bf16.msra.mxu0 0
      %1833 = vmatpush.bf16.msra.mxu0 %v1627
      %1834 = vmatmul.bf16.gmra.mxu0 %v275
      %v1835 = vpop.f32.mrf.mxu0
      %v1836 = vadd.f32 0.0, %v1835
      %v1837 = vpop.f32.mrf.mxu0
      %1838 = vdwg.mxu0
      %1839 = vmatpush.bf16.msra.mxu0 0
      %1840 = vmatpush.bf16.msra.mxu0 0
      %1841 = vmatpush.bf16.msra.mxu0 0
      %1842 = vmatpush.bf16.msra.mxu0 0
      %1843 = vmatpush.bf16.msra.mxu0 0
      %1844 = vmatpush.bf16.msra.mxu0 0
      %1845 = vmatpush.bf16.msra.mxu0 0
      %1846 = vmatpush.bf16.msra.mxu0 %v1630
      %1847 = vmatmul.bf16.gmra.mxu0 %v275
      %v1848 = vpop.f32.mrf.mxu0
      %v1849 = vadd.f32 0.0, %v1848
      %v1850 = vpop.f32.mrf.mxu0
      %1851 = vdwg.mxu0
      %1852 = vmatpush.bf16.msra.mxu0 0
      %1853 = vmatpush.bf16.msra.mxu0 0
      %1854 = vmatpush.bf16.msra.mxu0 0
      %1855 = vmatpush.bf16.msra.mxu0 0
      %1856 = vmatpush.bf16.msra.mxu0 0
      %1857 = vmatpush.bf16.msra.mxu0 0
      %1858 = vmatpush.bf16.msra.mxu0 0
      %1859 = vmatpush.bf16.msra.mxu0 %v1633
      %1860 = vmatmul.bf16.gmra.mxu0 %v275
      %v1861 = vpop.f32.mrf.mxu0
      %v1862 = vadd.f32 0.0, %v1861
      %v1863 = vpop.f32.mrf.mxu0
      %1864 = vdwg.mxu0
      %1865 = vmatpush.bf16.msra.mxu0 0
      %1866 = vmatpush.bf16.msra.mxu0 0
      %1867 = vmatpush.bf16.msra.mxu0 0
      %1868 = vmatpush.bf16.msra.mxu0 0
      %1869 = vmatpush.bf16.msra.mxu0 0
      %1870 = vmatpush.bf16.msra.mxu0 0
      %1871 = vmatpush.bf16.msra.mxu0 0
      %1872 = vmatpush.bf16.msra.mxu0 %v1636
      %1873 = vmatmul.bf16.gmra.mxu0 %v275
      %v1874 = vpop.f32.mrf.mxu0
      %v1875 = vadd.f32 0.0, %v1874
      %v1876 = vpop.f32.mrf.mxu0
      %1877 = vdwg.mxu0
      %1878 = vmatpush.bf16.msra.mxu0 0
      %1879 = vmatpush.bf16.msra.mxu0 0
      %1880 = vmatpush.bf16.msra.mxu0 0
      %1881 = vmatpush.bf16.msra.mxu0 0
      %1882 = vmatpush.bf16.msra.mxu0 0
      %1883 = vmatpush.bf16.msra.mxu0 0
      %1884 = vmatpush.bf16.msra.mxu0 0
      %1885 = vmatpush.bf16.msra.mxu0 %v1639
      %1886 = vmatmul.bf16.gmra.mxu0 %v275
      %v1887 = vpop.f32.mrf.mxu0
      %v1888 = vadd.f32 0.0, %v1887
      %v1889 = vpop.f32.mrf.mxu0
      %1890 = vdwg.mxu0
      %1891 = vmatpush.bf16.msra.mxu0 0
      %1892 = vmatpush.bf16.msra.mxu0 0
      %1893 = vmatpush.bf16.msra.mxu0 0
      %1894 = vmatpush.bf16.msra.mxu0 0
      %1895 = vmatpush.bf16.msra.mxu0 0
      %1896 = vmatpush.bf16.msra.mxu0 0
      %1897 = vmatpush.bf16.msra.mxu0 0
      %1898 = vmatpush.bf16.msra.mxu0 %v1642
      %1899 = vmatmul.bf16.gmra.mxu0 %v275
      %v1900 = vpop.f32.mrf.mxu0
      %v1901 = vadd.f32 0.0, %v1900
      %v1902 = vpop.f32.mrf.mxu0
      %1903 = vdwg.mxu0
      %v1904 = vmax.f32 %v1463, %v1654
      %v1905 = vmax.f32 %v1464, %v1667
      %v1906 = vmax.f32 %v1465, %v1680
      %v1907 = vmax.f32 %v1466, %v1693
      %v1908 = vmax.f32 %v1467, %v1706
      %v1909 = vmax.f32 %v1468, %v1719
      %v1910 = vmax.f32 %v1469, %v1732
      %v1911 = vmax.f32 %v1470, %v1745
      %v1912 = vmax.f32 %v1471, %v1758
      %v1913 = vmax.f32 %v1472, %v1771
      %v1914 = vmax.f32 %v1473, %v1784
      %v1915 = vmax.f32 %v1474, %v1797
      %v1916 = vmax.f32 %v1475, %v1810
      %v1917 = vmax.f32 %v1476, %v1823
      %v1918 = vmax.f32 %v1477, %v1836
      %v1919 = vmax.f32 %v1478, %v1849
      %v1920 = vmax.f32 %v1479, %v1862
      %v1921 = vmax.f32 %v1480, %v1875
      %v1922 = vmax.f32 %v1481, %v1888
      %v1923 = vmax.f32 %v1482, %v1901
      %v1924 = vld [vmem:[%s2] sm:$0x3f]
      %1926 = vset.pattern.permute.xlu0 0
      %1927 = vperm.xlu0 %1926, %v1924
      %v1928 = vpop.permute.xlu0 %1927
      %v1930 = vadd.f32 %v1904, %v1928
      %v1931 = vadd.f32 %v1905, %v1928
      %v1932 = vadd.f32 %v1906, %v1928
      %v1933 = vadd.f32 %v1907, %v1928
      %v1934 = vadd.f32 %v1908, %v1928
      %v1935 = vadd.f32 %v1909, %v1928
      %v1936 = vadd.f32 %v1910, %v1928
      %v1937 = vadd.f32 %v1911, %v1928
      %v1938 = vadd.f32 %v1912, %v1928
      %v1939 = vadd.f32 %v1913, %v1928
      %v1940 = vadd.f32 %v1914, %v1928
      %v1941 = vadd.f32 %v1915, %v1928
      %v1942 = vadd.f32 %v1916, %v1928
      %v1943 = vadd.f32 %v1917, %v1928
      %v1944 = vadd.f32 %v1918, %v1928
      %v1945 = vadd.f32 %v1919, %v1928
      %v1946 = vadd.f32 %v1920, %v1928
      %v1947 = vadd.f32 %v1921, %v1928
      %v1948 = vadd.f32 %v1922, %v1928
      %v1949 = vadd.f32 %v1923, %v1928
      %v1950 = vmax.f32 %v1930, 0.0
      %v1951 = vmax.f32 %v1931, 0.0
      %v1952 = vmax.f32 %v1932, 0.0
      %v1953 = vmax.f32 %v1933, 0.0
      %v1954 = vmax.f32 %v1934, 0.0
      %v1955 = vmax.f32 %v1935, 0.0
      %v1956 = vmax.f32 %v1936, 0.0
      %v1957 = vmax.f32 %v1937, 0.0
      %v1958 = vmax.f32 %v1938, 0.0
      %v1959 = vmax.f32 %v1939, 0.0
      %v1960 = vmax.f32 %v1940, 0.0
      %v1961 = vmax.f32 %v1941, 0.0
      %v1962 = vmax.f32 %v1942, 0.0
      %v1963 = vmax.f32 %v1943, 0.0
      %v1964 = vmax.f32 %v1944, 0.0
      %v1965 = vmax.f32 %v1945, 0.0
      %v1966 = vmax.f32 %v1946, 0.0
      %v1967 = vmax.f32 %v1947, 0.0
      %v1968 = vmax.f32 %v1948, 0.0
      %v1969 = vmax.f32 %v1949, 0.0
      %v1970 = vpack.c.bf16 %v1951, %v1950
      %v1971 = vpack.c.bf16 %v1953, %v1952
      %v1972 = vpack.c.bf16 %v1955, %v1954
      %v1973 = vpack.c.bf16 %v1957, %v1956
      %v1974 = vpack.c.bf16 %v1959, %v1958
      %v1975 = vpack.c.bf16 %v1961, %v1960
      %v1976 = vpack.c.bf16 %v1963, %v1962
      %v1977 = vpack.c.bf16 %v1965, %v1964
      %v1978 = vpack.c.bf16 %v1967, %v1966
      %v1979 = vpack.c.bf16 %v1969, %v1968
      %1980 = vst [vmem:[%s170] sm:$0x77] %v1970
      %1981 = vst [vmem:[%s170 + $0x8] sm:$0x77] %v1971
      %1982 = vst [vmem:[%s170 + $0x10] sm:$0x77] %v1972
      %1983 = vst [vmem:[%s170 + $0x18] sm:$0x77] %v1973
      %1984 = vst [vmem:[%s170 + $0x20] sm:$0x77] %v1974
      %1985 = vst [vmem:[%s170 + $0x28] sm:$0x77] %v1975
      %1986 = vst [vmem:[%s170 + $0x30] sm:$0x77] %v1976
      %1987 = vst [vmem:[%s170 + $0x38] sm:$0x77] %v1977
      %1988 = vst [vmem:[%s170 + $0x40] sm:$0x77] %v1978
      %1989 = vst [vmem:[%s170 + $0x48] sm:$0x77] %v1979
      %p1990 = scmp.lt.s32.totalorder %s14, 1
      %s1991 = scalar_select %p1990, %s14, 1
      %s1992 = smul.addr %s1991, 20
      %s1993 = smul.addr %s1992, 4
      %s1994 = scalar_lea.vmem %s3, %s1993
      // Predicated region
      $region33: #{forward.3} parent=31 // pred_check
        %p1995 = pneg %p100
      $region34: #{forward.3} parent=31 // pred_check_branch
        %1997 = sbr.rel (%p1995) target = $region36
      $region35: #{forward.3} parent=31 // pred_region
        _
      $region36: #{forward.3} parent=31 // pred_fallthru
        _
    $region32: #{forward.3} parent=5 // pred_fallthru
      _
    %p1998 = scmp.le.s32.totalorder 2, %s9
    // Predicated region
    $region37: #{forward.3} parent=5 // pred_check
      %p1999 = pneg %p1998
    $region38: #{forward.3} parent=5 // pred_check_branch
      %2001 = sbr.rel (%p1999) target = $region40
    $region39: #{forward.3} parent=5 // pred_region
      %s2002 = ssub.s32 %s9, 2
      // Predicated region
      $region41: #{forward.3} parent=39 // pred_check
        %p2003 = pneg %p106
      $region42: #{forward.3} parent=39 // pred_check_branch
        %2005 = sbr.rel (%p2003) target = $region44
      $region43: #{forward.3} parent=39 // pred_region
        %p2006 = scmp.lt.s32.totalorder %s15, 1
        %s2007 = scalar_select %p2006, %s15, 1
        %s2008 = smul.addr %s2007, 20
        %s2009 = smul.addr %s2008, 4
        %s2010 = scalar_lea.vmem %s3, %s2009
      $region44: #{forward.3} parent=39 // pred_fallthru
        _
    $region40: #{forward.3} parent=5 // pred_fallthru
      _
  $region6: #{forward.3} parent=0 // loop_footer
    %s13 = sadd.s32 1, %s9
  $region7: #{forward.3} parent=0 // loop_footer_branch
    %8 = sbr.rel target = $region3
  $region8: #{forward.3} parent=0 // loop_exit
    _

// kernel: forward.4
$region0: #{forward.4}
  #allocation0 [shape = 'u32[]', space=smem, size = 0x4, offset = 0x4, fixed_abs, tag = 'smem constant byte address 0x4 - core index']
  #allocation1 [shape = 'u32[72,128]{1,0:T(1,128)}', space=vmem, size = 0x9000, scoped, tag = 'internal scratch']
  %s0 = inlined_call_operand.vmem [shape: bf16[2,4,54,640], index: 0, kind: input, shape index: {}]
  %s1 = inlined_call_operand.vmem [shape: bf16[16,54], index: 1, kind: input, shape index: {}]
  %s2 = inlined_call_operand.vmem [shape: f32[16,1], index: 2, kind: input, shape index: {}]
  %s3 = inlined_call_operand.vmem [shape: bf16[2,16,640], index: 3, kind: output, shape index: {}]
  %s4 = sld [smem:[#allocation0]]
  $region45: #{forward.4} parent=0
    _
  %s6 = ssub.s32 1, %s4
  %s7 = scalar_select 0, %s6, %s4
  loop: start=0, step=1, limit=4
  $region2: #{forward.4} parent=0 // loop_pre_header
    _
  $region3: #{forward.4} parent=0 // loop_header
    %s9 = sphi 0, %s13
    %p10 = scmp.ge.s32.totalorder %s9, 4
    %s19 = sphi 0, %s21
    %s22 = sphi 0, %s19
    %s23 = sphi 0, %s22
    %s39 = sphi 0, %s23
    %s43 = sphi 0, %s43
    %s45 = sphi 0, %s43
    %s46 = sphi 0, %s45
    %s60 = sphi 0, %s46
    %s64 = sphi 0, %s64
    %s66 = sphi 0, %s64
    %s67 = sphi 0, %s66
    %s81 = sphi 0, %s67
    %s87 = sphi 0, %s89
    %s90 = sphi 0, %s87
    %s91 = sphi 0, %s90
    %s107 = sphi 0, %s91
  $region4: #{forward.4} parent=0 // loop_header_branch
    %12 = sbr.rel (%p10) target = $region8
  $region5: #{forward.4} parent=0 // loop_body
    %s14 = ssub.s32 %s9, 1
    %s15 = ssub.s32 %s9, 2
    %s16 = sadd.s32 %s9, 1
    %s17 = ssub.s32 %s9, %s16
    %p18 = scmp.eq.s32.totalorder %s17, 0
    %s20 = sadd.s32 %s19, 1
    %s21 = scalar_select %p18, %s19, %s20
    %p24 = pneg %p18
    %p25 = scmp.eq.s32.totalorder %s9, 1
    %p26 = por %p24, %p25
    %p27 = scmp.ne.s32.totalorder %s19, %s22
    %p28 = scmp.eq.s32.totalorder %s9, 0
    %p29 = por %p27, %p28
    %p30 = scmp.ne.s32.totalorder %s19, %s22
    %p31 = scmp.eq.s32.totalorder %s14, 1
    %p32 = por %p30, %p31
    %p33 = scmp.ne.s32.totalorder %s22, %s23
    %p34 = scmp.eq.s32.totalorder %s14, 0
    %p35 = por %p33, %p34
    %p36 = scmp.ne.s32.totalorder %s22, %s23
    %p37 = scmp.eq.s32.totalorder %s15, 1
    %p38 = por %p36, %p37
    %p40 = scmp.ne.s32.totalorder %s23, %s39
    %p41 = scmp.eq.s32.totalorder %s15, 0
    %p42 = por %p40, %p41
    %s44 = sadd.s32 %s43, 1
    %p47 = scmp.eq.s32.totalorder %s9, 1
    %p48 = scmp.ne.s32.totalorder %s43, %s45
    %p49 = scmp.eq.s32.totalorder %s9, 0
    %p50 = por %p48, %p49
    %p51 = scmp.ne.s32.totalorder %s43, %s45
    %p52 = scmp.eq.s32.totalorder %s14, 1
    %p53 = por %p51, %p52
    %p54 = scmp.ne.s32.totalorder %s45, %s46
    %p55 = scmp.eq.s32.totalorder %s14, 0
    %p56 = por %p54, %p55
    %p57 = scmp.ne.s32.totalorder %s45, %s46
    %p58 = scmp.eq.s32.totalorder %s15, 1
    %p59 = por %p57, %p58
    %p61 = scmp.ne.s32.totalorder %s46, %s60
    %p62 = scmp.eq.s32.totalorder %s15, 0
    %p63 = por %p61, %p62
    %s65 = sadd.s32 %s64, 1
    %p68 = scmp.eq.s32.totalorder %s9, 1
    %p69 = scmp.ne.s32.totalorder %s64, %s66
    %p70 = scmp.eq.s32.totalorder %s9, 0
    %p71 = por %p69, %p70
    %p72 = scmp.ne.s32.totalorder %s64, %s66
    %p73 = scmp.eq.s32.totalorder %s14, 1
    %p74 = por %p72, %p73
    %p75 = scmp.ne.s32.totalorder %s66, %s67
    %p76 = scmp.eq.s32.totalorder %s14, 0
    %p77 = por %p75, %p76
    %p78 = scmp.ne.s32.totalorder %s66, %s67
    %p79 = scmp.eq.s32.totalorder %s15, 1
    %p80 = por %p78, %p79
    %p82 = scmp.ne.s32.totalorder %s67, %s81
    %p83 = scmp.eq.s32.totalorder %s15, 0
    %p84 = por %p82, %p83
    %s85 = ssub.s32 %s9, %s16
    %p86 = scmp.eq.s32.totalorder %s85, 0
    %s88 = sadd.s32 %s87, 1
    %s89 = scalar_select %p86, %s87, %s88
    %p92 = pneg %p86
    %p93 = scmp.eq.s32.totalorder %s9, 1
    %p94 = por %p92, %p93
    %p95 = scmp.ne.s32.totalorder %s87, %s90
    %p96 = scmp.eq.s32.totalorder %s9, 0
    %p97 = por %p95, %p96
    %p98 = scmp.ne.s32.totalorder %s87, %s90
    %p99 = scmp.eq.s32.totalorder %s14, 1
    %p100 = por %p98, %p99
    %p101 = scmp.ne.s32.totalorder %s90, %s91
    %p102 = scmp.eq.s32.totalorder %s14, 0
    %p103 = por %p101, %p102
    %p104 = scmp.ne.s32.totalorder %s90, %s91
    %p105 = scmp.eq.s32.totalorder %s15, 1
    %p106 = por %p104, %p105
    %p108 = scmp.ne.s32.totalorder %s91, %s107
    %p109 = scmp.eq.s32.totalorder %s15, 0
    %p110 = por %p108, %p109
    %p111 = scmp.le.s32.totalorder 1, %s9
    %p112 = scmp.lt.s32.totalorder %s9, 3
    %p113 = pnand %p111, %p112
    %p114 = pneg %p113
    // Predicated region
    $region9: #{forward.4} parent=5 // pred_check
      _
    $region10: #{forward.4} parent=5 // pred_check_branch
      %116 = sbr.rel (%p113) target = $region12
    $region11: #{forward.4} parent=5 // pred_region
      %s117 = ssub.s32 %s9, 1
      // Predicated region
      $region13: #{forward.4} parent=11 // pred_check
        %p118 = pneg %p56
      $region14: #{forward.4} parent=11 // pred_check_branch
        %120 = sbr.rel (%p118) target = $region16
      $region15: #{forward.4} parent=11 // pred_region
        _
      $region16: #{forward.4} parent=11 // pred_fallthru
        _
      // Predicated region
      $region17: #{forward.4} parent=11 // pred_check
        %p121 = pneg %p77
      $region18: #{forward.4} parent=11 // pred_check_branch
        %123 = sbr.rel (%p121) target = $region20
      $region19: #{forward.4} parent=11 // pred_region
        _
      $region20: #{forward.4} parent=11 // pred_fallthru
        _
    $region12: #{forward.4} parent=5 // pred_fallthru
      _
    %p124 = scmp.lt.s32.totalorder %s9, 2
    // Predicated region
    $region21: #{forward.4} parent=5 // pred_check
      %p125 = pneg %p124
    $region22: #{forward.4} parent=5 // pred_check_branch
      %127 = sbr.rel (%p125) target = $region24
    $region23: #{forward.4} parent=5 // pred_region
      // Predicated region
      $region25: #{forward.4} parent=23 // pred_check
        %p128 = pneg %p29
      $region26: #{forward.4} parent=23 // pred_check_branch
        %130 = sbr.rel (%p128) target = $region28
      $region27: #{forward.4} parent=23 // pred_region
        %p131 = scmp.lt.s32.totalorder %s9, 1
        %s132 = scalar_select %p131, %s9, 1
        %s133 = smul.addr %s132, 140
        %s134 = smul.addr %s133, 4
        %s135 = scalar_lea.vmem %s0, %s134
      $region28: #{forward.4} parent=23 // pred_fallthru
        _
    $region24: #{forward.4} parent=5 // pred_fallthru
      _
    %p136 = scmp.le.s32.totalorder 1, %s9
    %p137 = scmp.lt.s32.totalorder %s9, 3
    %p138 = pnand %p136, %p137
    %p139 = pneg %p138
    // Predicated region
    $region29: #{forward.4} parent=5 // pred_check
      _
    $region30: #{forward.4} parent=5 // pred_check_branch
      %141 = sbr.rel (%p138) target = $region32
    $region31: #{forward.4} parent=5 // pred_region
      %s142 = ssub.s32 %s9, 1
      %p143 = scmp.lt.s32.totalorder %s14, 1
      %s144 = scalar_select %p143, %s14, 1
      %s145 = smul.addr %s144, 140
      %s146 = smul.addr %s145, 4
      %s147 = scalar_lea.vmem %s0, %s146
      %p148 = pneg %p35
      %p149 = pneg %p32
      %p150 = pneg %p56
      %p151 = pneg %p53
      %p152 = pneg %p77
      %p153 = pneg %p74
      %p154 = pneg %p103
      %p155 = pneg %p100
      %p156 = scmp.lt.s32.totalorder %s14, 1
      %s157 = scalar_select %p156, %s14, 1
      %s158 = smul.addr %s157, 10
      %s159 = smul.addr %s158, 4
      %s160 = scalar_lea.vmem %s3, %s159
      %p161 = scmp.lt.s32.totalorder %s14, 1
      %s162 = scalar_select %p161, %s14, 1
      %s163 = smul.addr %s162, 140
      %s164 = smul.addr %s163, 4
      %s165 = scalar_lea.vmem %s0, %s164
      %p166 = scmp.lt.s32.totalorder %s14, 1
      %s167 = scalar_select %p166, %s14, 1
      %s168 = smul.addr %s167, 10
      %s169 = smul.addr %s168, 4
      %s170 = scalar_lea.vmem %s3, %s169
      %v172 = vld [vmem:[%s1] sm:$0xf]
      %v173 = vld [vmem:[%s1 + $0x4] sm:$0xf]
      %v174 = vld [vmem:[%s165] sm:$0xff]
      %v175 = vld [vmem:[%s165 + $0x8] sm:$0xff]
      %v176 = vld [vmem:[%s165 + $0x10] sm:$0xf]
      %v177 = vld [vmem:[%s165 + $0x14] sm:$0xff]
      %v178 = vld [vmem:[%s165 + $0x1c] sm:$0xff]
      %v179 = vld [vmem:[%s165 + $0x24] sm:$0xf]
      %v180 = vld [vmem:[%s165 + $0x28] sm:$0xff]
      %v181 = vld [vmem:[%s165 + $0x30] sm:$0xff]
      %v182 = vld [vmem:[%s165 + $0x38] sm:$0xf]
      %v183 = vld [vmem:[%s165 + $0x3c] sm:$0xff]
      %v184 = vld [vmem:[%s165 + $0x44] sm:$0xff]
      %v185 = vld [vmem:[%s165 + $0x4c] sm:$0xf]
      %v186 = vld [vmem:[%s165 + $0x50] sm:$0xff]
      %v187 = vld [vmem:[%s165 + $0x58] sm:$0xff]
      %v188 = vld [vmem:[%s165 + $0x60] sm:$0xf]
      %v189 = vld [vmem:[%s165 + $0x64] sm:$0xff]
      %v190 = vld [vmem:[%s165 + $0x6c] sm:$0xff]
      %v191 = vld [vmem:[%s165 + $0x74] sm:$0xf]
      %v192 = vld [vmem:[%s165 + $0x78] sm:$0x77]
      %v193 = vld [vmem:[%s165 + $0x80] sm:$0x77]
      %v194 = vld [vmem:[%s165 + $0x88] sm:$0x7]
      %v197 = vunpack.c.l.b16 %v172
      %v198 = vunpack.c.l.b16 %v173
      %v199 = vpack.c.b16 %v198, %v197
      %v221 = vunpack.c.l.b16 %v174
      %v222 = vunpack.c.h.b16 %v174
      %v223 = vunpack.c.l.b16 %v175
      %v224 = vunpack.c.h.b16 %v175
      %v225 = vunpack.c.l.b16 %v176
      %v226 = vunpack.c.l.b16 %v177
      %v227 = vunpack.c.h.b16 %v177
      %v228 = vunpack.c.l.b16 %v178
      %v229 = vunpack.c.h.b16 %v178
      %v230 = vunpack.c.l.b16 %v179
      %v231 = vunpack.c.l.b16 %v180
      %v232 = vunpack.c.h.b16 %v180
      %v233 = vunpack.c.l.b16 %v181
      %v234 = vunpack.c.h.b16 %v181
      %v235 = vunpack.c.l.b16 %v182
      %v236 = vunpack.c.l.b16 %v183
      %v237 = vunpack.c.h.b16 %v183
      %v238 = vunpack.c.l.b16 %v184
      %v239 = vunpack.c.h.b16 %v184
      %v240 = vunpack.c.l.b16 %v185
      %v241 = vunpack.c.l.b16 %v186
      %v242 = vunpack.c.h.b16 %v186
      %v243 = vunpack.c.l.b16 %v187
      %v244 = vunpack.c.h.b16 %v187
      %v245 = vunpack.c.l.b16 %v188
      %v246 = vunpack.c.l.b16 %v189
      %v247 = vunpack.c.h.b16 %v189
      %v248 = vunpack.c.l.b16 %v190
      %v249 = vunpack.c.h.b16 %v190
      %v250 = vunpack.c.l.b16 %v191
      %v251 = vunpack.c.l.b16 %v192
      %v252 = vunpack.c.h.b16 %v192
      %v253 = vunpack.c.l.b16 %v193
      %v254 = vunpack.c.h.b16 %v193
      %v255 = vunpack.c.l.b16 %v194
      %v256 = vpack.c.b16 %v226, %v221
      %v257 = vpack.c.b16 %v227, %v222
      %v258 = vpack.c.b16 %v228, %v223
      %v259 = vpack.c.b16 %v229, %v224
      %v260 = vpack.c.b16 %v230, %v225
      %v261 = vpack.c.b16 %v236, %v231
      %v262 = vpack.c.b16 %v237, %v232
      %v263 = vpack.c.b16 %v238, %v233
      %v264 = vpack.c.b16 %v239, %v234
      %v265 = vpack.c.b16 %v240, %v235
      %v266 = vpack.c.b16 %v246, %v241
      %v267 = vpack.c.b16 %v247, %v242
      %v268 = vpack.c.b16 %v248, %v243
      %v269 = vpack.c.b16 %v249, %v244
      %v270 = vpack.c.b16 %v250, %v245
      %v271 = vpack.c.b16 %v251, %v251
      %v272 = vpack.c.b16 %v252, %v252
      %v273 = vpack.c.b16 %v253, %v253
      %v274 = vpack.c.b16 %v254, %v254
      %v275 = vpack.c.b16 %v255, %v255
      %vm291 = vcmask 441344
      %v293 = vsel %vm291, %v199, 0
      %vm295 = vcmask 1042432
      %v297 = vsel %vm295, %v271, 0
      %v300 = vsel %vm295, %v272, 0
      %v303 = vsel %vm295, %v273, 0
      %v306 = vsel %vm295, %v274, 0
      %v309 = vsel %vm295, %v275, 0
      %311 = vmatpush.bf16.msra.mxu0 0
      %312 = vmatpush.bf16.msra.mxu0 0
      %313 = vmatpush.bf16.msra.mxu0 0
      %314 = vmatpush.bf16.msra.mxu0 0
      %315 = vmatpush.bf16.msra.mxu0 %v297
      %316 = vmatpush.bf16.msra.mxu0 %v266
      %317 = vmatpush.bf16.msra.mxu0 %v261
      %318 = vmatpush.bf16.msra.mxu0 %v256
      %319 = vmatmul.bf16.gmra.mxu0 %v293
      %v320 = vpop.f32.mrf.mxu0
      %v321 = vadd.f32 0.0, %v320
      %v322 = vpop.f32.mrf.mxu0
      %v323 = vadd.f32 0.0, %v322
      %324 = vdwg.mxu0
      %325 = vmatpush.bf16.msra.mxu0 0
      %326 = vmatpush.bf16.msra.mxu0 0
      %327 = vmatpush.bf16.msra.mxu0 0
      %328 = vmatpush.bf16.msra.mxu0 0
      %329 = vmatpush.bf16.msra.mxu0 %v300
      %330 = vmatpush.bf16.msra.mxu0 %v267
      %331 = vmatpush.bf16.msra.mxu0 %v262
      %332 = vmatpush.bf16.msra.mxu0 %v257
      %333 = vmatmul.bf16.gmra.mxu0 %v293
      %v334 = vpop.f32.mrf.mxu0
      %v335 = vadd.f32 0.0, %v334
      %v336 = vpop.f32.mrf.mxu0
      %v337 = vadd.f32 0.0, %v336
      %338 = vdwg.mxu0
      %339 = vmatpush.bf16.msra.mxu0 0
      %340 = vmatpush.bf16.msra.mxu0 0
      %341 = vmatpush.bf16.msra.mxu0 0
      %342 = vmatpush.bf16.msra.mxu0 0
      %343 = vmatpush.bf16.msra.mxu0 %v303
      %344 = vmatpush.bf16.msra.mxu0 %v268
      %345 = vmatpush.bf16.msra.mxu0 %v263
      %346 = vmatpush.bf16.msra.mxu0 %v258
      %347 = vmatmul.bf16.gmra.mxu0 %v293
      %v348 = vpop.f32.mrf.mxu0
      %v349 = vadd.f32 0.0, %v348
      %v350 = vpop.f32.mrf.mxu0
      %v351 = vadd.f32 0.0, %v350
      %352 = vdwg.mxu0
      %353 = vmatpush.bf16.msra.mxu0 0
      %354 = vmatpush.bf16.msra.mxu0 0
      %355 = vmatpush.bf16.msra.mxu0 0
      %356 = vmatpush.bf16.msra.mxu0 0
      %357 = vmatpush.bf16.msra.mxu0 %v306
      %358 = vmatpush.bf16.msra.mxu0 %v269
      %359 = vmatpush.bf16.msra.mxu0 %v264
      %360 = vmatpush.bf16.msra.mxu0 %v259
      %361 = vmatmul.bf16.gmra.mxu0 %v293
      %v362 = vpop.f32.mrf.mxu0
      %v363 = vadd.f32 0.0, %v362
      %v364 = vpop.f32.mrf.mxu0
      %v365 = vadd.f32 0.0, %v364
      %366 = vdwg.mxu0
      %367 = vmatpush.bf16.msra.mxu0 0
      %368 = vmatpush.bf16.msra.mxu0 0
      %369 = vmatpush.bf16.msra.mxu0 0
      %370 = vmatpush.bf16.msra.mxu0 0
      %371 = vmatpush.bf16.msra.mxu0 %v309
      %372 = vmatpush.bf16.msra.mxu0 %v270
      %373 = vmatpush.bf16.msra.mxu0 %v265
      %374 = vmatpush.bf16.msra.mxu0 %v260
      %375 = vmatmul.bf16.gmra.mxu0 %v293
      %v376 = vpop.f32.mrf.mxu0
      %v377 = vadd.f32 0.0, %v376
      %v378 = vpop.f32.mrf.mxu0
      %v379 = vadd.f32 0.0, %v378
      %380 = vdwg.mxu0
      %s381 = scalar_lea.vmem %s165, 140
      %v382 = vld [vmem:[%s381] sm:$0xff]
      %v383 = vld [vmem:[%s381 + $0x8] sm:$0xff]
      %v384 = vld [vmem:[%s381 + $0x10] sm:$0xf]
      %v385 = vld [vmem:[%s381 + $0x14] sm:$0xff]
      %v386 = vld [vmem:[%s381 + $0x1c] sm:$0xff]
      %v387 = vld [vmem:[%s381 + $0x24] sm:$0xf]
      %v388 = vld [vmem:[%s381 + $0x28] sm:$0xff]
      %v389 = vld [vmem:[%s381 + $0x30] sm:$0xff]
      %v390 = vld [vmem:[%s381 + $0x38] sm:$0xf]
      %v391 = vld [vmem:[%s381 + $0x3c] sm:$0xff]
      %v392 = vld [vmem:[%s381 + $0x44] sm:$0xff]
      %v393 = vld [vmem:[%s381 + $0x4c] sm:$0xf]
      %v394 = vld [vmem:[%s381 + $0x50] sm:$0xff]
      %v395 = vld [vmem:[%s381 + $0x58] sm:$0xff]
      %v396 = vld [vmem:[%s381 + $0x60] sm:$0xf]
      %v397 = vld [vmem:[%s381 + $0x64] sm:$0xff]
      %v398 = vld [vmem:[%s381 + $0x6c] sm:$0xff]
      %v399 = vld [vmem:[%s381 + $0x74] sm:$0xf]
      %v400 = vld [vmem:[%s381 + $0x78] sm:$0x77]
      %v401 = vld [vmem:[%s381 + $0x80] sm:$0x77]
      %v402 = vld [vmem:[%s381 + $0x88] sm:$0x7]
      %v424 = vunpack.c.l.b16 %v382
      %v425 = vunpack.c.h.b16 %v382
      %v426 = vunpack.c.l.b16 %v383
      %v427 = vunpack.c.h.b16 %v383
      %v428 = vunpack.c.l.b16 %v384
      %v429 = vunpack.c.l.b16 %v385
      %v430 = vunpack.c.h.b16 %v385
      %v431 = vunpack.c.l.b16 %v386
      %v432 = vunpack.c.h.b16 %v386
      %v433 = vunpack.c.l.b16 %v387
      %v434 = vunpack.c.l.b16 %v388
      %v435 = vunpack.c.h.b16 %v388
      %v436 = vunpack.c.l.b16 %v389
      %v437 = vunpack.c.h.b16 %v389
      %v438 = vunpack.c.l.b16 %v390
      %v439 = vunpack.c.l.b16 %v391
      %v440 = vunpack.c.h.b16 %v391
      %v441 = vunpack.c.l.b16 %v392
      %v442 = vunpack.c.h.b16 %v392
      %v443 = vunpack.c.l.b16 %v393
      %v444 = vunpack.c.l.b16 %v394
      %v445 = vunpack.c.h.b16 %v394
      %v446 = vunpack.c.l.b16 %v395
      %v447 = vunpack.c.h.b16 %v395
      %v448 = vunpack.c.l.b16 %v396
      %v449 = vunpack.c.l.b16 %v397
      %v450 = vunpack.c.h.b16 %v397
      %v451 = vunpack.c.l.b16 %v398
      %v452 = vunpack.c.h.b16 %v398
      %v453 = vunpack.c.l.b16 %v399
      %v454 = vunpack.c.l.b16 %v400
      %v455 = vunpack.c.h.b16 %v400
      %v456 = vunpack.c.l.b16 %v401
      %v457 = vunpack.c.h.b16 %v401
      %v458 = vunpack.c.l.b16 %v402
      %v459 = vpack.c.b16 %v429, %v424
      %v460 = vpack.c.b16 %v430, %v425
      %v461 = vpack.c.b16 %v431, %v426
      %v462 = vpack.c.b16 %v432, %v427
      %v463 = vpack.c.b16 %v433, %v428
      %v464 = vpack.c.b16 %v439, %v434
      %v465 = vpack.c.b16 %v440, %v435
      %v466 = vpack.c.b16 %v441, %v436
      %v467 = vpack.c.b16 %v442, %v437
      %v468 = vpack.c.b16 %v443, %v438
      %v469 = vpack.c.b16 %v449, %v444
      %v470 = vpack.c.b16 %v450, %v445
      %v471 = vpack.c.b16 %v451, %v446
      %v472 = vpack.c.b16 %v452, %v447
      %v473 = vpack.c.b16 %v453, %v448
      %v474 = vpack.c.b16 %v454, %v454
      %v475 = vpack.c.b16 %v455, %v455
      %v476 = vpack.c.b16 %v456, %v456
      %v477 = vpack.c.b16 %v457, %v457
      %v478 = vpack.c.b16 %v458, %v458
      %v495 = vsel %vm295, %v474, 0
      %v498 = vsel %vm295, %v475, 0
      %v501 = vsel %vm295, %v476, 0
      %v504 = vsel %vm295, %v477, 0
      %v507 = vsel %vm295, %v478, 0
      %509 = vmatpush.bf16.msra.mxu0 0
      %510 = vmatpush.bf16.msra.mxu0 0
      %511 = vmatpush.bf16.msra.mxu0 0
      %512 = vmatpush.bf16.msra.mxu0 0
      %513 = vmatpush.bf16.msra.mxu0 %v495
      %514 = vmatpush.bf16.msra.mxu0 %v469
      %515 = vmatpush.bf16.msra.mxu0 %v464
      %516 = vmatpush.bf16.msra.mxu0 %v459
      %517 = vmatmul.bf16.gmra.mxu0 %v293
      %v518 = vpop.f32.mrf.mxu0
      %v519 = vadd.f32 0.0, %v518
      %v520 = vpop.f32.mrf.mxu0
      %v521 = vadd.f32 0.0, %v520
      %522 = vdwg.mxu0
      %523 = vmatpush.bf16.msra.mxu0 0
      %524 = vmatpush.bf16.msra.mxu0 0
      %525 = vmatpush.bf16.msra.mxu0 0
      %526 = vmatpush.bf16.msra.mxu0 0
      %527 = vmatpush.bf16.msra.mxu0 %v498
      %528 = vmatpush.bf16.msra.mxu0 %v470
      %529 = vmatpush.bf16.msra.mxu0 %v465
      %530 = vmatpush.bf16.msra.mxu0 %v460
      %531 = vmatmul.bf16.gmra.mxu0 %v293
      %v532 = vpop.f32.mrf.mxu0
      %v533 = vadd.f32 0.0, %v532
      %v534 = vpop.f32.mrf.mxu0
      %v535 = vadd.f32 0.0, %v534
      %536 = vdwg.mxu0
      %537 = vmatpush.bf16.msra.mxu0 0
      %538 = vmatpush.bf16.msra.mxu0 0
      %539 = vmatpush.bf16.msra.mxu0 0
      %540 = vmatpush.bf16.msra.mxu0 0
      %541 = vmatpush.bf16.msra.mxu0 %v501
      %542 = vmatpush.bf16.msra.mxu0 %v471
      %543 = vmatpush.bf16.msra.mxu0 %v466
      %544 = vmatpush.bf16.msra.mxu0 %v461
      %545 = vmatmul.bf16.gmra.mxu0 %v293
      %v546 = vpop.f32.mrf.mxu0
      %v547 = vadd.f32 0.0, %v546
      %v548 = vpop.f32.mrf.mxu0
      %v549 = vadd.f32 0.0, %v548
      %550 = vdwg.mxu0
      %551 = vmatpush.bf16.msra.mxu0 0
      %552 = vmatpush.bf16.msra.mxu0 0
      %553 = vmatpush.bf16.msra.mxu0 0
      %554 = vmatpush.bf16.msra.mxu0 0
      %555 = vmatpush.bf16.msra.mxu0 %v504
      %556 = vmatpush.bf16.msra.mxu0 %v472
      %557 = vmatpush.bf16.msra.mxu0 %v467
      %558 = vmatpush.bf16.msra.mxu0 %v462
      %559 = vmatmul.bf16.gmra.mxu0 %v293
      %v560 = vpop.f32.mrf.mxu0
      %v561 = vadd.f32 0.0, %v560
      %v562 = vpop.f32.mrf.mxu0
      %v563 = vadd.f32 0.0, %v562
      %564 = vdwg.mxu0
      %565 = vmatpush.bf16.msra.mxu0 0
      %566 = vmatpush.bf16.msra.mxu0 0
      %567 = vmatpush.bf16.msra.mxu0 0
      %568 = vmatpush.bf16.msra.mxu0 0
      %569 = vmatpush.bf16.msra.mxu0 %v507
      %570 = vmatpush.bf16.msra.mxu0 %v473
      %571 = vmatpush.bf16.msra.mxu0 %v468
      %572 = vmatpush.bf16.msra.mxu0 %v463
      %573 = vmatmul.bf16.gmra.mxu0 %v293
      %v574 = vpop.f32.mrf.mxu0
      %v575 = vadd.f32 0.0, %v574
      %v576 = vpop.f32.mrf.mxu0
      %v577 = vadd.f32 0.0, %v576
      %578 = vdwg.mxu0
      %v579 = vmax.f32 %v321, %v519
      %v580 = vmax.f32 %v335, %v533
      %v581 = vmax.f32 %v349, %v547
      %v582 = vmax.f32 %v363, %v561
      %v583 = vmax.f32 %v377, %v575
      %v584 = vmax.f32 %v323, %v521
      %v585 = vmax.f32 %v337, %v535
      %v586 = vmax.f32 %v351, %v549
      %v587 = vmax.f32 %v365, %v563
      %v588 = vmax.f32 %v379, %v577
      %s589 = scalar_lea.vmem %s165, 280
      %v590 = vld [vmem:[%s589] sm:$0xff]
      %v591 = vld [vmem:[%s589 + $0x8] sm:$0xff]
      %v592 = vld [vmem:[%s589 + $0x10] sm:$0xf]
      %v593 = vld [vmem:[%s589 + $0x14] sm:$0xff]
      %v594 = vld [vmem:[%s589 + $0x1c] sm:$0xff]
      %v595 = vld [vmem:[%s589 + $0x24] sm:$0xf]
      %v596 = vld [vmem:[%s589 + $0x28] sm:$0xff]
      %v597 = vld [vmem:[%s589 + $0x30] sm:$0xff]
      %v598 = vld [vmem:[%s589 + $0x38] sm:$0xf]
      %v599 = vld [vmem:[%s589 + $0x3c] sm:$0xff]
      %v600 = vld [vmem:[%s589 + $0x44] sm:$0xff]
      %v601 = vld [vmem:[%s589 + $0x4c] sm:$0xf]
      %v602 = vld [vmem:[%s589 + $0x50] sm:$0xff]
      %v603 = vld [vmem:[%s589 + $0x58] sm:$0xff]
      %v604 = vld [vmem:[%s589 + $0x60] sm:$0xf]
      %v605 = vld [vmem:[%s589 + $0x64] sm:$0xff]
      %v606 = vld [vmem:[%s589 + $0x6c] sm:$0xff]
      %v607 = vld [vmem:[%s589 + $0x74] sm:$0xf]
      %v608 = vld [vmem:[%s589 + $0x78] sm:$0x77]
      %v609 = vld [vmem:[%s589 + $0x80] sm:$0x77]
      %v610 = vld [vmem:[%s589 + $0x88] sm:$0x7]
      %v632 = vunpack.c.l.b16 %v590
      %v633 = vunpack.c.h.b16 %v590
      %v634 = vunpack.c.l.b16 %v591
      %v635 = vunpack.c.h.b16 %v591
      %v636 = vunpack.c.l.b16 %v592
      %v637 = vunpack.c.l.b16 %v593
      %v638 = vunpack.c.h.b16 %v593
      %v639 = vunpack.c.l.b16 %v594
      %v640 = vunpack.c.h.b16 %v594
      %v641 = vunpack.c.l.b16 %v595
      %v642 = vunpack.c.l.b16 %v596
      %v643 = vunpack.c.h.b16 %v596
      %v644 = vunpack.c.l.b16 %v597
      %v645 = vunpack.c.h.b16 %v597
      %v646 = vunpack.c.l.b16 %v598
      %v647 = vunpack.c.l.b16 %v599
      %v648 = vunpack.c.h.b16 %v599
      %v649 = vunpack.c.l.b16 %v600
      %v650 = vunpack.c.h.b16 %v600
      %v651 = vunpack.c.l.b16 %v601
      %v652 = vunpack.c.l.b16 %v602
      %v653 = vunpack.c.h.b16 %v602
      %v654 = vunpack.c.l.b16 %v603
      %v655 = vunpack.c.h.b16 %v603
      %v656 = vunpack.c.l.b16 %v604
      %v657 = vunpack.c.l.b16 %v605
      %v658 = vunpack.c.h.b16 %v605
      %v659 = vunpack.c.l.b16 %v606
      %v660 = vunpack.c.h.b16 %v606
      %v661 = vunpack.c.l.b16 %v607
      %v662 = vunpack.c.l.b16 %v608
      %v663 = vunpack.c.h.b16 %v608
      %v664 = vunpack.c.l.b16 %v609
      %v665 = vunpack.c.h.b16 %v609
      %v666 = vunpack.c.l.b16 %v610
      %v667 = vpack.c.b16 %v637, %v632
      %v668 = vpack.c.b16 %v638, %v633
      %v669 = vpack.c.b16 %v639, %v634
      %v670 = vpack.c.b16 %v640, %v635
      %v671 = vpack.c.b16 %v641, %v636
      %v672 = vpack.c.b16 %v647, %v642
      %v673 = vpack.c.b16 %v648, %v643
      %v674 = vpack.c.b16 %v649, %v644
      %v675 = vpack.c.b16 %v650, %v645
      %v676 = vpack.c.b16 %v651, %v646
      %v677 = vpack.c.b16 %v657, %v652
      %v678 = vpack.c.b16 %v658, %v653
      %v679 = vpack.c.b16 %v659, %v654
      %v680 = vpack.c.b16 %v660, %v655
      %v681 = vpack.c.b16 %v661, %v656
      %v682 = vpack.c.b16 %v662, %v662
      %v683 = vpack.c.b16 %v663, %v663
      %v684 = vpack.c.b16 %v664, %v664
      %v685 = vpack.c.b16 %v665, %v665
      %v686 = vpack.c.b16 %v666, %v666
      %v703 = vsel %vm295, %v682, 0
      %v706 = vsel %vm295, %v683, 0
      %v709 = vsel %vm295, %v684, 0
      %v712 = vsel %vm295, %v685, 0
      %v715 = vsel %vm295, %v686, 0
      %717 = vmatpush.bf16.msra.mxu0 0
      %718 = vmatpush.bf16.msra.mxu0 0
      %719 = vmatpush.bf16.msra.mxu0 0
      %720 = vmatpush.bf16.msra.mxu0 0
      %721 = vmatpush.bf16.msra.mxu0 %v703
      %722 = vmatpush.bf16.msra.mxu0 %v677
      %723 = vmatpush.bf16.msra.mxu0 %v672
      %724 = vmatpush.bf16.msra.mxu0 %v667
      %725 = vmatmul.bf16.gmra.mxu0 %v293
      %v726 = vpop.f32.mrf.mxu0
      %v727 = vadd.f32 0.0, %v726
      %v728 = vpop.f32.mrf.mxu0
      %v729 = vadd.f32 0.0, %v728
      %730 = vdwg.mxu0
      %731 = vmatpush.bf16.msra.mxu0 0
      %732 = vmatpush.bf16.msra.mxu0 0
      %733 = vmatpush.bf16.msra.mxu0 0
      %734 = vmatpush.bf16.msra.mxu0 0
      %735 = vmatpush.bf16.msra.mxu0 %v706
      %736 = vmatpush.bf16.msra.mxu0 %v678
      %737 = vmatpush.bf16.msra.mxu0 %v673
      %738 = vmatpush.bf16.msra.mxu0 %v668
      %739 = vmatmul.bf16.gmra.mxu0 %v293
      %v740 = vpop.f32.mrf.mxu0
      %v741 = vadd.f32 0.0, %v740
      %v742 = vpop.f32.mrf.mxu0
      %v743 = vadd.f32 0.0, %v742
      %744 = vdwg.mxu0
      %745 = vmatpush.bf16.msra.mxu0 0
      %746 = vmatpush.bf16.msra.mxu0 0
      %747 = vmatpush.bf16.msra.mxu0 0
      %748 = vmatpush.bf16.msra.mxu0 0
      %749 = vmatpush.bf16.msra.mxu0 %v709
      %750 = vmatpush.bf16.msra.mxu0 %v679
      %751 = vmatpush.bf16.msra.mxu0 %v674
      %752 = vmatpush.bf16.msra.mxu0 %v669
      %753 = vmatmul.bf16.gmra.mxu0 %v293
      %v754 = vpop.f32.mrf.mxu0
      %v755 = vadd.f32 0.0, %v754
      %v756 = vpop.f32.mrf.mxu0
      %v757 = vadd.f32 0.0, %v756
      %758 = vdwg.mxu0
      %759 = vmatpush.bf16.msra.mxu0 0
      %760 = vmatpush.bf16.msra.mxu0 0
      %761 = vmatpush.bf16.msra.mxu0 0
      %762 = vmatpush.bf16.msra.mxu0 0
      %763 = vmatpush.bf16.msra.mxu0 %v712
      %764 = vmatpush.bf16.msra.mxu0 %v680
      %765 = vmatpush.bf16.msra.mxu0 %v675
      %766 = vmatpush.bf16.msra.mxu0 %v670
      %767 = vmatmul.bf16.gmra.mxu0 %v293
      %v768 = vpop.f32.mrf.mxu0
      %v769 = vadd.f32 0.0, %v768
      %v770 = vpop.f32.mrf.mxu0
      %v771 = vadd.f32 0.0, %v770
      %772 = vdwg.mxu0
      %773 = vmatpush.bf16.msra.mxu0 0
      %774 = vmatpush.bf16.msra.mxu0 0
      %775 = vmatpush.bf16.msra.mxu0 0
      %776 = vmatpush.bf16.msra.mxu0 0
      %777 = vmatpush.bf16.msra.mxu0 %v715
      %778 = vmatpush.bf16.msra.mxu0 %v681
      %779 = vmatpush.bf16.msra.mxu0 %v676
      %780 = vmatpush.bf16.msra.mxu0 %v671
      %781 = vmatmul.bf16.gmra.mxu0 %v293
      %v782 = vpop.f32.mrf.mxu0
      %v783 = vadd.f32 0.0, %v782
      %v784 = vpop.f32.mrf.mxu0
      %v785 = vadd.f32 0.0, %v784
      %786 = vdwg.mxu0
      %v787 = vmax.f32 %v579, %v727
      %v788 = vmax.f32 %v580, %v741
      %v789 = vmax.f32 %v581, %v755
      %v790 = vmax.f32 %v582, %v769
      %v791 = vmax.f32 %v583, %v783
      %v792 = vmax.f32 %v584, %v729
      %v793 = vmax.f32 %v585, %v743
      %v794 = vmax.f32 %v586, %v757
      %v795 = vmax.f32 %v587, %v771
      %v796 = vmax.f32 %v588, %v785
      %s797 = scalar_lea.vmem %s165, 420
      %v798 = vld [vmem:[%s797] sm:$0xff]
      %v799 = vld [vmem:[%s797 + $0x8] sm:$0xff]
      %v800 = vld [vmem:[%s797 + $0x10] sm:$0xf]
      %v801 = vld [vmem:[%s797 + $0x14] sm:$0xff]
      %v802 = vld [vmem:[%s797 + $0x1c] sm:$0xff]
      %v803 = vld [vmem:[%s797 + $0x24] sm:$0xf]
      %v804 = vld [vmem:[%s797 + $0x28] sm:$0xff]
      %v805 = vld [vmem:[%s797 + $0x30] sm:$0xff]
      %v806 = vld [vmem:[%s797 + $0x38] sm:$0xf]
      %v807 = vld [vmem:[%s797 + $0x3c] sm:$0xff]
      %v808 = vld [vmem:[%s797 + $0x44] sm:$0xff]
      %v809 = vld [vmem:[%s797 + $0x4c] sm:$0xf]
      %v810 = vld [vmem:[%s797 + $0x50] sm:$0xff]
      %v811 = vld [vmem:[%s797 + $0x58] sm:$0xff]
      %v812 = vld [vmem:[%s797 + $0x60] sm:$0xf]
      %v813 = vld [vmem:[%s797 + $0x64] sm:$0xff]
      %v814 = vld [vmem:[%s797 + $0x6c] sm:$0xff]
      %v815 = vld [vmem:[%s797 + $0x74] sm:$0xf]
      %v816 = vld [vmem:[%s797 + $0x78] sm:$0x77]
      %v817 = vld [vmem:[%s797 + $0x80] sm:$0x77]
      %v818 = vld [vmem:[%s797 + $0x88] sm:$0x7]
      %v840 = vunpack.c.l.b16 %v798
      %v841 = vunpack.c.h.b16 %v798
      %v842 = vunpack.c.l.b16 %v799
      %v843 = vunpack.c.h.b16 %v799
      %v844 = vunpack.c.l.b16 %v800
      %v845 = vunpack.c.l.b16 %v801
      %v846 = vunpack.c.h.b16 %v801
      %v847 = vunpack.c.l.b16 %v802
      %v848 = vunpack.c.h.b16 %v802
      %v849 = vunpack.c.l.b16 %v803
      %v850 = vunpack.c.l.b16 %v804
      %v851 = vunpack.c.h.b16 %v804
      %v852 = vunpack.c.l.b16 %v805
      %v853 = vunpack.c.h.b16 %v805
      %v854 = vunpack.c.l.b16 %v806
      %v855 = vunpack.c.l.b16 %v807
      %v856 = vunpack.c.h.b16 %v807
      %v857 = vunpack.c.l.b16 %v808
      %v858 = vunpack.c.h.b16 %v808
      %v859 = vunpack.c.l.b16 %v809
      %v860 = vunpack.c.l.b16 %v810
      %v861 = vunpack.c.h.b16 %v810
      %v862 = vunpack.c.l.b16 %v811
      %v863 = vunpack.c.h.b16 %v811
      %v864 = vunpack.c.l.b16 %v812
      %v865 = vunpack.c.l.b16 %v813
      %v866 = vunpack.c.h.b16 %v813
      %v867 = vunpack.c.l.b16 %v814
      %v868 = vunpack.c.h.b16 %v814
      %v869 = vunpack.c.l.b16 %v815
      %v870 = vunpack.c.l.b16 %v816
      %v871 = vunpack.c.h.b16 %v816
      %v872 = vunpack.c.l.b16 %v817
      %v873 = vunpack.c.h.b16 %v817
      %v874 = vunpack.c.l.b16 %v818
      %v875 = vpack.c.b16 %v845, %v840
      %v876 = vpack.c.b16 %v846, %v841
      %v877 = vpack.c.b16 %v847, %v842
      %v878 = vpack.c.b16 %v848, %v843
      %v879 = vpack.c.b16 %v849, %v844
      %v880 = vpack.c.b16 %v855, %v850
      %v881 = vpack.c.b16 %v856, %v851
      %v882 = vpack.c.b16 %v857, %v852
      %v883 = vpack.c.b16 %v858, %v853
      %v884 = vpack.c.b16 %v859, %v854
      %v885 = vpack.c.b16 %v865, %v860
      %v886 = vpack.c.b16 %v866, %v861
      %v887 = vpack.c.b16 %v867, %v862
      %v888 = vpack.c.b16 %v868, %v863
      %v889 = vpack.c.b16 %v869, %v864
      %v890 = vpack.c.b16 %v870, %v870
      %v891 = vpack.c.b16 %v871, %v871
      %v892 = vpack.c.b16 %v872, %v872
      %v893 = vpack.c.b16 %v873, %v873
      %v894 = vpack.c.b16 %v874, %v874
      %v911 = vsel %vm295, %v890, 0
      %v914 = vsel %vm295, %v891, 0
      %v917 = vsel %vm295, %v892, 0
      %v920 = vsel %vm295, %v893, 0
      %v923 = vsel %vm295, %v894, 0
      %925 = vmatpush.bf16.msra.mxu0 0
      %926 = vmatpush.bf16.msra.mxu0 0
      %927 = vmatpush.bf16.msra.mxu0 0
      %928 = vmatpush.bf16.msra.mxu0 0
      %929 = vmatpush.bf16.msra.mxu0 %v911
      %930 = vmatpush.bf16.msra.mxu0 %v885
      %931 = vmatpush.bf16.msra.mxu0 %v880
      %932 = vmatpush.bf16.msra.mxu0 %v875
      %933 = vmatmul.bf16.gmra.mxu0 %v293
      %v934 = vpop.f32.mrf.mxu0
      %v935 = vadd.f32 0.0, %v934
      %v936 = vpop.f32.mrf.mxu0
      %v937 = vadd.f32 0.0, %v936
      %938 = vdwg.mxu0
      %939 = vmatpush.bf16.msra.mxu0 0
      %940 = vmatpush.bf16.msra.mxu0 0
      %941 = vmatpush.bf16.msra.mxu0 0
      %942 = vmatpush.bf16.msra.mxu0 0
      %943 = vmatpush.bf16.msra.mxu0 %v914
      %944 = vmatpush.bf16.msra.mxu0 %v886
      %945 = vmatpush.bf16.msra.mxu0 %v881
      %946 = vmatpush.bf16.msra.mxu0 %v876
      %947 = vmatmul.bf16.gmra.mxu0 %v293
      %v948 = vpop.f32.mrf.mxu0
      %v949 = vadd.f32 0.0, %v948
      %v950 = vpop.f32.mrf.mxu0
      %v951 = vadd.f32 0.0, %v950
      %952 = vdwg.mxu0
      %953 = vmatpush.bf16.msra.mxu0 0
      %954 = vmatpush.bf16.msra.mxu0 0
      %955 = vmatpush.bf16.msra.mxu0 0
      %956 = vmatpush.bf16.msra.mxu0 0
      %957 = vmatpush.bf16.msra.mxu0 %v917
      %958 = vmatpush.bf16.msra.mxu0 %v887
      %959 = vmatpush.bf16.msra.mxu0 %v882
      %960 = vmatpush.bf16.msra.mxu0 %v877
      %961 = vmatmul.bf16.gmra.mxu0 %v293
      %v962 = vpop.f32.mrf.mxu0
      %v963 = vadd.f32 0.0, %v962
      %v964 = vpop.f32.mrf.mxu0
      %v965 = vadd.f32 0.0, %v964
      %966 = vdwg.mxu0
      %967 = vmatpush.bf16.msra.mxu0 0
      %968 = vmatpush.bf16.msra.mxu0 0
      %969 = vmatpush.bf16.msra.mxu0 0
      %970 = vmatpush.bf16.msra.mxu0 0
      %971 = vmatpush.bf16.msra.mxu0 %v920
      %972 = vmatpush.bf16.msra.mxu0 %v888
      %973 = vmatpush.bf16.msra.mxu0 %v883
      %974 = vmatpush.bf16.msra.mxu0 %v878
      %975 = vmatmul.bf16.gmra.mxu0 %v293
      %v976 = vpop.f32.mrf.mxu0
      %v977 = vadd.f32 0.0, %v976
      %v978 = vpop.f32.mrf.mxu0
      %v979 = vadd.f32 0.0, %v978
      %980 = vdwg.mxu0
      %981 = vmatpush.bf16.msra.mxu0 0
      %982 = vmatpush.bf16.msra.mxu0 0
      %983 = vmatpush.bf16.msra.mxu0 0
      %984 = vmatpush.bf16.msra.mxu0 0
      %985 = vmatpush.bf16.msra.mxu0 %v923
      %986 = vmatpush.bf16.msra.mxu0 %v889
      %987 = vmatpush.bf16.msra.mxu0 %v884
      %988 = vmatpush.bf16.msra.mxu0 %v879
      %989 = vmatmul.bf16.gmra.mxu0 %v293
      %v990 = vpop.f32.mrf.mxu0
      %v991 = vadd.f32 0.0, %v990
      %v992 = vpop.f32.mrf.mxu0
      %v993 = vadd.f32 0.0, %v992
      %994 = vdwg.mxu0
      %v995 = vmax.f32 %v787, %v935
      %v996 = vmax.f32 %v788, %v949
      %v997 = vmax.f32 %v789, %v963
      %v998 = vmax.f32 %v790, %v977
      %v999 = vmax.f32 %v791, %v991
      %v1000 = vmax.f32 %v792, %v937
      %v1001 = vmax.f32 %v793, %v951
      %v1002 = vmax.f32 %v794, %v965
      %v1003 = vmax.f32 %v795, %v979
      %v1004 = vmax.f32 %v796, %v993
      %v1005 = vld [vmem:[%s2] sm:$0xff]
      %v1006 = vld [vmem:[%s2 + $0x8] sm:$0xff]
      %1008 = vset.pattern.permute.xlu0 0
      %1009 = vperm.xlu0 %1008, %v1005
      %v1010 = vpop.permute.xlu0 %1009
      %1013 = vset.pattern.permute.xlu0 0
      %1014 = vperm.xlu0 %1013, %v1006
      %v1015 = vpop.permute.xlu0 %1014
      %v1017 = vadd.f32 %v995, %v1010
      %v1018 = vadd.f32 %v996, %v1010
      %v1019 = vadd.f32 %v997, %v1010
      %v1020 = vadd.f32 %v998, %v1010
      %v1021 = vadd.f32 %v999, %v1010
      %v1022 = vadd.f32 %v1000, %v1015
      %v1023 = vadd.f32 %v1001, %v1015
      %v1024 = vadd.f32 %v1002, %v1015
      %v1025 = vadd.f32 %v1003, %v1015
      %v1026 = vadd.f32 %v1004, %v1015
      %v1027 = vmax.f32 %v1017, 0.0
      %v1028 = vmax.f32 %v1018, 0.0
      %v1029 = vmax.f32 %v1019, 0.0
      %v1030 = vmax.f32 %v1020, 0.0
      %v1031 = vmax.f32 %v1021, 0.0
      %v1032 = vmax.f32 %v1022, 0.0
      %v1033 = vmax.f32 %v1023, 0.0
      %v1034 = vmax.f32 %v1024, 0.0
      %v1035 = vmax.f32 %v1025, 0.0
      %v1036 = vmax.f32 %v1026, 0.0
      %v1037 = vpack.c.bf16 %v1028, %v1027
      %v1038 = vpack.c.bf16 %v1030, %v1029
      %v1039 = vpack.c.bf16 %v1031, %v1031
      %v1040 = vpack.c.bf16 %v1033, %v1032
      %v1041 = vpack.c.bf16 %v1035, %v1034
      %v1042 = vpack.c.bf16 %v1036, %v1036
      %1043 = vst [vmem:[%s170] sm:$0xff] %v1037
      %1044 = vst [vmem:[%s170 + $0x8] sm:$0xff] %v1038
      %1045 = vst [vmem:[%s170 + $0x10] sm:$0xf] %v1039
      %1046 = vst [vmem:[%s170 + $0x14] sm:$0xff] %v1040
      %1047 = vst [vmem:[%s170 + $0x1c] sm:$0xff] %v1041
      %1048 = vst [vmem:[%s170 + $0x24] sm:$0xf] %v1042
      %p1049 = scmp.lt.s32.totalorder %s14, 1
      %s1050 = scalar_select %p1049, %s14, 1
      %s1051 = smul.addr %s1050, 10
      %s1052 = smul.addr %s1051, 4
      %s1053 = scalar_lea.vmem %s3, %s1052
      // Predicated region
      $region33: #{forward.4} parent=31 // pred_check
        %p1054 = pneg %p100
      $region34: #{forward.4} parent=31 // pred_check_branch
        %1056 = sbr.rel (%p1054) target = $region36
      $region35: #{forward.4} parent=31 // pred_region
        _
      $region36: #{forward.4} parent=31 // pred_fallthru
        _
    $region32: #{forward.4} parent=5 // pred_fallthru
      _
    %p1057 = scmp.le.s32.totalorder 2, %s9
    // Predicated region
    $region37: #{forward.4} parent=5 // pred_check
      %p1058 = pneg %p1057
    $region38: #{forward.4} parent=5 // pred_check_branch
      %1060 = sbr.rel (%p1058) target = $region40
    $region39: #{forward.4} parent=5 // pred_region
      %s1061 = ssub.s32 %s9, 2
      // Predicated region
      $region41: #{forward.4} parent=39 // pred_check
        %p1062 = pneg %p106
      $region42: #{forward.4} parent=39 // pred_check_branch
        %1064 = sbr.rel (%p1062) target = $region44
      $region43: #{forward.4} parent=39 // pred_region
        %p1065 = scmp.lt.s32.totalorder %s15, 1
        %s1066 = scalar_select %p1065, %s15, 1
        %s1067 = smul.addr %s1066, 10
        %s1068 = smul.addr %s1067, 4
        %s1069 = scalar_lea.vmem %s3, %s1068
      $region44: #{forward.4} parent=39 // pred_fallthru
        _
    $region40: #{forward.4} parent=5 // pred_fallthru
      _
  $region6: #{forward.4} parent=0 // loop_footer
    %s13 = sadd.s32 1, %s9
  $region7: #{forward.4} parent=0 // loop_footer_branch
    %8 = sbr.rel target = $region3
  $region8: #{forward.4} parent=0 // loop_exit
    _

// kernel: forward.5
$region0: #{forward.5}
  #allocation0 [shape = 'u32[]', space=smem, size = 0x4, offset = 0x4, fixed_abs, tag = 'smem constant byte address 0x4 - core index']
  #allocation1 [shape = 'u32[72,128]{1,0:T(1,128)}', space=vmem, size = 0x9000, scoped, tag = 'internal scratch']
  #allocation2 [shape = 'f32[2,128]{1,0:T(2,128)}', space=vmem, size = 0x400, scoped, tag = 'scratch operand']
  %s0 = inlined_call_operand.vmem [shape: bf16[2,10240], index: 0, kind: input, shape index: {}]
  %s1 = inlined_call_operand.vmem [shape: bf16[10240,128], index: 1, kind: input, shape index: {}]
  %s2 = inlined_call_operand.vmem [shape: f32[1,128], index: 2, kind: input, shape index: {}]
  %s3 = inlined_call_operand.vmem [shape: f32[128,64], index: 3, kind: input, shape index: {}]
  %s4 = inlined_call_operand.vmem [shape: f32[1,64], index: 4, kind: input, shape index: {}]
  %s5 = inlined_call_operand.vmem [shape: f32[64,4], index: 5, kind: input, shape index: {}]
  %s6 = inlined_call_operand.vmem [shape: f32[1,4], index: 6, kind: input, shape index: {}]
  %s7 = inlined_call_operand.hbm [shape: f32[2,4], index: 7, kind: output, shape index: {}]
  %s8 = sld [smem:[#allocation0]]
  $region69: #{forward.5} parent=0
    _
  %s10 = ssub.s32 1, %s8
  %s11 = scalar_select 0, %s10, %s8
  $region1: #{forward.5} parent=0
    #allocation3 [shape = 'u8[1024]{0}', space=vmem, size = 0x400, scoped, tag = 'output window, operand 0, single buffered']
    #allocation4 [shape = 's32[2]{0}', space=sflag, size = 0x8, scoped, tag = 'scoped memory for forward.5']
    %12 = vsyncpa [#allocation4], 0
    loop: start=0, step=1, limit=4
    $region2: #{forward.5} parent=1 // loop_pre_header
      _
    $region3: #{forward.5} parent=1 // loop_header
      %s14 = sphi 0, %s18
      %p15 = scmp.ge.s32.totalorder %s14, 4
      %s24 = sphi 0, %s26
      %s27 = sphi 0, %s24
      %s28 = sphi 0, %s27
      %s44 = sphi 0, %s28
      %s50 = sphi 0, %s52
      %s53 = sphi 0, %s50
      %s54 = sphi 0, %s53
      %s70 = sphi 0, %s54
      %s74 = sphi 0, %s74
      %s76 = sphi 0, %s74
      %s77 = sphi 0, %s76
      %s91 = sphi 0, %s77
      %s95 = sphi 0, %s95
      %s97 = sphi 0, %s95
      %s98 = sphi 0, %s97
      %s112 = sphi 0, %s98
      %s116 = sphi 0, %s116
      %s118 = sphi 0, %s116
      %s119 = sphi 0, %s118
      %s133 = sphi 0, %s119
      %s137 = sphi 0, %s137
      %s139 = sphi 0, %s137
      %s140 = sphi 0, %s139
      %s154 = sphi 0, %s140
      %s158 = sphi 0, %s158
      %s160 = sphi 0, %s158
      %s161 = sphi 0, %s160
      %s175 = sphi 0, %s161
      %s179 = sphi 0, %s179
      %s181 = sphi 0, %s179
      %s182 = sphi 0, %s181
      %s196 = sphi 0, %s182
    $region4: #{forward.5} parent=1 // loop_header_branch
      %17 = sbr.rel (%p15) target = $region8
    $region5: #{forward.5} parent=1 // loop_body
      %s19 = ssub.s32 %s14, 1
      %s20 = ssub.s32 %s14, 2
      %s21 = sadd.s32 %s14, 1
      %s22 = ssub.s32 %s14, %s21
      %p23 = scmp.eq.s32.totalorder %s22, 0
      %s25 = sadd.s32 %s24, 1
      %s26 = scalar_select %p23, %s24, %s25
      %p29 = pneg %p23
      %p30 = scmp.eq.s32.totalorder %s14, 1
      %p31 = por %p29, %p30
      %p32 = scmp.ne.s32.totalorder %s24, %s27
      %p33 = scmp.eq.s32.totalorder %s14, 0
      %p34 = por %p32, %p33
      %p35 = scmp.ne.s32.totalorder %s24, %s27
      %p36 = scmp.eq.s32.totalorder %s19, 1
      %p37 = por %p35, %p36
      %p38 = scmp.ne.s32.totalorder %s27, %s28
      %p39 = scmp.eq.s32.totalorder %s19, 0
      %p40 = por %p38, %p39
      %p41 = scmp.ne.s32.totalorder %s27, %s28
      %p42 = scmp.eq.s32.totalorder %s20, 1
      %p43 = por %p41, %p42
      %p45 = scmp.ne.s32.totalorder %s28, %s44
      %p46 = scmp.eq.s32.totalorder %s20, 0
      %p47 = por %p45, %p46
      %s48 = ssub.s32 %s14, %s21
      %p49 = scmp.eq.s32.totalorder %s48, 0
      %s51 = sadd.s32 %s50, 1
      %s52 = scalar_select %p49, %s50, %s51
      %p55 = pneg %p49
      %p56 = scmp.eq.s32.totalorder %s14, 1
      %p57 = por %p55, %p56
      %p58 = scmp.ne.s32.totalorder %s50, %s53
      %p59 = scmp.eq.s32.totalorder %s14, 0
      %p60 = por %p58, %p59
      %p61 = scmp.ne.s32.totalorder %s50, %s53
      %p62 = scmp.eq.s32.totalorder %s19, 1
      %p63 = por %p61, %p62
      %p64 = scmp.ne.s32.totalorder %s53, %s54
      %p65 = scmp.eq.s32.totalorder %s19, 0
      %p66 = por %p64, %p65
      %p67 = scmp.ne.s32.totalorder %s53, %s54
      %p68 = scmp.eq.s32.totalorder %s20, 1
      %p69 = por %p67, %p68
      %p71 = scmp.ne.s32.totalorder %s54, %s70
      %p72 = scmp.eq.s32.totalorder %s20, 0
      %p73 = por %p71, %p72
      %s75 = sadd.s32 %s74, 1
      %p78 = scmp.eq.s32.totalorder %s14, 1
      %p79 = scmp.ne.s32.totalorder %s74, %s76
      %p80 = scmp.eq.s32.totalorder %s14, 0
      %p81 = por %p79, %p80
      %p82 = scmp.ne.s32.totalorder %s74, %s76
      %p83 = scmp.eq.s32.totalorder %s19, 1
      %p84 = por %p82, %p83
      %p85 = scmp.ne.s32.totalorder %s76, %s77
      %p86 = scmp.eq.s32.totalorder %s19, 0
      %p87 = por %p85, %p86
      %p88 = scmp.ne.s32.totalorder %s76, %s77
      %p89 = scmp.eq.s32.totalorder %s20, 1
      %p90 = por %p88, %p89
      %p92 = scmp.ne.s32.totalorder %s77, %s91
      %p93 = scmp.eq.s32.totalorder %s20, 0
      %p94 = por %p92, %p93
      %s96 = sadd.s32 %s95, 1
      %p99 = scmp.eq.s32.totalorder %s14, 1
      %p100 = scmp.ne.s32.totalorder %s95, %s97
      %p101 = scmp.eq.s32.totalorder %s14, 0
      %p102 = por %p100, %p101
      %p103 = scmp.ne.s32.totalorder %s95, %s97
      %p104 = scmp.eq.s32.totalorder %s19, 1
      %p105 = por %p103, %p104
      %p106 = scmp.ne.s32.totalorder %s97, %s98
      %p107 = scmp.eq.s32.totalorder %s19, 0
      %p108 = por %p106, %p107
      %p109 = scmp.ne.s32.totalorder %s97, %s98
      %p110 = scmp.eq.s32.totalorder %s20, 1
      %p111 = por %p109, %p110
      %p113 = scmp.ne.s32.totalorder %s98, %s112
      %p114 = scmp.eq.s32.totalorder %s20, 0
      %p115 = por %p113, %p114
      %s117 = sadd.s32 %s116, 1
      %p120 = scmp.eq.s32.totalorder %s14, 1
      %p121 = scmp.ne.s32.totalorder %s116, %s118
      %p122 = scmp.eq.s32.totalorder %s14, 0
      %p123 = por %p121, %p122
      %p124 = scmp.ne.s32.totalorder %s116, %s118
      %p125 = scmp.eq.s32.totalorder %s19, 1
      %p126 = por %p124, %p125
      %p127 = scmp.ne.s32.totalorder %s118, %s119
      %p128 = scmp.eq.s32.totalorder %s19, 0
      %p129 = por %p127, %p128
      %p130 = scmp.ne.s32.totalorder %s118, %s119
      %p131 = scmp.eq.s32.totalorder %s20, 1
      %p132 = por %p130, %p131
      %p134 = scmp.ne.s32.totalorder %s119, %s133
      %p135 = scmp.eq.s32.totalorder %s20, 0
      %p136 = por %p134, %p135
      %s138 = sadd.s32 %s137, 1
      %p141 = scmp.eq.s32.totalorder %s14, 1
      %p142 = scmp.ne.s32.totalorder %s137, %s139
      %p143 = scmp.eq.s32.totalorder %s14, 0
      %p144 = por %p142, %p143
      %p145 = scmp.ne.s32.totalorder %s137, %s139
      %p146 = scmp.eq.s32.totalorder %s19, 1
      %p147 = por %p145, %p146
      %p148 = scmp.ne.s32.totalorder %s139, %s140
      %p149 = scmp.eq.s32.totalorder %s19, 0
      %p150 = por %p148, %p149
      %p151 = scmp.ne.s32.totalorder %s139, %s140
      %p152 = scmp.eq.s32.totalorder %s20, 1
      %p153 = por %p151, %p152
      %p155 = scmp.ne.s32.totalorder %s140, %s154
      %p156 = scmp.eq.s32.totalorder %s20, 0
      %p157 = por %p155, %p156
      %s159 = sadd.s32 %s158, 1
      %p162 = scmp.eq.s32.totalorder %s14, 1
      %p163 = scmp.ne.s32.totalorder %s158, %s160
      %p164 = scmp.eq.s32.totalorder %s14, 0
      %p165 = por %p163, %p164
      %p166 = scmp.ne.s32.totalorder %s158, %s160
      %p167 = scmp.eq.s32.totalorder %s19, 1
      %p168 = por %p166, %p167
      %p169 = scmp.ne.s32.totalorder %s160, %s161
      %p170 = scmp.eq.s32.totalorder %s19, 0
      %p171 = por %p169, %p170
      %p172 = scmp.ne.s32.totalorder %s160, %s161
      %p173 = scmp.eq.s32.totalorder %s20, 1
      %p174 = por %p172, %p173
      %p176 = scmp.ne.s32.totalorder %s161, %s175
      %p177 = scmp.eq.s32.totalorder %s20, 0
      %p178 = por %p176, %p177
      %s180 = sadd.s32 %s179, 1
      %p183 = scmp.eq.s32.totalorder %s14, 1
      %p184 = scmp.ne.s32.totalorder %s179, %s181
      %p185 = scmp.eq.s32.totalorder %s14, 0
      %p186 = por %p184, %p185
      %p187 = scmp.ne.s32.totalorder %s179, %s181
      %p188 = scmp.eq.s32.totalorder %s19, 1
      %p189 = por %p187, %p188
      %p190 = scmp.ne.s32.totalorder %s181, %s182
      %p191 = scmp.eq.s32.totalorder %s19, 0
      %p192 = por %p190, %p191
      %p193 = scmp.ne.s32.totalorder %s181, %s182
      %p194 = scmp.eq.s32.totalorder %s20, 1
      %p195 = por %p193, %p194
      %p197 = scmp.ne.s32.totalorder %s182, %s196
      %p198 = scmp.eq.s32.totalorder %s20, 0
      %p199 = por %p197, %p198
      %p200 = scmp.le.s32.totalorder 1, %s14
      %p201 = scmp.lt.s32.totalorder %s14, 3
      %p202 = pnand %p200, %p201
      %p203 = pneg %p202
      // Predicated region
      $region9: #{forward.5} parent=5 // pred_check
        _
      $region10: #{forward.5} parent=5 // pred_check_branch
        %205 = sbr.rel (%p202) target = $region12
      $region11: #{forward.5} parent=5 // pred_region
        %s206 = ssub.s32 %s14, 1
        // Predicated region
        $region13: #{forward.5} parent=11 // pred_check
          %p207 = pneg %p87
        $region14: #{forward.5} parent=11 // pred_check_branch
          %209 = sbr.rel (%p207) target = $region16
        $region15: #{forward.5} parent=11 // pred_region
          _
        $region16: #{forward.5} parent=11 // pred_fallthru
          _
        // Predicated region
        $region17: #{forward.5} parent=11 // pred_check
          %p210 = pneg %p108
        $region18: #{forward.5} parent=11 // pred_check_branch
          %212 = sbr.rel (%p210) target = $region20
        $region19: #{forward.5} parent=11 // pred_region
          _
        $region20: #{forward.5} parent=11 // pred_fallthru
          _
        // Predicated region
        $region21: #{forward.5} parent=11 // pred_check
          %p213 = pneg %p129
        $region22: #{forward.5} parent=11 // pred_check_branch
          %215 = sbr.rel (%p213) target = $region24
        $region23: #{forward.5} parent=11 // pred_region
          _
        $region24: #{forward.5} parent=11 // pred_fallthru
          _
        // Predicated region
        $region25: #{forward.5} parent=11 // pred_check
          %p216 = pneg %p150
        $region26: #{forward.5} parent=11 // pred_check_branch
          %218 = sbr.rel (%p216) target = $region28
        $region27: #{forward.5} parent=11 // pred_region
          _
        $region28: #{forward.5} parent=11 // pred_fallthru
          _
        // Predicated region
        $region29: #{forward.5} parent=11 // pred_check
          %p219 = pneg %p171
        $region30: #{forward.5} parent=11 // pred_check_branch
          %221 = sbr.rel (%p219) target = $region32
        $region31: #{forward.5} parent=11 // pred_region
          _
        $region32: #{forward.5} parent=11 // pred_fallthru
          _
      $region12: #{forward.5} parent=5 // pred_fallthru
        _
      %p222 = scmp.lt.s32.totalorder %s14, 2
      // Predicated region
      $region33: #{forward.5} parent=5 // pred_check
        %p223 = pneg %p222
      $region34: #{forward.5} parent=5 // pred_check_branch
        %225 = sbr.rel (%p223) target = $region36
      $region35: #{forward.5} parent=5 // pred_region
        // Predicated region
        $region37: #{forward.5} parent=35 // pred_check
          %p226 = pneg %p34
        $region38: #{forward.5} parent=35 // pred_check_branch
          %228 = sbr.rel (%p226) target = $region40
        $region39: #{forward.5} parent=35 // pred_region
          %s229 = smul.u32 40, %s14
          %p230 = scmp.lt.s32.totalorder %s229, 79
          %s231 = scalar_select %p230, %s229, 79
          %s232 = scalar_lea.vmem %s0, %s231
          %s233 = smul.u32 40, %s14
        $region40: #{forward.5} parent=35 // pred_fallthru
          _
        // Predicated region
        $region41: #{forward.5} parent=35 // pred_check
          %p234 = pneg %p60
        $region42: #{forward.5} parent=35 // pred_check_branch
          %236 = sbr.rel (%p234) target = $region44
        $region43: #{forward.5} parent=35 // pred_region
          %s237 = smul.u32 640, %s14
          %p238 = scmp.lt.s32.totalorder %s237, 1279
          %s239 = scalar_select %p238, %s237, 1279
          %s240 = smul.addr %s239, 4
          %s241 = scalar_lea.vmem %s1, %s240
          %s242 = smul.u32 640, %s14
        $region44: #{forward.5} parent=35 // pred_fallthru
          _
      $region36: #{forward.5} parent=5 // pred_fallthru
        _
      %p243 = scmp.le.s32.totalorder 1, %s14
      %p244 = scmp.lt.s32.totalorder %s14, 3
      %p245 = pnand %p243, %p244
      %p246 = pneg %p245
      // Predicated region
      $region45: #{forward.5} parent=5 // pred_check
        _
      $region46: #{forward.5} parent=5 // pred_check_branch
        %248 = sbr.rel (%p245) target = $region48
      $region47: #{forward.5} parent=5 // pred_region
        %s249 = ssub.s32 %s14, 1
        %s250 = smul.u32 40, %s19
        %p251 = scmp.lt.s32.totalorder %s250, 79
        %s252 = scalar_select %p251, %s250, 79
        %s253 = scalar_lea.vmem %s0, %s252
        %p254 = pneg %p40
        %p255 = pneg %p37
        %s256 = smul.u32 640, %s19
        %p257 = scmp.lt.s32.totalorder %s256, 1279
        %s258 = scalar_select %p257, %s256, 1279
        %s259 = smul.addr %s258, 4
        %s260 = scalar_lea.vmem %s1, %s259
        %p261 = pneg %p66
        %p262 = pneg %p63
        %p263 = pneg %p87
        %p264 = pneg %p84
        %p265 = pneg %p108
        %p266 = pneg %p105
        %p267 = pneg %p129
        %p268 = pneg %p126
        %p269 = pneg %p150
        %p270 = pneg %p147
        %p271 = pneg %p171
        %p272 = pneg %p168
        %p273 = pneg %p192
        %p274 = pneg %p189
        %s275 = smul.u32 40, %s19
        %p276 = scmp.lt.s32.totalorder %s275, 79
        %s277 = scalar_select %p276, %s275, 79
        %s278 = scalar_lea.vmem %s0, %s277
        %s279 = smul.u32 40, %s19
        %s280 = smul.u32 640, %s19
        %p281 = scmp.lt.s32.totalorder %s280, 1279
        %s282 = scalar_select %p281, %s280, 1279
        %s283 = smul.addr %s282, 4
        %s284 = scalar_lea.vmem %s1, %s283
        %s285 = smul.u32 640, %s19
        %p286 = scmp.eq.s32.totalorder %s19, 0
        // Predicated region
        $region49: #{forward.5} parent=47 // pred_check
          %p287 = pneg %p286
        $region50: #{forward.5} parent=47 // pred_check_branch
          %289 = sbr.rel (%p287) target = $region52
        $region51: #{forward.5} parent=47 // pred_region
          %290 = vst [vmem:[#allocation2] sm:$0x3] 0.0
        $region52: #{forward.5} parent=47 // pred_fallthru
          _
        %v291 = vld [vmem:[#allocation2] sm:$0x3]
        %v292 = vld [vmem:[%s278] sm:$0xff]
        %v293 = vld [vmem:[%s278 + $0x8] sm:$0xff]
        %v294 = vld [vmem:[%s278 + $0x10] sm:$0xff]
        %v295 = vld [vmem:[%s278 + $0x18] sm:$0xff]
        %v296 = vld [vmem:[%s278 + $0x20] sm:$0xff]
        %v297 = vld [vmem:[%s284] sm:$0xf]
        %v298 = vld [vmem:[%s284 + $0x4] sm:$0xf]
        %v299 = vld [vmem:[%s284 + $0x8] sm:$0xf]
        %v300 = vld [vmem:[%s284 + $0xc] sm:$0xf]
        %v301 = vld [vmem:[%s284 + $0x10] sm:$0xf]
        %v302 = vld [vmem:[%s284 + $0x14] sm:$0xf]
        %v303 = vld [vmem:[%s284 + $0x18] sm:$0xf]
        %v304 = vld [vmem:[%s284 + $0x1c] sm:$0xf]
        %v305 = vld [vmem:[%s284 + $0x20] sm:$0xf]
        %v306 = vld [vmem:[%s284 + $0x24] sm:$0xf]
        %v307 = vld [vmem:[%s284 + $0x28] sm:$0xf]
        %v308 = vld [vmem:[%s284 + $0x2c] sm:$0xf]
        %v309 = vld [vmem:[%s284 + $0x30] sm:$0xf]
        %v310 = vld [vmem:[%s284 + $0x34] sm:$0xf]
        %v311 = vld [vmem:[%s284 + $0x38] sm:$0xf]
        %v312 = vld [vmem:[%s284 + $0x3c] sm:$0xf]
        %v313 = vld [vmem:[%s284 + $0x40] sm:$0xf]
        %v314 = vld [vmem:[%s284 + $0x44] sm:$0xf]
        %v315 = vld [vmem:[%s284 + $0x48] sm:$0xf]
        %v316 = vld [vmem:[%s284 + $0x4c] sm:$0xf]
        %v317 = vld [vmem:[%s284 + $0x50] sm:$0xf]
        %v318 = vld [vmem:[%s284 + $0x54] sm:$0xf]
        %v319 = vld [vmem:[%s284 + $0x58] sm:$0xf]
        %v320 = vld [vmem:[%s284 + $0x5c] sm:$0xf]
        %v321 = vld [vmem:[%s284 + $0x60] sm:$0xf]
        %v322 = vld [vmem:[%s284 + $0x64] sm:$0xf]
        %v323 = vld [vmem:[%s284 + $0x68] sm:$0xf]
        %v324 = vld [vmem:[%s284 + $0x6c] sm:$0xf]
        %v325 = vld [vmem:[%s284 + $0x70] sm:$0xf]
        %v326 = vld [vmem:[%s284 + $0x74] sm:$0xf]
        %v327 = vld [vmem:[%s284 + $0x78] sm:$0xf]
        %v328 = vld [vmem:[%s284 + $0x7c] sm:$0xf]
        %v329 = vld [vmem:[%s284 + $0x80] sm:$0xf]
        %v330 = vld [vmem:[%s284 + $0x84] sm:$0xf]
        %v331 = vld [vmem:[%s284 + $0x88] sm:$0xf]
        %v332 = vld [vmem:[%s284 + $0x8c] sm:$0xf]
        %v333 = vld [vmem:[%s284 + $0x90] sm:$0xf]
        %v334 = vld [vmem:[%s284 + $0x94] sm:$0xf]
        %v335 = vld [vmem:[%s284 + $0x98] sm:$0xf]
        %v336 = vld [vmem:[%s284 + $0x9c] sm:$0xf]
        %v337 = vld [vmem:[%s284 + $0xa0] sm:$0xf]
        %v338 = vld [vmem:[%s284 + $0xa4] sm:$0xf]
        %v339 = vld [vmem:[%s284 + $0xa8] sm:$0xf]
        %v340 = vld [vmem:[%s284 + $0xac] sm:$0xf]
        %v341 = vld [vmem:[%s284 + $0xb0] sm:$0xf]
        %v342 = vld [vmem:[%s284 + $0xb4] sm:$0xf]
        %v343 = vld [vmem:[%s284 + $0xb8] sm:$0xf]
        %v344 = vld [vmem:[%s284 + $0xbc] sm:$0xf]
        %v345 = vld [vmem:[%s284 + $0xc0] sm:$0xf]
        %v346 = vld [vmem:[%s284 + $0xc4] sm:$0xf]
        %v347 = vld [vmem:[%s284 + $0xc8] sm:$0xf]
        %v348 = vld [vmem:[%s284 + $0xcc] sm:$0xf]
        %v349 = vld [vmem:[%s284 + $0xd0] sm:$0xf]
        %v350 = vld [vmem:[%s284 + $0xd4] sm:$0xf]
        %v351 = vld [vmem:[%s284 + $0xd8] sm:$0xf]
        %v352 = vld [vmem:[%s284 + $0xdc] sm:$0xf]
        %v353 = vld [vmem:[%s284 + $0xe0] sm:$0xf]
        %v354 = vld [vmem:[%s284 + $0xe4] sm:$0xf]
        %v355 = vld [vmem:[%s284 + $0xe8] sm:$0xf]
        %v356 = vld [vmem:[%s284 + $0xec] sm:$0xf]
        %v357 = vld [vmem:[%s284 + $0xf0] sm:$0xf]
        %v358 = vld [vmem:[%s284 + $0xf4] sm:$0xf]
        %v359 = vld [vmem:[%s284 + $0xf8] sm:$0xf]
        %v360 = vld [vmem:[%s284 + $0xfc] sm:$0xf]
        %v361 = vld [vmem:[%s284 + $0x100] sm:$0xf]
        %v362 = vld [vmem:[%s284 + $0x104] sm:$0xf]
        %v363 = vld [vmem:[%s284 + $0x108] sm:$0xf]
        %v364 = vld [vmem:[%s284 + $0x10c] sm:$0xf]
        %v365 = vld [vmem:[%s284 + $0x110] sm:$0xf]
        %v366 = vld [vmem:[%s284 + $0x114] sm:$0xf]
        %v367 = vld [vmem:[%s284 + $0x118] sm:$0xf]
        %v368 = vld [vmem:[%s284 + $0x11c] sm:$0xf]
        %v369 = vld [vmem:[%s284 + $0x120] sm:$0xf]
        %v370 = vld [vmem:[%s284 + $0x124] sm:$0xf]
        %v371 = vld [vmem:[%s284 + $0x128] sm:$0xf]
        %v372 = vld [vmem:[%s284 + $0x12c] sm:$0xf]
        %v373 = vld [vmem:[%s284 + $0x130] sm:$0xf]
        %v374 = vld [vmem:[%s284 + $0x134] sm:$0xf]
        %v375 = vld [vmem:[%s284 + $0x138] sm:$0xf]
        %v376 = vld [vmem:[%s284 + $0x13c] sm:$0xf]
        %v377 = vld [vmem:[%s284 + $0x140] sm:$0xf]
        %v378 = vld [vmem:[%s284 + $0x144] sm:$0xf]
        %v379 = vld [vmem:[%s284 + $0x148] sm:$0xf]
        %v380 = vld [vmem:[%s284 + $0x14c] sm:$0xf]
        %v381 = vld [vmem:[%s284 + $0x150] sm:$0xf]
        %v382 = vld [vmem:[%s284 + $0x154] sm:$0xf]
        %v383 = vld [vmem:[%s284 + $0x158] sm:$0xf]
        %v384 = vld [vmem:[%s284 + $0x15c] sm:$0xf]
        %v385 = vld [vmem:[%s284 + $0x160] sm:$0xf]
        %v386 = vld [vmem:[%s284 + $0x164] sm:$0xf]
        %v387 = vld [vmem:[%s284 + $0x168] sm:$0xf]
        %v388 = vld [vmem:[%s284 + $0x16c] sm:$0xf]
        %v389 = vld [vmem:[%s284 + $0x170] sm:$0xf]
        %v390 = vld [vmem:[%s284 + $0x174] sm:$0xf]
        %v391 = vld [vmem:[%s284 + $0x178] sm:$0xf]
        %v392 = vld [vmem:[%s284 + $0x17c] sm:$0xf]
        %v393 = vld [vmem:[%s284 + $0x180] sm:$0xf]
        %v394 = vld [vmem:[%s284 + $0x184] sm:$0xf]
        %v395 = vld [vmem:[%s284 + $0x188] sm:$0xf]
        %v396 = vld [vmem:[%s284 + $0x18c] sm:$0xf]
        %v397 = vld [vmem:[%s284 + $0x190] sm:$0xf]
        %v398 = vld [vmem:[%s284 + $0x194] sm:$0xf]
        %v399 = vld [vmem:[%s284 + $0x198] sm:$0xf]
        %v400 = vld [vmem:[%s284 + $0x19c] sm:$0xf]
        %v401 = vld [vmem:[%s284 + $0x1a0] sm:$0xf]
        %v402 = vld [vmem:[%s284 + $0x1a4] sm:$0xf]
        %v403 = vld [vmem:[%s284 + $0x1a8] sm:$0xf]
        %v404 = vld [vmem:[%s284 + $0x1ac] sm:$0xf]
        %v405 = vld [vmem:[%s284 + $0x1b0] sm:$0xf]
        %v406 = vld [vmem:[%s284 + $0x1b4] sm:$0xf]
        %v407 = vld [vmem:[%s284 + $0x1b8] sm:$0xf]
        %v408 = vld [vmem:[%s284 + $0x1bc] sm:$0xf]
        %v409 = vld [vmem:[%s284 + $0x1c0] sm:$0xf]
        %v410 = vld [vmem:[%s284 + $0x1c4] sm:$0xf]
        %v411 = vld [vmem:[%s284 + $0x1c8] sm:$0xf]
        %v412 = vld [vmem:[%s284 + $0x1cc] sm:$0xf]
        %v413 = vld [vmem:[%s284 + $0x1d0] sm:$0xf]
        %v414 = vld [vmem:[%s284 + $0x1d4] sm:$0xf]
        %v415 = vld [vmem:[%s284 + $0x1d8] sm:$0xf]
        %v416 = vld [vmem:[%s284 + $0x1dc] sm:$0xf]
        %v417 = vld [vmem:[%s284 + $0x1e0] sm:$0xf]
        %v418 = vld [vmem:[%s284 + $0x1e4] sm:$0xf]
        %v419 = vld [vmem:[%s284 + $0x1e8] sm:$0xf]
        %v420 = vld [vmem:[%s284 + $0x1ec] sm:$0xf]
        %v421 = vld [vmem:[%s284 + $0x1f0] sm:$0xf]
        %v422 = vld [vmem:[%s284 + $0x1f4] sm:$0xf]
        %v423 = vld [vmem:[%s284 + $0x1f8] sm:$0xf]
        %v424 = vld [vmem:[%s284 + $0x1fc] sm:$0xf]
        %v425 = vld [vmem:[%s284 + $0x200] sm:$0xf]
        %v426 = vld [vmem:[%s284 + $0x204] sm:$0xf]
        %v427 = vld [vmem:[%s284 + $0x208] sm:$0xf]
        %v428 = vld [vmem:[%s284 + $0x20c] sm:$0xf]
        %v429 = vld [vmem:[%s284 + $0x210] sm:$0xf]
        %v430 = vld [vmem:[%s284 + $0x214] sm:$0xf]
        %v431 = vld [vmem:[%s284 + $0x218] sm:$0xf]
        %v432 = vld [vmem:[%s284 + $0x21c] sm:$0xf]
        %v433 = vld [vmem:[%s284 + $0x220] sm:$0xf]
        %v434 = vld [vmem:[%s284 + $0x224] sm:$0xf]
        %v435 = vld [vmem:[%s284 + $0x228] sm:$0xf]
        %v436 = vld [vmem:[%s284 + $0x22c] sm:$0xf]
        %v437 = vld [vmem:[%s284 + $0x230] sm:$0xf]
        %v438 = vld [vmem:[%s284 + $0x234] sm:$0xf]
        %v439 = vld [vmem:[%s284 + $0x238] sm:$0xf]
        %v440 = vld [vmem:[%s284 + $0x23c] sm:$0xf]
        %v441 = vld [vmem:[%s284 + $0x240] sm:$0xf]
        %v442 = vld [vmem:[%s284 + $0x244] sm:$0xf]
        %v443 = vld [vmem:[%s284 + $0x248] sm:$0xf]
        %v444 = vld [vmem:[%s284 + $0x24c] sm:$0xf]
        %v445 = vld [vmem:[%s284 + $0x250] sm:$0xf]
        %v446 = vld [vmem:[%s284 + $0x254] sm:$0xf]
        %v447 = vld [vmem:[%s284 + $0x258] sm:$0xf]
        %v448 = vld [vmem:[%s284 + $0x25c] sm:$0xf]
        %v449 = vld [vmem:[%s284 + $0x260] sm:$0xf]
        %v450 = vld [vmem:[%s284 + $0x264] sm:$0xf]
        %v451 = vld [vmem:[%s284 + $0x268] sm:$0xf]
        %v452 = vld [vmem:[%s284 + $0x26c] sm:$0xf]
        %v453 = vld [vmem:[%s284 + $0x270] sm:$0xf]
        %v454 = vld [vmem:[%s284 + $0x274] sm:$0xf]
        %v455 = vld [vmem:[%s284 + $0x278] sm:$0xf]
        %v456 = vld [vmem:[%s284 + $0x27c] sm:$0xf]
        %v457 = vld [vmem:[%s284 + $0x280] sm:$0xf]
        %v458 = vld [vmem:[%s284 + $0x284] sm:$0xf]
        %v459 = vld [vmem:[%s284 + $0x288] sm:$0xf]
        %v460 = vld [vmem:[%s284 + $0x28c] sm:$0xf]
        %v461 = vld [vmem:[%s284 + $0x290] sm:$0xf]
        %v462 = vld [vmem:[%s284 + $0x294] sm:$0xf]
        %v463 = vld [vmem:[%s284 + $0x298] sm:$0xf]
        %v464 = vld [vmem:[%s284 + $0x29c] sm:$0xf]
        %v465 = vld [vmem:[%s284 + $0x2a0] sm:$0xf]
        %v466 = vld [vmem:[%s284 + $0x2a4] sm:$0xf]
        %v467 = vld [vmem:[%s284 + $0x2a8] sm:$0xf]
        %v468 = vld [vmem:[%s284 + $0x2ac] sm:$0xf]
        %v469 = vld [vmem:[%s284 + $0x2b0] sm:$0xf]
        %v470 = vld [vmem:[%s284 + $0x2b4] sm:$0xf]
        %v471 = vld [vmem:[%s284 + $0x2b8] sm:$0xf]
        %v472 = vld [vmem:[%s284 + $0x2bc] sm:$0xf]
        %v473 = vld [vmem:[%s284 + $0x2c0] sm:$0xf]
        %v474 = vld [vmem:[%s284 + $0x2c4] sm:$0xf]
        %v475 = vld [vmem:[%s284 + $0x2c8] sm:$0xf]
        %v476 = vld [vmem:[%s284 + $0x2cc] sm:$0xf]
        %v477 = vld [vmem:[%s284 + $0x2d0] sm:$0xf]
        %v478 = vld [vmem:[%s284 + $0x2d4] sm:$0xf]
        %v479 = vld [vmem:[%s284 + $0x2d8] sm:$0xf]
        %v480 = vld [vmem:[%s284 + $0x2dc] sm:$0xf]
        %v481 = vld [vmem:[%s284 + $0x2e0] sm:$0xf]
        %v482 = vld [vmem:[%s284 + $0x2e4] sm:$0xf]
        %v483 = vld [vmem:[%s284 + $0x2e8] sm:$0xf]
        %v484 = vld [vmem:[%s284 + $0x2ec] sm:$0xf]
        %v485 = vld [vmem:[%s284 + $0x2f0] sm:$0xf]
        %v486 = vld [vmem:[%s284 + $0x2f4] sm:$0xf]
        %v487 = vld [vmem:[%s284 + $0x2f8] sm:$0xf]
        %v488 = vld [vmem:[%s284 + $0x2fc] sm:$0xf]
        %v489 = vld [vmem:[%s284 + $0x300] sm:$0xf]
        %v490 = vld [vmem:[%s284 + $0x304] sm:$0xf]
        %v491 = vld [vmem:[%s284 + $0x308] sm:$0xf]
        %v492 = vld [vmem:[%s284 + $0x30c] sm:$0xf]
        %v493 = vld [vmem:[%s284 + $0x310] sm:$0xf]
        %v494 = vld [vmem:[%s284 + $0x314] sm:$0xf]
        %v495 = vld [vmem:[%s284 + $0x318] sm:$0xf]
        %v496 = vld [vmem:[%s284 + $0x31c] sm:$0xf]
        %v497 = vld [vmem:[%s284 + $0x320] sm:$0xf]
        %v498 = vld [vmem:[%s284 + $0x324] sm:$0xf]
        %v499 = vld [vmem:[%s284 + $0x328] sm:$0xf]
        %v500 = vld [vmem:[%s284 + $0x32c] sm:$0xf]
        %v501 = vld [vmem:[%s284 + $0x330] sm:$0xf]
        %v502 = vld [vmem:[%s284 + $0x334] sm:$0xf]
        %v503 = vld [vmem:[%s284 + $0x338] sm:$0xf]
        %v504 = vld [vmem:[%s284 + $0x33c] sm:$0xf]
        %v505 = vld [vmem:[%s284 + $0x340] sm:$0xf]
        %v506 = vld [vmem:[%s284 + $0x344] sm:$0xf]
        %v507 = vld [vmem:[%s284 + $0x348] sm:$0xf]
        %v508 = vld [vmem:[%s284 + $0x34c] sm:$0xf]
        %v509 = vld [vmem:[%s284 + $0x350] sm:$0xf]
        %v510 = vld [vmem:[%s284 + $0x354] sm:$0xf]
        %v511 = vld [vmem:[%s284 + $0x358] sm:$0xf]
        %v512 = vld [vmem:[%s284 + $0x35c] sm:$0xf]
        %v513 = vld [vmem:[%s284 + $0x360] sm:$0xf]
        %v514 = vld [vmem:[%s284 + $0x364] sm:$0xf]
        %v515 = vld [vmem:[%s284 + $0x368] sm:$0xf]
        %v516 = vld [vmem:[%s284 + $0x36c] sm:$0xf]
        %v517 = vld [vmem:[%s284 + $0x370] sm:$0xf]
        %v518 = vld [vmem:[%s284 + $0x374] sm:$0xf]
        %v519 = vld [vmem:[%s284 + $0x378] sm:$0xf]
        %v520 = vld [vmem:[%s284 + $0x37c] sm:$0xf]
        %v521 = vld [vmem:[%s284 + $0x380] sm:$0xf]
        %v522 = vld [vmem:[%s284 + $0x384] sm:$0xf]
        %v523 = vld [vmem:[%s284 + $0x388] sm:$0xf]
        %v524 = vld [vmem:[%s284 + $0x38c] sm:$0xf]
        %v525 = vld [vmem:[%s284 + $0x390] sm:$0xf]
        %v526 = vld [vmem:[%s284 + $0x394] sm:$0xf]
        %v527 = vld [vmem:[%s284 + $0x398] sm:$0xf]
        %v528 = vld [vmem:[%s284 + $0x39c] sm:$0xf]
        %v529 = vld [vmem:[%s284 + $0x3a0] sm:$0xf]
        %v530 = vld [vmem:[%s284 + $0x3a4] sm:$0xf]
        %v531 = vld [vmem:[%s284 + $0x3a8] sm:$0xf]
        %v532 = vld [vmem:[%s284 + $0x3ac] sm:$0xf]
        %v533 = vld [vmem:[%s284 + $0x3b0] sm:$0xf]
        %v534 = vld [vmem:[%s284 + $0x3b4] sm:$0xf]
        %v535 = vld [vmem:[%s284 + $0x3b8] sm:$0xf]
        %v536 = vld [vmem:[%s284 + $0x3bc] sm:$0xf]
        %v537 = vld [vmem:[%s284 + $0x3c0] sm:$0xf]
        %v538 = vld [vmem:[%s284 + $0x3c4] sm:$0xf]
        %v539 = vld [vmem:[%s284 + $0x3c8] sm:$0xf]
        %v540 = vld [vmem:[%s284 + $0x3cc] sm:$0xf]
        %v541 = vld [vmem:[%s284 + $0x3d0] sm:$0xf]
        %v542 = vld [vmem:[%s284 + $0x3d4] sm:$0xf]
        %v543 = vld [vmem:[%s284 + $0x3d8] sm:$0xf]
        %v544 = vld [vmem:[%s284 + $0x3dc] sm:$0xf]
        %v545 = vld [vmem:[%s284 + $0x3e0] sm:$0xf]
        %v546 = vld [vmem:[%s284 + $0x3e4] sm:$0xf]
        %v547 = vld [vmem:[%s284 + $0x3e8] sm:$0xf]
        %v548 = vld [vmem:[%s284 + $0x3ec] sm:$0xf]
        %v549 = vld [vmem:[%s284 + $0x3f0] sm:$0xf]
        %v550 = vld [vmem:[%s284 + $0x3f4] sm:$0xf]
        %v551 = vld [vmem:[%s284 + $0x3f8] sm:$0xf]
        %v552 = vld [vmem:[%s284 + $0x3fc] sm:$0xf]
        %v553 = vld [vmem:[%s284 + $0x400] sm:$0xf]
        %v554 = vld [vmem:[%s284 + $0x404] sm:$0xf]
        %v555 = vld [vmem:[%s284 + $0x408] sm:$0xf]
        %v556 = vld [vmem:[%s284 + $0x40c] sm:$0xf]
        %v557 = vld [vmem:[%s284 + $0x410] sm:$0xf]
        %v558 = vld [vmem:[%s284 + $0x414] sm:$0xf]
        %v559 = vld [vmem:[%s284 + $0x418] sm:$0xf]
        %v560 = vld [vmem:[%s284 + $0x41c] sm:$0xf]
        %v561 = vld [vmem:[%s284 + $0x420] sm:$0xf]
        %v562 = vld [vmem:[%s284 + $0x424] sm:$0xf]
        %v563 = vld [vmem:[%s284 + $0x428] sm:$0xf]
        %v564 = vld [vmem:[%s284 + $0x42c] sm:$0xf]
        %v565 = vld [vmem:[%s284 + $0x430] sm:$0xf]
        %v566 = vld [vmem:[%s284 + $0x434] sm:$0xf]
        %v567 = vld [vmem:[%s284 + $0x438] sm:$0xf]
        %v568 = vld [vmem:[%s284 + $0x43c] sm:$0xf]
        %v569 = vld [vmem:[%s284 + $0x440] sm:$0xf]
        %v570 = vld [vmem:[%s284 + $0x444] sm:$0xf]
        %v571 = vld [vmem:[%s284 + $0x448] sm:$0xf]
        %v572 = vld [vmem:[%s284 + $0x44c] sm:$0xf]
        %v573 = vld [vmem:[%s284 + $0x450] sm:$0xf]
        %v574 = vld [vmem:[%s284 + $0x454] sm:$0xf]
        %v575 = vld [vmem:[%s284 + $0x458] sm:$0xf]
        %v576 = vld [vmem:[%s284 + $0x45c] sm:$0xf]
        %v577 = vld [vmem:[%s284 + $0x460] sm:$0xf]
        %v578 = vld [vmem:[%s284 + $0x464] sm:$0xf]
        %v579 = vld [vmem:[%s284 + $0x468] sm:$0xf]
        %v580 = vld [vmem:[%s284 + $0x46c] sm:$0xf]
        %v581 = vld [vmem:[%s284 + $0x470] sm:$0xf]
        %v582 = vld [vmem:[%s284 + $0x474] sm:$0xf]
        %v583 = vld [vmem:[%s284 + $0x478] sm:$0xf]
        %v584 = vld [vmem:[%s284 + $0x47c] sm:$0xf]
        %v585 = vld [vmem:[%s284 + $0x480] sm:$0xf]
        %v586 = vld [vmem:[%s284 + $0x484] sm:$0xf]
        %v587 = vld [vmem:[%s284 + $0x488] sm:$0xf]
        %v588 = vld [vmem:[%s284 + $0x48c] sm:$0xf]
        %v589 = vld [vmem:[%s284 + $0x490] sm:$0xf]
        %v590 = vld [vmem:[%s284 + $0x494] sm:$0xf]
        %v591 = vld [vmem:[%s284 + $0x498] sm:$0xf]
        %v592 = vld [vmem:[%s284 + $0x49c] sm:$0xf]
        %v593 = vld [vmem:[%s284 + $0x4a0] sm:$0xf]
        %v594 = vld [vmem:[%s284 + $0x4a4] sm:$0xf]
        %v595 = vld [vmem:[%s284 + $0x4a8] sm:$0xf]
        %v596 = vld [vmem:[%s284 + $0x4ac] sm:$0xf]
        %v597 = vld [vmem:[%s284 + $0x4b0] sm:$0xf]
        %v598 = vld [vmem:[%s284 + $0x4b4] sm:$0xf]
        %v599 = vld [vmem:[%s284 + $0x4b8] sm:$0xf]
        %v600 = vld [vmem:[%s284 + $0x4bc] sm:$0xf]
        %v601 = vld [vmem:[%s284 + $0x4c0] sm:$0xf]
        %v602 = vld [vmem:[%s284 + $0x4c4] sm:$0xf]
        %v603 = vld [vmem:[%s284 + $0x4c8] sm:$0xf]
        %v604 = vld [vmem:[%s284 + $0x4cc] sm:$0xf]
        %v605 = vld [vmem:[%s284 + $0x4d0] sm:$0xf]
        %v606 = vld [vmem:[%s284 + $0x4d4] sm:$0xf]
        %v607 = vld [vmem:[%s284 + $0x4d8] sm:$0xf]
        %v608 = vld [vmem:[%s284 + $0x4dc] sm:$0xf]
        %v609 = vld [vmem:[%s284 + $0x4e0] sm:$0xf]
        %v610 = vld [vmem:[%s284 + $0x4e4] sm:$0xf]
        %v611 = vld [vmem:[%s284 + $0x4e8] sm:$0xf]
        %v612 = vld [vmem:[%s284 + $0x4ec] sm:$0xf]
        %v613 = vld [vmem:[%s284 + $0x4f0] sm:$0xf]
        %v614 = vld [vmem:[%s284 + $0x4f4] sm:$0xf]
        %v615 = vld [vmem:[%s284 + $0x4f8] sm:$0xf]
        %v616 = vld [vmem:[%s284 + $0x4fc] sm:$0xf]
        %v617 = vld [vmem:[%s284 + $0x500] sm:$0xf]
        %v618 = vld [vmem:[%s284 + $0x504] sm:$0xf]
        %v619 = vld [vmem:[%s284 + $0x508] sm:$0xf]
        %v620 = vld [vmem:[%s284 + $0x50c] sm:$0xf]
        %v621 = vld [vmem:[%s284 + $0x510] sm:$0xf]
        %v622 = vld [vmem:[%s284 + $0x514] sm:$0xf]
        %v623 = vld [vmem:[%s284 + $0x518] sm:$0xf]
        %v624 = vld [vmem:[%s284 + $0x51c] sm:$0xf]
        %v625 = vld [vmem:[%s284 + $0x520] sm:$0xf]
        %v626 = vld [vmem:[%s284 + $0x524] sm:$0xf]
        %v627 = vld [vmem:[%s284 + $0x528] sm:$0xf]
        %v628 = vld [vmem:[%s284 + $0x52c] sm:$0xf]
        %v629 = vld [vmem:[%s284 + $0x530] sm:$0xf]
        %v630 = vld [vmem:[%s284 + $0x534] sm:$0xf]
        %v631 = vld [vmem:[%s284 + $0x538] sm:$0xf]
        %v632 = vld [vmem:[%s284 + $0x53c] sm:$0xf]
        %v633 = vld [vmem:[%s284 + $0x540] sm:$0xf]
        %v634 = vld [vmem:[%s284 + $0x544] sm:$0xf]
        %v635 = vld [vmem:[%s284 + $0x548] sm:$0xf]
        %v636 = vld [vmem:[%s284 + $0x54c] sm:$0xf]
        %v637 = vld [vmem:[%s284 + $0x550] sm:$0xf]
        %v638 = vld [vmem:[%s284 + $0x554] sm:$0xf]
        %v639 = vld [vmem:[%s284 + $0x558] sm:$0xf]
        %v640 = vld [vmem:[%s284 + $0x55c] sm:$0xf]
        %v641 = vld [vmem:[%s284 + $0x560] sm:$0xf]
        %v642 = vld [vmem:[%s284 + $0x564] sm:$0xf]
        %v643 = vld [vmem:[%s284 + $0x568] sm:$0xf]
        %v644 = vld [vmem:[%s284 + $0x56c] sm:$0xf]
        %v645 = vld [vmem:[%s284 + $0x570] sm:$0xf]
        %v646 = vld [vmem:[%s284 + $0x574] sm:$0xf]
        %v647 = vld [vmem:[%s284 + $0x578] sm:$0xf]
        %v648 = vld [vmem:[%s284 + $0x57c] sm:$0xf]
        %v649 = vld [vmem:[%s284 + $0x580] sm:$0xf]
        %v650 = vld [vmem:[%s284 + $0x584] sm:$0xf]
        %v651 = vld [vmem:[%s284 + $0x588] sm:$0xf]
        %v652 = vld [vmem:[%s284 + $0x58c] sm:$0xf]
        %v653 = vld [vmem:[%s284 + $0x590] sm:$0xf]
        %v654 = vld [vmem:[%s284 + $0x594] sm:$0xf]
        %v655 = vld [vmem:[%s284 + $0x598] sm:$0xf]
        %v656 = vld [vmem:[%s284 + $0x59c] sm:$0xf]
        %v657 = vld [vmem:[%s284 + $0x5a0] sm:$0xf]
        %v658 = vld [vmem:[%s284 + $0x5a4] sm:$0xf]
        %v659 = vld [vmem:[%s284 + $0x5a8] sm:$0xf]
        %v660 = vld [vmem:[%s284 + $0x5ac] sm:$0xf]
        %v661 = vld [vmem:[%s284 + $0x5b0] sm:$0xf]
        %v662 = vld [vmem:[%s284 + $0x5b4] sm:$0xf]
        %v663 = vld [vmem:[%s284 + $0x5b8] sm:$0xf]
        %v664 = vld [vmem:[%s284 + $0x5bc] sm:$0xf]
        %v665 = vld [vmem:[%s284 + $0x5c0] sm:$0xf]
        %v666 = vld [vmem:[%s284 + $0x5c4] sm:$0xf]
        %v667 = vld [vmem:[%s284 + $0x5c8] sm:$0xf]
        %v668 = vld [vmem:[%s284 + $0x5cc] sm:$0xf]
        %v669 = vld [vmem:[%s284 + $0x5d0] sm:$0xf]
        %v670 = vld [vmem:[%s284 + $0x5d4] sm:$0xf]
        %v671 = vld [vmem:[%s284 + $0x5d8] sm:$0xf]
        %v672 = vld [vmem:[%s284 + $0x5dc] sm:$0xf]
        %v673 = vld [vmem:[%s284 + $0x5e0] sm:$0xf]
        %v674 = vld [vmem:[%s284 + $0x5e4] sm:$0xf]
        %v675 = vld [vmem:[%s284 + $0x5e8] sm:$0xf]
        %v676 = vld [vmem:[%s284 + $0x5ec] sm:$0xf]
        %v677 = vld [vmem:[%s284 + $0x5f0] sm:$0xf]
        %v678 = vld [vmem:[%s284 + $0x5f4] sm:$0xf]
        %v679 = vld [vmem:[%s284 + $0x5f8] sm:$0xf]
        %v680 = vld [vmem:[%s284 + $0x5fc] sm:$0xf]
        %v681 = vld [vmem:[%s284 + $0x600] sm:$0xf]
        %v682 = vld [vmem:[%s284 + $0x604] sm:$0xf]
        %v683 = vld [vmem:[%s284 + $0x608] sm:$0xf]
        %v684 = vld [vmem:[%s284 + $0x60c] sm:$0xf]
        %v685 = vld [vmem:[%s284 + $0x610] sm:$0xf]
        %v686 = vld [vmem:[%s284 + $0x614] sm:$0xf]
        %v687 = vld [vmem:[%s284 + $0x618] sm:$0xf]
        %v688 = vld [vmem:[%s284 + $0x61c] sm:$0xf]
        %v689 = vld [vmem:[%s284 + $0x620] sm:$0xf]
        %v690 = vld [vmem:[%s284 + $0x624] sm:$0xf]
        %v691 = vld [vmem:[%s284 + $0x628] sm:$0xf]
        %v692 = vld [vmem:[%s284 + $0x62c] sm:$0xf]
        %v693 = vld [vmem:[%s284 + $0x630] sm:$0xf]
        %v694 = vld [vmem:[%s284 + $0x634] sm:$0xf]
        %v695 = vld [vmem:[%s284 + $0x638] sm:$0xf]
        %v696 = vld [vmem:[%s284 + $0x63c] sm:$0xf]
        %v697 = vld [vmem:[%s284 + $0x640] sm:$0xf]
        %v698 = vld [vmem:[%s284 + $0x644] sm:$0xf]
        %v699 = vld [vmem:[%s284 + $0x648] sm:$0xf]
        %v700 = vld [vmem:[%s284 + $0x64c] sm:$0xf]
        %v701 = vld [vmem:[%s284 + $0x650] sm:$0xf]
        %v702 = vld [vmem:[%s284 + $0x654] sm:$0xf]
        %v703 = vld [vmem:[%s284 + $0x658] sm:$0xf]
        %v704 = vld [vmem:[%s284 + $0x65c] sm:$0xf]
        %v705 = vld [vmem:[%s284 + $0x660] sm:$0xf]
        %v706 = vld [vmem:[%s284 + $0x664] sm:$0xf]
        %v707 = vld [vmem:[%s284 + $0x668] sm:$0xf]
        %v708 = vld [vmem:[%s284 + $0x66c] sm:$0xf]
        %v709 = vld [vmem:[%s284 + $0x670] sm:$0xf]
        %v710 = vld [vmem:[%s284 + $0x674] sm:$0xf]
        %v711 = vld [vmem:[%s284 + $0x678] sm:$0xf]
        %v712 = vld [vmem:[%s284 + $0x67c] sm:$0xf]
        %v713 = vld [vmem:[%s284 + $0x680] sm:$0xf]
        %v714 = vld [vmem:[%s284 + $0x684] sm:$0xf]
        %v715 = vld [vmem:[%s284 + $0x688] sm:$0xf]
        %v716 = vld [vmem:[%s284 + $0x68c] sm:$0xf]
        %v717 = vld [vmem:[%s284 + $0x690] sm:$0xf]
        %v718 = vld [vmem:[%s284 + $0x694] sm:$0xf]
        %v719 = vld [vmem:[%s284 + $0x698] sm:$0xf]
        %v720 = vld [vmem:[%s284 + $0x69c] sm:$0xf]
        %v721 = vld [vmem:[%s284 + $0x6a0] sm:$0xf]
        %v722 = vld [vmem:[%s284 + $0x6a4] sm:$0xf]
        %v723 = vld [vmem:[%s284 + $0x6a8] sm:$0xf]
        %v724 = vld [vmem:[%s284 + $0x6ac] sm:$0xf]
        %v725 = vld [vmem:[%s284 + $0x6b0] sm:$0xf]
        %v726 = vld [vmem:[%s284 + $0x6b4] sm:$0xf]
        %v727 = vld [vmem:[%s284 + $0x6b8] sm:$0xf]
        %v728 = vld [vmem:[%s284 + $0x6bc] sm:$0xf]
        %v729 = vld [vmem:[%s284 + $0x6c0] sm:$0xf]
        %v730 = vld [vmem:[%s284 + $0x6c4] sm:$0xf]
        %v731 = vld [vmem:[%s284 + $0x6c8] sm:$0xf]
        %v732 = vld [vmem:[%s284 + $0x6cc] sm:$0xf]
        %v733 = vld [vmem:[%s284 + $0x6d0] sm:$0xf]
        %v734 = vld [vmem:[%s284 + $0x6d4] sm:$0xf]
        %v735 = vld [vmem:[%s284 + $0x6d8] sm:$0xf]
        %v736 = vld [vmem:[%s284 + $0x6dc] sm:$0xf]
        %v737 = vld [vmem:[%s284 + $0x6e0] sm:$0xf]
        %v738 = vld [vmem:[%s284 + $0x6e4] sm:$0xf]
        %v739 = vld [vmem:[%s284 + $0x6e8] sm:$0xf]
        %v740 = vld [vmem:[%s284 + $0x6ec] sm:$0xf]
        %v741 = vld [vmem:[%s284 + $0x6f0] sm:$0xf]
        %v742 = vld [vmem:[%s284 + $0x6f4] sm:$0xf]
        %v743 = vld [vmem:[%s284 + $0x6f8] sm:$0xf]
        %v744 = vld [vmem:[%s284 + $0x6fc] sm:$0xf]
        %v745 = vld [vmem:[%s284 + $0x700] sm:$0xf]
        %v746 = vld [vmem:[%s284 + $0x704] sm:$0xf]
        %v747 = vld [vmem:[%s284 + $0x708] sm:$0xf]
        %v748 = vld [vmem:[%s284 + $0x70c] sm:$0xf]
        %v749 = vld [vmem:[%s284 + $0x710] sm:$0xf]
        %v750 = vld [vmem:[%s284 + $0x714] sm:$0xf]
        %v751 = vld [vmem:[%s284 + $0x718] sm:$0xf]
        %v752 = vld [vmem:[%s284 + $0x71c] sm:$0xf]
        %v753 = vld [vmem:[%s284 + $0x720] sm:$0xf]
        %v754 = vld [vmem:[%s284 + $0x724] sm:$0xf]
        %v755 = vld [vmem:[%s284 + $0x728] sm:$0xf]
        %v756 = vld [vmem:[%s284 + $0x72c] sm:$0xf]
        %v757 = vld [vmem:[%s284 + $0x730] sm:$0xf]
        %v758 = vld [vmem:[%s284 + $0x734] sm:$0xf]
        %v759 = vld [vmem:[%s284 + $0x738] sm:$0xf]
        %v760 = vld [vmem:[%s284 + $0x73c] sm:$0xf]
        %v761 = vld [vmem:[%s284 + $0x740] sm:$0xf]
        %v762 = vld [vmem:[%s284 + $0x744] sm:$0xf]
        %v763 = vld [vmem:[%s284 + $0x748] sm:$0xf]
        %v764 = vld [vmem:[%s284 + $0x74c] sm:$0xf]
        %v765 = vld [vmem:[%s284 + $0x750] sm:$0xf]
        %v766 = vld [vmem:[%s284 + $0x754] sm:$0xf]
        %v767 = vld [vmem:[%s284 + $0x758] sm:$0xf]
        %v768 = vld [vmem:[%s284 + $0x75c] sm:$0xf]
        %v769 = vld [vmem:[%s284 + $0x760] sm:$0xf]
        %v770 = vld [vmem:[%s284 + $0x764] sm:$0xf]
        %v771 = vld [vmem:[%s284 + $0x768] sm:$0xf]
        %v772 = vld [vmem:[%s284 + $0x76c] sm:$0xf]
        %v773 = vld [vmem:[%s284 + $0x770] sm:$0xf]
        %v774 = vld [vmem:[%s284 + $0x774] sm:$0xf]
        %v775 = vld [vmem:[%s284 + $0x778] sm:$0xf]
        %v776 = vld [vmem:[%s284 + $0x77c] sm:$0xf]
        %v777 = vld [vmem:[%s284 + $0x780] sm:$0xf]
        %v778 = vld [vmem:[%s284 + $0x784] sm:$0xf]
        %v779 = vld [vmem:[%s284 + $0x788] sm:$0xf]
        %v780 = vld [vmem:[%s284 + $0x78c] sm:$0xf]
        %v781 = vld [vmem:[%s284 + $0x790] sm:$0xf]
        %v782 = vld [vmem:[%s284 + $0x794] sm:$0xf]
        %v783 = vld [vmem:[%s284 + $0x798] sm:$0xf]
        %v784 = vld [vmem:[%s284 + $0x79c] sm:$0xf]
        %v785 = vld [vmem:[%s284 + $0x7a0] sm:$0xf]
        %v786 = vld [vmem:[%s284 + $0x7a4] sm:$0xf]
        %v787 = vld [vmem:[%s284 + $0x7a8] sm:$0xf]
        %v788 = vld [vmem:[%s284 + $0x7ac] sm:$0xf]
        %v789 = vld [vmem:[%s284 + $0x7b0] sm:$0xf]
        %v790 = vld [vmem:[%s284 + $0x7b4] sm:$0xf]
        %v791 = vld [vmem:[%s284 + $0x7b8] sm:$0xf]
        %v792 = vld [vmem:[%s284 + $0x7bc] sm:$0xf]
        %v793 = vld [vmem:[%s284 + $0x7c0] sm:$0xf]
        %v794 = vld [vmem:[%s284 + $0x7c4] sm:$0xf]
        %v795 = vld [vmem:[%s284 + $0x7c8] sm:$0xf]
        %v796 = vld [vmem:[%s284 + $0x7cc] sm:$0xf]
        %v797 = vld [vmem:[%s284 + $0x7d0] sm:$0xf]
        %v798 = vld [vmem:[%s284 + $0x7d4] sm:$0xf]
        %v799 = vld [vmem:[%s284 + $0x7d8] sm:$0xf]
        %v800 = vld [vmem:[%s284 + $0x7dc] sm:$0xf]
        %v801 = vld [vmem:[%s284 + $0x7e0] sm:$0xf]
        %v802 = vld [vmem:[%s284 + $0x7e4] sm:$0xf]
        %v803 = vld [vmem:[%s284 + $0x7e8] sm:$0xf]
        %v804 = vld [vmem:[%s284 + $0x7ec] sm:$0xf]
        %v805 = vld [vmem:[%s284 + $0x7f0] sm:$0xf]
        %v806 = vld [vmem:[%s284 + $0x7f4] sm:$0xf]
        %v807 = vld [vmem:[%s284 + $0x7f8] sm:$0xf]
        %v808 = vld [vmem:[%s284 + $0x7fc] sm:$0xf]
        %v809 = vld [vmem:[%s284 + $0x800] sm:$0xf]
        %v810 = vld [vmem:[%s284 + $0x804] sm:$0xf]
        %v811 = vld [vmem:[%s284 + $0x808] sm:$0xf]
        %v812 = vld [vmem:[%s284 + $0x80c] sm:$0xf]
        %v813 = vld [vmem:[%s284 + $0x810] sm:$0xf]
        %v814 = vld [vmem:[%s284 + $0x814] sm:$0xf]
        %v815 = vld [vmem:[%s284 + $0x818] sm:$0xf]
        %v816 = vld [vmem:[%s284 + $0x81c] sm:$0xf]
        %v817 = vld [vmem:[%s284 + $0x820] sm:$0xf]
        %v818 = vld [vmem:[%s284 + $0x824] sm:$0xf]
        %v819 = vld [vmem:[%s284 + $0x828] sm:$0xf]
        %v820 = vld [vmem:[%s284 + $0x82c] sm:$0xf]
        %v821 = vld [vmem:[%s284 + $0x830] sm:$0xf]
        %v822 = vld [vmem:[%s284 + $0x834] sm:$0xf]
        %v823 = vld [vmem:[%s284 + $0x838] sm:$0xf]
        %v824 = vld [vmem:[%s284 + $0x83c] sm:$0xf]
        %v825 = vld [vmem:[%s284 + $0x840] sm:$0xf]
        %v826 = vld [vmem:[%s284 + $0x844] sm:$0xf]
        %v827 = vld [vmem:[%s284 + $0x848] sm:$0xf]
        %v828 = vld [vmem:[%s284 + $0x84c] sm:$0xf]
        %v829 = vld [vmem:[%s284 + $0x850] sm:$0xf]
        %v830 = vld [vmem:[%s284 + $0x854] sm:$0xf]
        %v831 = vld [vmem:[%s284 + $0x858] sm:$0xf]
        %v832 = vld [vmem:[%s284 + $0x85c] sm:$0xf]
        %v833 = vld [vmem:[%s284 + $0x860] sm:$0xf]
        %v834 = vld [vmem:[%s284 + $0x864] sm:$0xf]
        %v835 = vld [vmem:[%s284 + $0x868] sm:$0xf]
        %v836 = vld [vmem:[%s284 + $0x86c] sm:$0xf]
        %v837 = vld [vmem:[%s284 + $0x870] sm:$0xf]
        %v838 = vld [vmem:[%s284 + $0x874] sm:$0xf]
        %v839 = vld [vmem:[%s284 + $0x878] sm:$0xf]
        %v840 = vld [vmem:[%s284 + $0x87c] sm:$0xf]
        %v841 = vld [vmem:[%s284 + $0x880] sm:$0xf]
        %v842 = vld [vmem:[%s284 + $0x884] sm:$0xf]
        %v843 = vld [vmem:[%s284 + $0x888] sm:$0xf]
        %v844 = vld [vmem:[%s284 + $0x88c] sm:$0xf]
        %v845 = vld [vmem:[%s284 + $0x890] sm:$0xf]
        %v846 = vld [vmem:[%s284 + $0x894] sm:$0xf]
        %v847 = vld [vmem:[%s284 + $0x898] sm:$0xf]
        %v848 = vld [vmem:[%s284 + $0x89c] sm:$0xf]
        %v849 = vld [vmem:[%s284 + $0x8a0] sm:$0xf]
        %v850 = vld [vmem:[%s284 + $0x8a4] sm:$0xf]
        %v851 = vld [vmem:[%s284 + $0x8a8] sm:$0xf]
        %v852 = vld [vmem:[%s284 + $0x8ac] sm:$0xf]
        %v853 = vld [vmem:[%s284 + $0x8b0] sm:$0xf]
        %v854 = vld [vmem:[%s284 + $0x8b4] sm:$0xf]
        %v855 = vld [vmem:[%s284 + $0x8b8] sm:$0xf]
        %v856 = vld [vmem:[%s284 + $0x8bc] sm:$0xf]
        %v857 = vld [vmem:[%s284 + $0x8c0] sm:$0xf]
        %v858 = vld [vmem:[%s284 + $0x8c4] sm:$0xf]
        %v859 = vld [vmem:[%s284 + $0x8c8] sm:$0xf]
        %v860 = vld [vmem:[%s284 + $0x8cc] sm:$0xf]
        %v861 = vld [vmem:[%s284 + $0x8d0] sm:$0xf]
        %v862 = vld [vmem:[%s284 + $0x8d4] sm:$0xf]
        %v863 = vld [vmem:[%s284 + $0x8d8] sm:$0xf]
        %v864 = vld [vmem:[%s284 + $0x8dc] sm:$0xf]
        %v865 = vld [vmem:[%s284 + $0x8e0] sm:$0xf]
        %v866 = vld [vmem:[%s284 + $0x8e4] sm:$0xf]
        %v867 = vld [vmem:[%s284 + $0x8e8] sm:$0xf]
        %v868 = vld [vmem:[%s284 + $0x8ec] sm:$0xf]
        %v869 = vld [vmem:[%s284 + $0x8f0] sm:$0xf]
        %v870 = vld [vmem:[%s284 + $0x8f4] sm:$0xf]
        %v871 = vld [vmem:[%s284 + $0x8f8] sm:$0xf]
        %v872 = vld [vmem:[%s284 + $0x8fc] sm:$0xf]
        %v873 = vld [vmem:[%s284 + $0x900] sm:$0xf]
        %v874 = vld [vmem:[%s284 + $0x904] sm:$0xf]
        %v875 = vld [vmem:[%s284 + $0x908] sm:$0xf]
        %v876 = vld [vmem:[%s284 + $0x90c] sm:$0xf]
        %v877 = vld [vmem:[%s284 + $0x910] sm:$0xf]
        %v878 = vld [vmem:[%s284 + $0x914] sm:$0xf]
        %v879 = vld [vmem:[%s284 + $0x918] sm:$0xf]
        %v880 = vld [vmem:[%s284 + $0x91c] sm:$0xf]
        %v881 = vld [vmem:[%s284 + $0x920] sm:$0xf]
        %v882 = vld [vmem:[%s284 + $0x924] sm:$0xf]
        %v883 = vld [vmem:[%s284 + $0x928] sm:$0xf]
        %v884 = vld [vmem:[%s284 + $0x92c] sm:$0xf]
        %v885 = vld [vmem:[%s284 + $0x930] sm:$0xf]
        %v886 = vld [vmem:[%s284 + $0x934] sm:$0xf]
        %v887 = vld [vmem:[%s284 + $0x938] sm:$0xf]
        %v888 = vld [vmem:[%s284 + $0x93c] sm:$0xf]
        %v889 = vld [vmem:[%s284 + $0x940] sm:$0xf]
        %v890 = vld [vmem:[%s284 + $0x944] sm:$0xf]
        %v891 = vld [vmem:[%s284 + $0x948] sm:$0xf]
        %v892 = vld [vmem:[%s284 + $0x94c] sm:$0xf]
        %v893 = vld [vmem:[%s284 + $0x950] sm:$0xf]
        %v894 = vld [vmem:[%s284 + $0x954] sm:$0xf]
        %v895 = vld [vmem:[%s284 + $0x958] sm:$0xf]
        %v896 = vld [vmem:[%s284 + $0x95c] sm:$0xf]
        %v897 = vld [vmem:[%s284 + $0x960] sm:$0xf]
        %v898 = vld [vmem:[%s284 + $0x964] sm:$0xf]
        %v899 = vld [vmem:[%s284 + $0x968] sm:$0xf]
        %v900 = vld [vmem:[%s284 + $0x96c] sm:$0xf]
        %v901 = vld [vmem:[%s284 + $0x970] sm:$0xf]
        %v902 = vld [vmem:[%s284 + $0x974] sm:$0xf]
        %v903 = vld [vmem:[%s284 + $0x978] sm:$0xf]
        %v904 = vld [vmem:[%s284 + $0x97c] sm:$0xf]
        %v905 = vld [vmem:[%s284 + $0x980] sm:$0xf]
        %v906 = vld [vmem:[%s284 + $0x984] sm:$0xf]
        %v907 = vld [vmem:[%s284 + $0x988] sm:$0xf]
        %v908 = vld [vmem:[%s284 + $0x98c] sm:$0xf]
        %v909 = vld [vmem:[%s284 + $0x990] sm:$0xf]
        %v910 = vld [vmem:[%s284 + $0x994] sm:$0xf]
        %v911 = vld [vmem:[%s284 + $0x998] sm:$0xf]
        %v912 = vld [vmem:[%s284 + $0x99c] sm:$0xf]
        %v913 = vld [vmem:[%s284 + $0x9a0] sm:$0xf]
        %v914 = vld [vmem:[%s284 + $0x9a4] sm:$0xf]
        %v915 = vld [vmem:[%s284 + $0x9a8] sm:$0xf]
        %v916 = vld [vmem:[%s284 + $0x9ac] sm:$0xf]
        %v917 = vld [vmem:[%s284 + $0x9b0] sm:$0xf]
        %v918 = vld [vmem:[%s284 + $0x9b4] sm:$0xf]
        %v919 = vld [vmem:[%s284 + $0x9b8] sm:$0xf]
        %v920 = vld [vmem:[%s284 + $0x9bc] sm:$0xf]
        %v921 = vld [vmem:[%s284 + $0x9c0] sm:$0xf]
        %v922 = vld [vmem:[%s284 + $0x9c4] sm:$0xf]
        %v923 = vld [vmem:[%s284 + $0x9c8] sm:$0xf]
        %v924 = vld [vmem:[%s284 + $0x9cc] sm:$0xf]
        %v925 = vld [vmem:[%s284 + $0x9d0] sm:$0xf]
        %v926 = vld [vmem:[%s284 + $0x9d4] sm:$0xf]
        %v927 = vld [vmem:[%s284 + $0x9d8] sm:$0xf]
        %v928 = vld [vmem:[%s284 + $0x9dc] sm:$0xf]
        %v929 = vld [vmem:[%s284 + $0x9e0] sm:$0xf]
        %v930 = vld [vmem:[%s284 + $0x9e4] sm:$0xf]
        %v931 = vld [vmem:[%s284 + $0x9e8] sm:$0xf]
        %v932 = vld [vmem:[%s284 + $0x9ec] sm:$0xf]
        %v933 = vld [vmem:[%s284 + $0x9f0] sm:$0xf]
        %v934 = vld [vmem:[%s284 + $0x9f4] sm:$0xf]
        %v935 = vld [vmem:[%s284 + $0x9f8] sm:$0xf]
        %v936 = vld [vmem:[%s284 + $0x9fc] sm:$0xf]
        %938 = vst [vmem:[#allocation1] ss:$9 sm:$0xff] %v292
        %v939 = vld [vmem:[#allocation1] sm:$0xff]
        %v940 = vld [vmem:[#allocation1 + $0x9] sm:$0xff]
        %v941 = vld [vmem:[#allocation1 + $0x12] sm:$0xff]
        %v942 = vld [vmem:[#allocation1 + $0x1b] sm:$0xff]
        %v943 = vld [vmem:[#allocation1 + $0x24] sm:$0xff]
        %v944 = vld [vmem:[#allocation1 + $0x2d] sm:$0xff]
        %v945 = vld [vmem:[#allocation1 + $0x36] sm:$0xff]
        %v946 = vld [vmem:[#allocation1 + $0x3f] sm:$0xff]
        %948 = vst [vmem:[#allocation1] ss:$9 sm:$0xff] %v293
        %v949 = vld [vmem:[#allocation1] sm:$0xff]
        %v950 = vld [vmem:[#allocation1 + $0x9] sm:$0xff]
        %v951 = vld [vmem:[#allocation1 + $0x12] sm:$0xff]
        %v952 = vld [vmem:[#allocation1 + $0x1b] sm:$0xff]
        %v953 = vld [vmem:[#allocation1 + $0x24] sm:$0xff]
        %v954 = vld [vmem:[#allocation1 + $0x2d] sm:$0xff]
        %v955 = vld [vmem:[#allocation1 + $0x36] sm:$0xff]
        %v956 = vld [vmem:[#allocation1 + $0x3f] sm:$0xff]
        %958 = vst [vmem:[#allocation1] ss:$9 sm:$0xff] %v294
        %v959 = vld [vmem:[#allocation1] sm:$0xff]
        %v960 = vld [vmem:[#allocation1 + $0x9] sm:$0xff]
        %v961 = vld [vmem:[#allocation1 + $0x12] sm:$0xff]
        %v962 = vld [vmem:[#allocation1 + $0x1b] sm:$0xff]
        %v963 = vld [vmem:[#allocation1 + $0x24] sm:$0xff]
        %v964 = vld [vmem:[#allocation1 + $0x2d] sm:$0xff]
        %v965 = vld [vmem:[#allocation1 + $0x36] sm:$0xff]
        %v966 = vld [vmem:[#allocation1 + $0x3f] sm:$0xff]
        %968 = vst [vmem:[#allocation1] ss:$9 sm:$0xff] %v295
        %v969 = vld [vmem:[#allocation1] sm:$0xff]
        %v970 = vld [vmem:[#allocation1 + $0x9] sm:$0xff]
        %v971 = vld [vmem:[#allocation1 + $0x12] sm:$0xff]
        %v972 = vld [vmem:[#allocation1 + $0x1b] sm:$0xff]
        %v973 = vld [vmem:[#allocation1 + $0x24] sm:$0xff]
        %v974 = vld [vmem:[#allocation1 + $0x2d] sm:$0xff]
        %v975 = vld [vmem:[#allocation1 + $0x36] sm:$0xff]
        %v976 = vld [vmem:[#allocation1 + $0x3f] sm:$0xff]
        %978 = vst [vmem:[#allocation1] ss:$9 sm:$0xff] %v296
        %v979 = vld [vmem:[#allocation1] sm:$0xff]
        %v980 = vld [vmem:[#allocation1 + $0x9] sm:$0xff]
        %v981 = vld [vmem:[#allocation1 + $0x12] sm:$0xff]
        %v982 = vld [vmem:[#allocation1 + $0x1b] sm:$0xff]
        %v983 = vld [vmem:[#allocation1 + $0x24] sm:$0xff]
        %v984 = vld [vmem:[#allocation1 + $0x2d] sm:$0xff]
        %v985 = vld [vmem:[#allocation1 + $0x36] sm:$0xff]
        %v986 = vld [vmem:[#allocation1 + $0x3f] sm:$0xff]
        %v1667 = vunpack.c.l.b16 %v297
        %v1668 = vunpack.c.l.b16 %v298
        %v1669 = vunpack.c.l.b16 %v299
        %v1670 = vunpack.c.l.b16 %v300
        %v1671 = vunpack.c.l.b16 %v301
        %v1672 = vunpack.c.l.b16 %v302
        %v1673 = vunpack.c.l.b16 %v303
        %v1674 = vunpack.c.l.b16 %v304
        %v1675 = vunpack.c.l.b16 %v305
        %v1676 = vunpack.c.l.b16 %v306
        %v1677 = vunpack.c.l.b16 %v307
        %v1678 = vunpack.c.l.b16 %v308
        %v1679 = vunpack.c.l.b16 %v309
        %v1680 = vunpack.c.l.b16 %v310
        %v1681 = vunpack.c.l.b16 %v311
        %v1682 = vunpack.c.l.b16 %v312
        %v1683 = vunpack.c.l.b16 %v313
        %v1684 = vunpack.c.l.b16 %v314
        %v1685 = vunpack.c.l.b16 %v315
        %v1686 = vunpack.c.l.b16 %v316
        %v1687 = vunpack.c.l.b16 %v317
        %v1688 = vunpack.c.l.b16 %v318
        %v1689 = vunpack.c.l.b16 %v319
        %v1690 = vunpack.c.l.b16 %v320
        %v1691 = vunpack.c.l.b16 %v321
        %v1692 = vunpack.c.l.b16 %v322
        %v1693 = vunpack.c.l.b16 %v323
        %v1694 = vunpack.c.l.b16 %v324
        %v1695 = vunpack.c.l.b16 %v325
        %v1696 = vunpack.c.l.b16 %v326
        %v1697 = vunpack.c.l.b16 %v327
        %v1698 = vunpack.c.l.b16 %v328
        %v1699 = vunpack.c.l.b16 %v329
        %v1700 = vunpack.c.l.b16 %v330
        %v1701 = vunpack.c.l.b16 %v331
        %v1702 = vunpack.c.l.b16 %v332
        %v1703 = vunpack.c.l.b16 %v333
        %v1704 = vunpack.c.l.b16 %v334
        %v1705 = vunpack.c.l.b16 %v335
        %v1706 = vunpack.c.l.b16 %v336
        %v1707 = vunpack.c.l.b16 %v337
        %v1708 = vunpack.c.l.b16 %v338
        %v1709 = vunpack.c.l.b16 %v339
        %v1710 = vunpack.c.l.b16 %v340
        %v1711 = vunpack.c.l.b16 %v341
        %v1712 = vunpack.c.l.b16 %v342
        %v1713 = vunpack.c.l.b16 %v343
        %v1714 = vunpack.c.l.b16 %v344
        %v1715 = vunpack.c.l.b16 %v345
        %v1716 = vunpack.c.l.b16 %v346
        %v1717 = vunpack.c.l.b16 %v347
        %v1718 = vunpack.c.l.b16 %v348
        %v1719 = vunpack.c.l.b16 %v349
        %v1720 = vunpack.c.l.b16 %v350
        %v1721 = vunpack.c.l.b16 %v351
        %v1722 = vunpack.c.l.b16 %v352
        %v1723 = vunpack.c.l.b16 %v353
        %v1724 = vunpack.c.l.b16 %v354
        %v1725 = vunpack.c.l.b16 %v355
        %v1726 = vunpack.c.l.b16 %v356
        %v1727 = vunpack.c.l.b16 %v357
        %v1728 = vunpack.c.l.b16 %v358
        %v1729 = vunpack.c.l.b16 %v359
        %v1730 = vunpack.c.l.b16 %v360
        %v1731 = vunpack.c.l.b16 %v361
        %v1732 = vunpack.c.l.b16 %v362
        %v1733 = vunpack.c.l.b16 %v363
        %v1734 = vunpack.c.l.b16 %v364
        %v1735 = vunpack.c.l.b16 %v365
        %v1736 = vunpack.c.l.b16 %v366
        %v1737 = vunpack.c.l.b16 %v367
        %v1738 = vunpack.c.l.b16 %v368
        %v1739 = vunpack.c.l.b16 %v369
        %v1740 = vunpack.c.l.b16 %v370
        %v1741 = vunpack.c.l.b16 %v371
        %v1742 = vunpack.c.l.b16 %v372
        %v1743 = vunpack.c.l.b16 %v373
        %v1744 = vunpack.c.l.b16 %v374
        %v1745 = vunpack.c.l.b16 %v375
        %v1746 = vunpack.c.l.b16 %v376
        %v1747 = vunpack.c.l.b16 %v377
        %v1748 = vunpack.c.l.b16 %v378
        %v1749 = vunpack.c.l.b16 %v379
        %v1750 = vunpack.c.l.b16 %v380
        %v1751 = vunpack.c.l.b16 %v381
        %v1752 = vunpack.c.l.b16 %v382
        %v1753 = vunpack.c.l.b16 %v383
        %v1754 = vunpack.c.l.b16 %v384
        %v1755 = vunpack.c.l.b16 %v385
        %v1756 = vunpack.c.l.b16 %v386
        %v1757 = vunpack.c.l.b16 %v387
        %v1758 = vunpack.c.l.b16 %v388
        %v1759 = vunpack.c.l.b16 %v389
        %v1760 = vunpack.c.l.b16 %v390
        %v1761 = vunpack.c.l.b16 %v391
        %v1762 = vunpack.c.l.b16 %v392
        %v1763 = vunpack.c.l.b16 %v393
        %v1764 = vunpack.c.l.b16 %v394
        %v1765 = vunpack.c.l.b16 %v395
        %v1766 = vunpack.c.l.b16 %v396
        %v1767 = vunpack.c.l.b16 %v397
        %v1768 = vunpack.c.l.b16 %v398
        %v1769 = vunpack.c.l.b16 %v399
        %v1770 = vunpack.c.l.b16 %v400
        %v1771 = vunpack.c.l.b16 %v401
        %v1772 = vunpack.c.l.b16 %v402
        %v1773 = vunpack.c.l.b16 %v403
        %v1774 = vunpack.c.l.b16 %v404
        %v1775 = vunpack.c.l.b16 %v405
        %v1776 = vunpack.c.l.b16 %v406
        %v1777 = vunpack.c.l.b16 %v407
        %v1778 = vunpack.c.l.b16 %v408
        %v1779 = vunpack.c.l.b16 %v409
        %v1780 = vunpack.c.l.b16 %v410
        %v1781 = vunpack.c.l.b16 %v411
        %v1782 = vunpack.c.l.b16 %v412
        %v1783 = vunpack.c.l.b16 %v413
        %v1784 = vunpack.c.l.b16 %v414
        %v1785 = vunpack.c.l.b16 %v415
        %v1786 = vunpack.c.l.b16 %v416
        %v1787 = vunpack.c.l.b16 %v417
        %v1788 = vunpack.c.l.b16 %v418
        %v1789 = vunpack.c.l.b16 %v419
        %v1790 = vunpack.c.l.b16 %v420
        %v1791 = vunpack.c.l.b16 %v421
        %v1792 = vunpack.c.l.b16 %v422
        %v1793 = vunpack.c.l.b16 %v423
        %v1794 = vunpack.c.l.b16 %v424
        %v1795 = vunpack.c.l.b16 %v425
        %v1796 = vunpack.c.l.b16 %v426
        %v1797 = vunpack.c.l.b16 %v427
        %v1798 = vunpack.c.l.b16 %v428
        %v1799 = vunpack.c.l.b16 %v429
        %v1800 = vunpack.c.l.b16 %v430
        %v1801 = vunpack.c.l.b16 %v431
        %v1802 = vunpack.c.l.b16 %v432
        %v1803 = vunpack.c.l.b16 %v433
        %v1804 = vunpack.c.l.b16 %v434
        %v1805 = vunpack.c.l.b16 %v435
        %v1806 = vunpack.c.l.b16 %v436
        %v1807 = vunpack.c.l.b16 %v437
        %v1808 = vunpack.c.l.b16 %v438
        %v1809 = vunpack.c.l.b16 %v439
        %v1810 = vunpack.c.l.b16 %v440
        %v1811 = vunpack.c.l.b16 %v441
        %v1812 = vunpack.c.l.b16 %v442
        %v1813 = vunpack.c.l.b16 %v443
        %v1814 = vunpack.c.l.b16 %v444
        %v1815 = vunpack.c.l.b16 %v445
        %v1816 = vunpack.c.l.b16 %v446
        %v1817 = vunpack.c.l.b16 %v447
        %v1818 = vunpack.c.l.b16 %v448
        %v1819 = vunpack.c.l.b16 %v449
        %v1820 = vunpack.c.l.b16 %v450
        %v1821 = vunpack.c.l.b16 %v451
        %v1822 = vunpack.c.l.b16 %v452
        %v1823 = vunpack.c.l.b16 %v453
        %v1824 = vunpack.c.l.b16 %v454
        %v1825 = vunpack.c.l.b16 %v455
        %v1826 = vunpack.c.l.b16 %v456
        %v1827 = vunpack.c.l.b16 %v457
        %v1828 = vunpack.c.l.b16 %v458
        %v1829 = vunpack.c.l.b16 %v459
        %v1830 = vunpack.c.l.b16 %v460
        %v1831 = vunpack.c.l.b16 %v461
        %v1832 = vunpack.c.l.b16 %v462
        %v1833 = vunpack.c.l.b16 %v463
        %v1834 = vunpack.c.l.b16 %v464
        %v1835 = vunpack.c.l.b16 %v465
        %v1836 = vunpack.c.l.b16 %v466
        %v1837 = vunpack.c.l.b16 %v467
        %v1838 = vunpack.c.l.b16 %v468
        %v1839 = vunpack.c.l.b16 %v469
        %v1840 = vunpack.c.l.b16 %v470
        %v1841 = vunpack.c.l.b16 %v471
        %v1842 = vunpack.c.l.b16 %v472
        %v1843 = vunpack.c.l.b16 %v473
        %v1844 = vunpack.c.l.b16 %v474
        %v1845 = vunpack.c.l.b16 %v475
        %v1846 = vunpack.c.l.b16 %v476
        %v1847 = vunpack.c.l.b16 %v477
        %v1848 = vunpack.c.l.b16 %v478
        %v1849 = vunpack.c.l.b16 %v479
        %v1850 = vunpack.c.l.b16 %v480
        %v1851 = vunpack.c.l.b16 %v481
        %v1852 = vunpack.c.l.b16 %v482
        %v1853 = vunpack.c.l.b16 %v483
        %v1854 = vunpack.c.l.b16 %v484
        %v1855 = vunpack.c.l.b16 %v485
        %v1856 = vunpack.c.l.b16 %v486
        %v1857 = vunpack.c.l.b16 %v487
        %v1858 = vunpack.c.l.b16 %v488
        %v1859 = vunpack.c.l.b16 %v489
        %v1860 = vunpack.c.l.b16 %v490
        %v1861 = vunpack.c.l.b16 %v491
        %v1862 = vunpack.c.l.b16 %v492
        %v1863 = vunpack.c.l.b16 %v493
        %v1864 = vunpack.c.l.b16 %v494
        %v1865 = vunpack.c.l.b16 %v495
        %v1866 = vunpack.c.l.b16 %v496
        %v1867 = vunpack.c.l.b16 %v497
        %v1868 = vunpack.c.l.b16 %v498
        %v1869 = vunpack.c.l.b16 %v499
        %v1870 = vunpack.c.l.b16 %v500
        %v1871 = vunpack.c.l.b16 %v501
        %v1872 = vunpack.c.l.b16 %v502
        %v1873 = vunpack.c.l.b16 %v503
        %v1874 = vunpack.c.l.b16 %v504
        %v1875 = vunpack.c.l.b16 %v505
        %v1876 = vunpack.c.l.b16 %v506
        %v1877 = vunpack.c.l.b16 %v507
        %v1878 = vunpack.c.l.b16 %v508
        %v1879 = vunpack.c.l.b16 %v509
        %v1880 = vunpack.c.l.b16 %v510
        %v1881 = vunpack.c.l.b16 %v511
        %v1882 = vunpack.c.l.b16 %v512
        %v1883 = vunpack.c.l.b16 %v513
        %v1884 = vunpack.c.l.b16 %v514
        %v1885 = vunpack.c.l.b16 %v515
        %v1886 = vunpack.c.l.b16 %v516
        %v1887 = vunpack.c.l.b16 %v517
        %v1888 = vunpack.c.l.b16 %v518
        %v1889 = vunpack.c.l.b16 %v519
        %v1890 = vunpack.c.l.b16 %v520
        %v1891 = vunpack.c.l.b16 %v521
        %v1892 = vunpack.c.l.b16 %v522
        %v1893 = vunpack.c.l.b16 %v523
        %v1894 = vunpack.c.l.b16 %v524
        %v1895 = vunpack.c.l.b16 %v525
        %v1896 = vunpack.c.l.b16 %v526
        %v1897 = vunpack.c.l.b16 %v527
        %v1898 = vunpack.c.l.b16 %v528
        %v1899 = vunpack.c.l.b16 %v529
        %v1900 = vunpack.c.l.b16 %v530
        %v1901 = vunpack.c.l.b16 %v531
        %v1902 = vunpack.c.l.b16 %v532
        %v1903 = vunpack.c.l.b16 %v533
        %v1904 = vunpack.c.l.b16 %v534
        %v1905 = vunpack.c.l.b16 %v535
        %v1906 = vunpack.c.l.b16 %v536
        %v1907 = vunpack.c.l.b16 %v537
        %v1908 = vunpack.c.l.b16 %v538
        %v1909 = vunpack.c.l.b16 %v539
        %v1910 = vunpack.c.l.b16 %v540
        %v1911 = vunpack.c.l.b16 %v541
        %v1912 = vunpack.c.l.b16 %v542
        %v1913 = vunpack.c.l.b16 %v543
        %v1914 = vunpack.c.l.b16 %v544
        %v1915 = vunpack.c.l.b16 %v545
        %v1916 = vunpack.c.l.b16 %v546
        %v1917 = vunpack.c.l.b16 %v547
        %v1918 = vunpack.c.l.b16 %v548
        %v1919 = vunpack.c.l.b16 %v549
        %v1920 = vunpack.c.l.b16 %v550
        %v1921 = vunpack.c.l.b16 %v551
        %v1922 = vunpack.c.l.b16 %v552
        %v1923 = vunpack.c.l.b16 %v553
        %v1924 = vunpack.c.l.b16 %v554
        %v1925 = vunpack.c.l.b16 %v555
        %v1926 = vunpack.c.l.b16 %v556
        %v1927 = vunpack.c.l.b16 %v557
        %v1928 = vunpack.c.l.b16 %v558
        %v1929 = vunpack.c.l.b16 %v559
        %v1930 = vunpack.c.l.b16 %v560
        %v1931 = vunpack.c.l.b16 %v561
        %v1932 = vunpack.c.l.b16 %v562
        %v1933 = vunpack.c.l.b16 %v563
        %v1934 = vunpack.c.l.b16 %v564
        %v1935 = vunpack.c.l.b16 %v565
        %v1936 = vunpack.c.l.b16 %v566
        %v1937 = vunpack.c.l.b16 %v567
        %v1938 = vunpack.c.l.b16 %v568
        %v1939 = vunpack.c.l.b16 %v569
        %v1940 = vunpack.c.l.b16 %v570
        %v1941 = vunpack.c.l.b16 %v571
        %v1942 = vunpack.c.l.b16 %v572
        %v1943 = vunpack.c.l.b16 %v573
        %v1944 = vunpack.c.l.b16 %v574
        %v1945 = vunpack.c.l.b16 %v575
        %v1946 = vunpack.c.l.b16 %v576
        %v1947 = vunpack.c.l.b16 %v577
        %v1948 = vunpack.c.l.b16 %v578
        %v1949 = vunpack.c.l.b16 %v579
        %v1950 = vunpack.c.l.b16 %v580
        %v1951 = vunpack.c.l.b16 %v581
        %v1952 = vunpack.c.l.b16 %v582
        %v1953 = vunpack.c.l.b16 %v583
        %v1954 = vunpack.c.l.b16 %v584
        %v1955 = vunpack.c.l.b16 %v585
        %v1956 = vunpack.c.l.b16 %v586
        %v1957 = vunpack.c.l.b16 %v587
        %v1958 = vunpack.c.l.b16 %v588
        %v1959 = vunpack.c.l.b16 %v589
        %v1960 = vunpack.c.l.b16 %v590
        %v1961 = vunpack.c.l.b16 %v591
        %v1962 = vunpack.c.l.b16 %v592
        %v1963 = vunpack.c.l.b16 %v593
        %v1964 = vunpack.c.l.b16 %v594
        %v1965 = vunpack.c.l.b16 %v595
        %v1966 = vunpack.c.l.b16 %v596
        %v1967 = vunpack.c.l.b16 %v597
        %v1968 = vunpack.c.l.b16 %v598
        %v1969 = vunpack.c.l.b16 %v599
        %v1970 = vunpack.c.l.b16 %v600
        %v1971 = vunpack.c.l.b16 %v601
        %v1972 = vunpack.c.l.b16 %v602
        %v1973 = vunpack.c.l.b16 %v603
        %v1974 = vunpack.c.l.b16 %v604
        %v1975 = vunpack.c.l.b16 %v605
        %v1976 = vunpack.c.l.b16 %v606
        %v1977 = vunpack.c.l.b16 %v607
        %v1978 = vunpack.c.l.b16 %v608
        %v1979 = vunpack.c.l.b16 %v609
        %v1980 = vunpack.c.l.b16 %v610
        %v1981 = vunpack.c.l.b16 %v611
        %v1982 = vunpack.c.l.b16 %v612
        %v1983 = vunpack.c.l.b16 %v613
        %v1984 = vunpack.c.l.b16 %v614
        %v1985 = vunpack.c.l.b16 %v615
        %v1986 = vunpack.c.l.b16 %v616
        %v1987 = vunpack.c.l.b16 %v617
        %v1988 = vunpack.c.l.b16 %v618
        %v1989 = vunpack.c.l.b16 %v619
        %v1990 = vunpack.c.l.b16 %v620
        %v1991 = vunpack.c.l.b16 %v621
        %v1992 = vunpack.c.l.b16 %v622
        %v1993 = vunpack.c.l.b16 %v623
        %v1994 = vunpack.c.l.b16 %v624
        %v1995 = vunpack.c.l.b16 %v625
        %v1996 = vunpack.c.l.b16 %v626
        %v1997 = vunpack.c.l.b16 %v627
        %v1998 = vunpack.c.l.b16 %v628
        %v1999 = vunpack.c.l.b16 %v629
        %v2000 = vunpack.c.l.b16 %v630
        %v2001 = vunpack.c.l.b16 %v631
        %v2002 = vunpack.c.l.b16 %v632
        %v2003 = vunpack.c.l.b16 %v633
        %v2004 = vunpack.c.l.b16 %v634
        %v2005 = vunpack.c.l.b16 %v635
        %v2006 = vunpack.c.l.b16 %v636
        %v2007 = vunpack.c.l.b16 %v637
        %v2008 = vunpack.c.l.b16 %v638
        %v2009 = vunpack.c.l.b16 %v639
        %v2010 = vunpack.c.l.b16 %v640
        %v2011 = vunpack.c.l.b16 %v641
        %v2012 = vunpack.c.l.b16 %v642
        %v2013 = vunpack.c.l.b16 %v643
        %v2014 = vunpack.c.l.b16 %v644
        %v2015 = vunpack.c.l.b16 %v645
        %v2016 = vunpack.c.l.b16 %v646
        %v2017 = vunpack.c.l.b16 %v647
        %v2018 = vunpack.c.l.b16 %v648
        %v2019 = vunpack.c.l.b16 %v649
        %v2020 = vunpack.c.l.b16 %v650
        %v2021 = vunpack.c.l.b16 %v651
        %v2022 = vunpack.c.l.b16 %v652
        %v2023 = vunpack.c.l.b16 %v653
        %v2024 = vunpack.c.l.b16 %v654
        %v2025 = vunpack.c.l.b16 %v655
        %v2026 = vunpack.c.l.b16 %v656
        %v2027 = vunpack.c.l.b16 %v657
        %v2028 = vunpack.c.l.b16 %v658
        %v2029 = vunpack.c.l.b16 %v659
        %v2030 = vunpack.c.l.b16 %v660
        %v2031 = vunpack.c.l.b16 %v661
        %v2032 = vunpack.c.l.b16 %v662
        %v2033 = vunpack.c.l.b16 %v663
        %v2034 = vunpack.c.l.b16 %v664
        %v2035 = vunpack.c.l.b16 %v665
        %v2036 = vunpack.c.l.b16 %v666
        %v2037 = vunpack.c.l.b16 %v667
        %v2038 = vunpack.c.l.b16 %v668
        %v2039 = vunpack.c.l.b16 %v669
        %v2040 = vunpack.c.l.b16 %v670
        %v2041 = vunpack.c.l.b16 %v671
        %v2042 = vunpack.c.l.b16 %v672
        %v2043 = vunpack.c.l.b16 %v673
        %v2044 = vunpack.c.l.b16 %v674
        %v2045 = vunpack.c.l.b16 %v675
        %v2046 = vunpack.c.l.b16 %v676
        %v2047 = vunpack.c.l.b16 %v677
        %v2048 = vunpack.c.l.b16 %v678
        %v2049 = vunpack.c.l.b16 %v679
        %v2050 = vunpack.c.l.b16 %v680
        %v2051 = vunpack.c.l.b16 %v681
        %v2052 = vunpack.c.l.b16 %v682
        %v2053 = vunpack.c.l.b16 %v683
        %v2054 = vunpack.c.l.b16 %v684
        %v2055 = vunpack.c.l.b16 %v685
        %v2056 = vunpack.c.l.b16 %v686
        %v2057 = vunpack.c.l.b16 %v687
        %v2058 = vunpack.c.l.b16 %v688
        %v2059 = vunpack.c.l.b16 %v689
        %v2060 = vunpack.c.l.b16 %v690
        %v2061 = vunpack.c.l.b16 %v691
        %v2062 = vunpack.c.l.b16 %v692
        %v2063 = vunpack.c.l.b16 %v693
        %v2064 = vunpack.c.l.b16 %v694
        %v2065 = vunpack.c.l.b16 %v695
        %v2066 = vunpack.c.l.b16 %v696
        %v2067 = vunpack.c.l.b16 %v697
        %v2068 = vunpack.c.l.b16 %v698
        %v2069 = vunpack.c.l.b16 %v699
        %v2070 = vunpack.c.l.b16 %v700
        %v2071 = vunpack.c.l.b16 %v701
        %v2072 = vunpack.c.l.b16 %v702
        %v2073 = vunpack.c.l.b16 %v703
        %v2074 = vunpack.c.l.b16 %v704
        %v2075 = vunpack.c.l.b16 %v705
        %v2076 = vunpack.c.l.b16 %v706
        %v2077 = vunpack.c.l.b16 %v707
        %v2078 = vunpack.c.l.b16 %v708
        %v2079 = vunpack.c.l.b16 %v709
        %v2080 = vunpack.c.l.b16 %v710
        %v2081 = vunpack.c.l.b16 %v711
        %v2082 = vunpack.c.l.b16 %v712
        %v2083 = vunpack.c.l.b16 %v713
        %v2084 = vunpack.c.l.b16 %v714
        %v2085 = vunpack.c.l.b16 %v715
        %v2086 = vunpack.c.l.b16 %v716
        %v2087 = vunpack.c.l.b16 %v717
        %v2088 = vunpack.c.l.b16 %v718
        %v2089 = vunpack.c.l.b16 %v719
        %v2090 = vunpack.c.l.b16 %v720
        %v2091 = vunpack.c.l.b16 %v721
        %v2092 = vunpack.c.l.b16 %v722
        %v2093 = vunpack.c.l.b16 %v723
        %v2094 = vunpack.c.l.b16 %v724
        %v2095 = vunpack.c.l.b16 %v725
        %v2096 = vunpack.c.l.b16 %v726
        %v2097 = vunpack.c.l.b16 %v727
        %v2098 = vunpack.c.l.b16 %v728
        %v2099 = vunpack.c.l.b16 %v729
        %v2100 = vunpack.c.l.b16 %v730
        %v2101 = vunpack.c.l.b16 %v731
        %v2102 = vunpack.c.l.b16 %v732
        %v2103 = vunpack.c.l.b16 %v733
        %v2104 = vunpack.c.l.b16 %v734
        %v2105 = vunpack.c.l.b16 %v735
        %v2106 = vunpack.c.l.b16 %v736
        %v2107 = vunpack.c.l.b16 %v737
        %v2108 = vunpack.c.l.b16 %v738
        %v2109 = vunpack.c.l.b16 %v739
        %v2110 = vunpack.c.l.b16 %v740
        %v2111 = vunpack.c.l.b16 %v741
        %v2112 = vunpack.c.l.b16 %v742
        %v2113 = vunpack.c.l.b16 %v743
        %v2114 = vunpack.c.l.b16 %v744
        %v2115 = vunpack.c.l.b16 %v745
        %v2116 = vunpack.c.l.b16 %v746
        %v2117 = vunpack.c.l.b16 %v747
        %v2118 = vunpack.c.l.b16 %v748
        %v2119 = vunpack.c.l.b16 %v749
        %v2120 = vunpack.c.l.b16 %v750
        %v2121 = vunpack.c.l.b16 %v751
        %v2122 = vunpack.c.l.b16 %v752
        %v2123 = vunpack.c.l.b16 %v753
        %v2124 = vunpack.c.l.b16 %v754
        %v2125 = vunpack.c.l.b16 %v755
        %v2126 = vunpack.c.l.b16 %v756
        %v2127 = vunpack.c.l.b16 %v757
        %v2128 = vunpack.c.l.b16 %v758
        %v2129 = vunpack.c.l.b16 %v759
        %v2130 = vunpack.c.l.b16 %v760
        %v2131 = vunpack.c.l.b16 %v761
        %v2132 = vunpack.c.l.b16 %v762
        %v2133 = vunpack.c.l.b16 %v763
        %v2134 = vunpack.c.l.b16 %v764
        %v2135 = vunpack.c.l.b16 %v765
        %v2136 = vunpack.c.l.b16 %v766
        %v2137 = vunpack.c.l.b16 %v767
        %v2138 = vunpack.c.l.b16 %v768
        %v2139 = vunpack.c.l.b16 %v769
        %v2140 = vunpack.c.l.b16 %v770
        %v2141 = vunpack.c.l.b16 %v771
        %v2142 = vunpack.c.l.b16 %v772
        %v2143 = vunpack.c.l.b16 %v773
        %v2144 = vunpack.c.l.b16 %v774
        %v2145 = vunpack.c.l.b16 %v775
        %v2146 = vunpack.c.l.b16 %v776
        %v2147 = vunpack.c.l.b16 %v777
        %v2148 = vunpack.c.l.b16 %v778
        %v2149 = vunpack.c.l.b16 %v779
        %v2150 = vunpack.c.l.b16 %v780
        %v2151 = vunpack.c.l.b16 %v781
        %v2152 = vunpack.c.l.b16 %v782
        %v2153 = vunpack.c.l.b16 %v783
        %v2154 = vunpack.c.l.b16 %v784
        %v2155 = vunpack.c.l.b16 %v785
        %v2156 = vunpack.c.l.b16 %v786
        %v2157 = vunpack.c.l.b16 %v787
        %v2158 = vunpack.c.l.b16 %v788
        %v2159 = vunpack.c.l.b16 %v789
        %v2160 = vunpack.c.l.b16 %v790
        %v2161 = vunpack.c.l.b16 %v791
        %v2162 = vunpack.c.l.b16 %v792
        %v2163 = vunpack.c.l.b16 %v793
        %v2164 = vunpack.c.l.b16 %v794
        %v2165 = vunpack.c.l.b16 %v795
        %v2166 = vunpack.c.l.b16 %v796
        %v2167 = vunpack.c.l.b16 %v797
        %v2168 = vunpack.c.l.b16 %v798
        %v2169 = vunpack.c.l.b16 %v799
        %v2170 = vunpack.c.l.b16 %v800
        %v2171 = vunpack.c.l.b16 %v801
        %v2172 = vunpack.c.l.b16 %v802
        %v2173 = vunpack.c.l.b16 %v803
        %v2174 = vunpack.c.l.b16 %v804
        %v2175 = vunpack.c.l.b16 %v805
        %v2176 = vunpack.c.l.b16 %v806
        %v2177 = vunpack.c.l.b16 %v807
        %v2178 = vunpack.c.l.b16 %v808
        %v2179 = vunpack.c.l.b16 %v809
        %v2180 = vunpack.c.l.b16 %v810
        %v2181 = vunpack.c.l.b16 %v811
        %v2182 = vunpack.c.l.b16 %v812
        %v2183 = vunpack.c.l.b16 %v813
        %v2184 = vunpack.c.l.b16 %v814
        %v2185 = vunpack.c.l.b16 %v815
        %v2186 = vunpack.c.l.b16 %v816
        %v2187 = vunpack.c.l.b16 %v817
        %v2188 = vunpack.c.l.b16 %v818
        %v2189 = vunpack.c.l.b16 %v819
        %v2190 = vunpack.c.l.b16 %v820
        %v2191 = vunpack.c.l.b16 %v821
        %v2192 = vunpack.c.l.b16 %v822
        %v2193 = vunpack.c.l.b16 %v823
        %v2194 = vunpack.c.l.b16 %v824
        %v2195 = vunpack.c.l.b16 %v825
        %v2196 = vunpack.c.l.b16 %v826
        %v2197 = vunpack.c.l.b16 %v827
        %v2198 = vunpack.c.l.b16 %v828
        %v2199 = vunpack.c.l.b16 %v829
        %v2200 = vunpack.c.l.b16 %v830
        %v2201 = vunpack.c.l.b16 %v831
        %v2202 = vunpack.c.l.b16 %v832
        %v2203 = vunpack.c.l.b16 %v833
        %v2204 = vunpack.c.l.b16 %v834
        %v2205 = vunpack.c.l.b16 %v835
        %v2206 = vunpack.c.l.b16 %v836
        %v2207 = vunpack.c.l.b16 %v837
        %v2208 = vunpack.c.l.b16 %v838
        %v2209 = vunpack.c.l.b16 %v839
        %v2210 = vunpack.c.l.b16 %v840
        %v2211 = vunpack.c.l.b16 %v841
        %v2212 = vunpack.c.l.b16 %v842
        %v2213 = vunpack.c.l.b16 %v843
        %v2214 = vunpack.c.l.b16 %v844
        %v2215 = vunpack.c.l.b16 %v845
        %v2216 = vunpack.c.l.b16 %v846
        %v2217 = vunpack.c.l.b16 %v847
        %v2218 = vunpack.c.l.b16 %v848
        %v2219 = vunpack.c.l.b16 %v849
        %v2220 = vunpack.c.l.b16 %v850
        %v2221 = vunpack.c.l.b16 %v851
        %v2222 = vunpack.c.l.b16 %v852
        %v2223 = vunpack.c.l.b16 %v853
        %v2224 = vunpack.c.l.b16 %v854
        %v2225 = vunpack.c.l.b16 %v855
        %v2226 = vunpack.c.l.b16 %v856
        %v2227 = vunpack.c.l.b16 %v857
        %v2228 = vunpack.c.l.b16 %v858
        %v2229 = vunpack.c.l.b16 %v859
        %v2230 = vunpack.c.l.b16 %v860
        %v2231 = vunpack.c.l.b16 %v861
        %v2232 = vunpack.c.l.b16 %v862
        %v2233 = vunpack.c.l.b16 %v863
        %v2234 = vunpack.c.l.b16 %v864
        %v2235 = vunpack.c.l.b16 %v865
        %v2236 = vunpack.c.l.b16 %v866
        %v2237 = vunpack.c.l.b16 %v867
        %v2238 = vunpack.c.l.b16 %v868
        %v2239 = vunpack.c.l.b16 %v869
        %v2240 = vunpack.c.l.b16 %v870
        %v2241 = vunpack.c.l.b16 %v871
        %v2242 = vunpack.c.l.b16 %v872
        %v2243 = vunpack.c.l.b16 %v873
        %v2244 = vunpack.c.l.b16 %v874
        %v2245 = vunpack.c.l.b16 %v875
        %v2246 = vunpack.c.l.b16 %v876
        %v2247 = vunpack.c.l.b16 %v877
        %v2248 = vunpack.c.l.b16 %v878
        %v2249 = vunpack.c.l.b16 %v879
        %v2250 = vunpack.c.l.b16 %v880
        %v2251 = vunpack.c.l.b16 %v881
        %v2252 = vunpack.c.l.b16 %v882
        %v2253 = vunpack.c.l.b16 %v883
        %v2254 = vunpack.c.l.b16 %v884
        %v2255 = vunpack.c.l.b16 %v885
        %v2256 = vunpack.c.l.b16 %v886
        %v2257 = vunpack.c.l.b16 %v887
        %v2258 = vunpack.c.l.b16 %v888
        %v2259 = vunpack.c.l.b16 %v889
        %v2260 = vunpack.c.l.b16 %v890
        %v2261 = vunpack.c.l.b16 %v891
        %v2262 = vunpack.c.l.b16 %v892
        %v2263 = vunpack.c.l.b16 %v893
        %v2264 = vunpack.c.l.b16 %v894
        %v2265 = vunpack.c.l.b16 %v895
        %v2266 = vunpack.c.l.b16 %v896
        %v2267 = vunpack.c.l.b16 %v897
        %v2268 = vunpack.c.l.b16 %v898
        %v2269 = vunpack.c.l.b16 %v899
        %v2270 = vunpack.c.l.b16 %v900
        %v2271 = vunpack.c.l.b16 %v901
        %v2272 = vunpack.c.l.b16 %v902
        %v2273 = vunpack.c.l.b16 %v903
        %v2274 = vunpack.c.l.b16 %v904
        %v2275 = vunpack.c.l.b16 %v905
        %v2276 = vunpack.c.l.b16 %v906
        %v2277 = vunpack.c.l.b16 %v907
        %v2278 = vunpack.c.l.b16 %v908
        %v2279 = vunpack.c.l.b16 %v909
        %v2280 = vunpack.c.l.b16 %v910
        %v2281 = vunpack.c.l.b16 %v911
        %v2282 = vunpack.c.l.b16 %v912
        %v2283 = vunpack.c.l.b16 %v913
        %v2284 = vunpack.c.l.b16 %v914
        %v2285 = vunpack.c.l.b16 %v915
        %v2286 = vunpack.c.l.b16 %v916
        %v2287 = vunpack.c.l.b16 %v917
        %v2288 = vunpack.c.l.b16 %v918
        %v2289 = vunpack.c.l.b16 %v919
        %v2290 = vunpack.c.l.b16 %v920
        %v2291 = vunpack.c.l.b16 %v921
        %v2292 = vunpack.c.l.b16 %v922
        %v2293 = vunpack.c.l.b16 %v923
        %v2294 = vunpack.c.l.b16 %v924
        %v2295 = vunpack.c.l.b16 %v925
        %v2296 = vunpack.c.l.b16 %v926
        %v2297 = vunpack.c.l.b16 %v927
        %v2298 = vunpack.c.l.b16 %v928
        %v2299 = vunpack.c.l.b16 %v929
        %v2300 = vunpack.c.l.b16 %v930
        %v2301 = vunpack.c.l.b16 %v931
        %v2302 = vunpack.c.l.b16 %v932
        %v2303 = vunpack.c.l.b16 %v933
        %v2304 = vunpack.c.l.b16 %v934
        %v2305 = vunpack.c.l.b16 %v935
        %v2306 = vunpack.c.l.b16 %v936
        %v2307 = vpack.c.b16 %v1668, %v1667
        %v2308 = vpack.c.b16 %v1670, %v1669
        %v2309 = vpack.c.b16 %v1672, %v1671
        %v2310 = vpack.c.b16 %v1674, %v1673
        %v2311 = vpack.c.b16 %v1676, %v1675
        %v2312 = vpack.c.b16 %v1678, %v1677
        %v2313 = vpack.c.b16 %v1680, %v1679
        %v2314 = vpack.c.b16 %v1682, %v1681
        %v2315 = vpack.c.b16 %v1684, %v1683
        %v2316 = vpack.c.b16 %v1686, %v1685
        %v2317 = vpack.c.b16 %v1688, %v1687
        %v2318 = vpack.c.b16 %v1690, %v1689
        %v2319 = vpack.c.b16 %v1692, %v1691
        %v2320 = vpack.c.b16 %v1694, %v1693
        %v2321 = vpack.c.b16 %v1696, %v1695
        %v2322 = vpack.c.b16 %v1698, %v1697
        %v2323 = vpack.c.b16 %v1700, %v1699
        %v2324 = vpack.c.b16 %v1702, %v1701
        %v2325 = vpack.c.b16 %v1704, %v1703
        %v2326 = vpack.c.b16 %v1706, %v1705
        %v2327 = vpack.c.b16 %v1708, %v1707
        %v2328 = vpack.c.b16 %v1710, %v1709
        %v2329 = vpack.c.b16 %v1712, %v1711
        %v2330 = vpack.c.b16 %v1714, %v1713
        %v2331 = vpack.c.b16 %v1716, %v1715
        %v2332 = vpack.c.b16 %v1718, %v1717
        %v2333 = vpack.c.b16 %v1720, %v1719
        %v2334 = vpack.c.b16 %v1722, %v1721
        %v2335 = vpack.c.b16 %v1724, %v1723
        %v2336 = vpack.c.b16 %v1726, %v1725
        %v2337 = vpack.c.b16 %v1728, %v1727
        %v2338 = vpack.c.b16 %v1730, %v1729
        %v2339 = vpack.c.b16 %v1732, %v1731
        %v2340 = vpack.c.b16 %v1734, %v1733
        %v2341 = vpack.c.b16 %v1736, %v1735
        %v2342 = vpack.c.b16 %v1738, %v1737
        %v2343 = vpack.c.b16 %v1740, %v1739
        %v2344 = vpack.c.b16 %v1742, %v1741
        %v2345 = vpack.c.b16 %v1744, %v1743
        %v2346 = vpack.c.b16 %v1746, %v1745
        %v2347 = vpack.c.b16 %v1748, %v1747
        %v2348 = vpack.c.b16 %v1750, %v1749
        %v2349 = vpack.c.b16 %v1752, %v1751
        %v2350 = vpack.c.b16 %v1754, %v1753
        %v2351 = vpack.c.b16 %v1756, %v1755
        %v2352 = vpack.c.b16 %v1758, %v1757
        %v2353 = vpack.c.b16 %v1760, %v1759
        %v2354 = vpack.c.b16 %v1762, %v1761
        %v2355 = vpack.c.b16 %v1764, %v1763
        %v2356 = vpack.c.b16 %v1766, %v1765
        %v2357 = vpack.c.b16 %v1768, %v1767
        %v2358 = vpack.c.b16 %v1770, %v1769
        %v2359 = vpack.c.b16 %v1772, %v1771
        %v2360 = vpack.c.b16 %v1774, %v1773
        %v2361 = vpack.c.b16 %v1776, %v1775
        %v2362 = vpack.c.b16 %v1778, %v1777
        %v2363 = vpack.c.b16 %v1780, %v1779
        %v2364 = vpack.c.b16 %v1782, %v1781
        %v2365 = vpack.c.b16 %v1784, %v1783
        %v2366 = vpack.c.b16 %v1786, %v1785
        %v2367 = vpack.c.b16 %v1788, %v1787
        %v2368 = vpack.c.b16 %v1790, %v1789
        %v2369 = vpack.c.b16 %v1792, %v1791
        %v2370 = vpack.c.b16 %v1794, %v1793
        %v2371 = vpack.c.b16 %v1796, %v1795
        %v2372 = vpack.c.b16 %v1798, %v1797
        %v2373 = vpack.c.b16 %v1800, %v1799
        %v2374 = vpack.c.b16 %v1802, %v1801
        %v2375 = vpack.c.b16 %v1804, %v1803
        %v2376 = vpack.c.b16 %v1806, %v1805
        %v2377 = vpack.c.b16 %v1808, %v1807
        %v2378 = vpack.c.b16 %v1810, %v1809
        %v2379 = vpack.c.b16 %v1812, %v1811
        %v2380 = vpack.c.b16 %v1814, %v1813
        %v2381 = vpack.c.b16 %v1816, %v1815
        %v2382 = vpack.c.b16 %v1818, %v1817
        %v2383 = vpack.c.b16 %v1820, %v1819
        %v2384 = vpack.c.b16 %v1822, %v1821
        %v2385 = vpack.c.b16 %v1824, %v1823
        %v2386 = vpack.c.b16 %v1826, %v1825
        %v2387 = vpack.c.b16 %v1828, %v1827
        %v2388 = vpack.c.b16 %v1830, %v1829
        %v2389 = vpack.c.b16 %v1832, %v1831
        %v2390 = vpack.c.b16 %v1834, %v1833
        %v2391 = vpack.c.b16 %v1836, %v1835
        %v2392 = vpack.c.b16 %v1838, %v1837
        %v2393 = vpack.c.b16 %v1840, %v1839
        %v2394 = vpack.c.b16 %v1842, %v1841
        %v2395 = vpack.c.b16 %v1844, %v1843
        %v2396 = vpack.c.b16 %v1846, %v1845
        %v2397 = vpack.c.b16 %v1848, %v1847
        %v2398 = vpack.c.b16 %v1850, %v1849
        %v2399 = vpack.c.b16 %v1852, %v1851
        %v2400 = vpack.c.b16 %v1854, %v1853
        %v2401 = vpack.c.b16 %v1856, %v1855
        %v2402 = vpack.c.b16 %v1858, %v1857
        %v2403 = vpack.c.b16 %v1860, %v1859
        %v2404 = vpack.c.b16 %v1862, %v1861
        %v2405 = vpack.c.b16 %v1864, %v1863
        %v2406 = vpack.c.b16 %v1866, %v1865
        %v2407 = vpack.c.b16 %v1868, %v1867
        %v2408 = vpack.c.b16 %v1870, %v1869
        %v2409 = vpack.c.b16 %v1872, %v1871
        %v2410 = vpack.c.b16 %v1874, %v1873
        %v2411 = vpack.c.b16 %v1876, %v1875
        %v2412 = vpack.c.b16 %v1878, %v1877
        %v2413 = vpack.c.b16 %v1880, %v1879
        %v2414 = vpack.c.b16 %v1882, %v1881
        %v2415 = vpack.c.b16 %v1884, %v1883
        %v2416 = vpack.c.b16 %v1886, %v1885
        %v2417 = vpack.c.b16 %v1888, %v1887
        %v2418 = vpack.c.b16 %v1890, %v1889
        %v2419 = vpack.c.b16 %v1892, %v1891
        %v2420 = vpack.c.b16 %v1894, %v1893
        %v2421 = vpack.c.b16 %v1896, %v1895
        %v2422 = vpack.c.b16 %v1898, %v1897
        %v2423 = vpack.c.b16 %v1900, %v1899
        %v2424 = vpack.c.b16 %v1902, %v1901
        %v2425 = vpack.c.b16 %v1904, %v1903
        %v2426 = vpack.c.b16 %v1906, %v1905
        %v2427 = vpack.c.b16 %v1908, %v1907
        %v2428 = vpack.c.b16 %v1910, %v1909
        %v2429 = vpack.c.b16 %v1912, %v1911
        %v2430 = vpack.c.b16 %v1914, %v1913
        %v2431 = vpack.c.b16 %v1916, %v1915
        %v2432 = vpack.c.b16 %v1918, %v1917
        %v2433 = vpack.c.b16 %v1920, %v1919
        %v2434 = vpack.c.b16 %v1922, %v1921
        %v2435 = vpack.c.b16 %v1924, %v1923
        %v2436 = vpack.c.b16 %v1926, %v1925
        %v2437 = vpack.c.b16 %v1928, %v1927
        %v2438 = vpack.c.b16 %v1930, %v1929
        %v2439 = vpack.c.b16 %v1932, %v1931
        %v2440 = vpack.c.b16 %v1934, %v1933
        %v2441 = vpack.c.b16 %v1936, %v1935
        %v2442 = vpack.c.b16 %v1938, %v1937
        %v2443 = vpack.c.b16 %v1940, %v1939
        %v2444 = vpack.c.b16 %v1942, %v1941
        %v2445 = vpack.c.b16 %v1944, %v1943
        %v2446 = vpack.c.b16 %v1946, %v1945
        %v2447 = vpack.c.b16 %v1948, %v1947
        %v2448 = vpack.c.b16 %v1950, %v1949
        %v2449 = vpack.c.b16 %v1952, %v1951
        %v2450 = vpack.c.b16 %v1954, %v1953
        %v2451 = vpack.c.b16 %v1956, %v1955
        %v2452 = vpack.c.b16 %v1958, %v1957
        %v2453 = vpack.c.b16 %v1960, %v1959
        %v2454 = vpack.c.b16 %v1962, %v1961
        %v2455 = vpack.c.b16 %v1964, %v1963
        %v2456 = vpack.c.b16 %v1966, %v1965
        %v2457 = vpack.c.b16 %v1968, %v1967
        %v2458 = vpack.c.b16 %v1970, %v1969
        %v2459 = vpack.c.b16 %v1972, %v1971
        %v2460 = vpack.c.b16 %v1974, %v1973
        %v2461 = vpack.c.b16 %v1976, %v1975
        %v2462 = vpack.c.b16 %v1978, %v1977
        %v2463 = vpack.c.b16 %v1980, %v1979
        %v2464 = vpack.c.b16 %v1982, %v1981
        %v2465 = vpack.c.b16 %v1984, %v1983
        %v2466 = vpack.c.b16 %v1986, %v1985
        %v2467 = vpack.c.b16 %v1988, %v1987
        %v2468 = vpack.c.b16 %v1990, %v1989
        %v2469 = vpack.c.b16 %v1992, %v1991
        %v2470 = vpack.c.b16 %v1994, %v1993
        %v2471 = vpack.c.b16 %v1996, %v1995
        %v2472 = vpack.c.b16 %v1998, %v1997
        %v2473 = vpack.c.b16 %v2000, %v1999
        %v2474 = vpack.c.b16 %v2002, %v2001
        %v2475 = vpack.c.b16 %v2004, %v2003
        %v2476 = vpack.c.b16 %v2006, %v2005
        %v2477 = vpack.c.b16 %v2008, %v2007
        %v2478 = vpack.c.b16 %v2010, %v2009
        %v2479 = vpack.c.b16 %v2012, %v2011
        %v2480 = vpack.c.b16 %v2014, %v2013
        %v2481 = vpack.c.b16 %v2016, %v2015
        %v2482 = vpack.c.b16 %v2018, %v2017
        %v2483 = vpack.c.b16 %v2020, %v2019
        %v2484 = vpack.c.b16 %v2022, %v2021
        %v2485 = vpack.c.b16 %v2024, %v2023
        %v2486 = vpack.c.b16 %v2026, %v2025
        %v2487 = vpack.c.b16 %v2028, %v2027
        %v2488 = vpack.c.b16 %v2030, %v2029
        %v2489 = vpack.c.b16 %v2032, %v2031
        %v2490 = vpack.c.b16 %v2034, %v2033
        %v2491 = vpack.c.b16 %v2036, %v2035
        %v2492 = vpack.c.b16 %v2038, %v2037
        %v2493 = vpack.c.b16 %v2040, %v2039
        %v2494 = vpack.c.b16 %v2042, %v2041
        %v2495 = vpack.c.b16 %v2044, %v2043
        %v2496 = vpack.c.b16 %v2046, %v2045
        %v2497 = vpack.c.b16 %v2048, %v2047
        %v2498 = vpack.c.b16 %v2050, %v2049
        %v2499 = vpack.c.b16 %v2052, %v2051
        %v2500 = vpack.c.b16 %v2054, %v2053
        %v2501 = vpack.c.b16 %v2056, %v2055
        %v2502 = vpack.c.b16 %v2058, %v2057
        %v2503 = vpack.c.b16 %v2060, %v2059
        %v2504 = vpack.c.b16 %v2062, %v2061
        %v2505 = vpack.c.b16 %v2064, %v2063
        %v2506 = vpack.c.b16 %v2066, %v2065
        %v2507 = vpack.c.b16 %v2068, %v2067
        %v2508 = vpack.c.b16 %v2070, %v2069
        %v2509 = vpack.c.b16 %v2072, %v2071
        %v2510 = vpack.c.b16 %v2074, %v2073
        %v2511 = vpack.c.b16 %v2076, %v2075
        %v2512 = vpack.c.b16 %v2078, %v2077
        %v2513 = vpack.c.b16 %v2080, %v2079
        %v2514 = vpack.c.b16 %v2082, %v2081
        %v2515 = vpack.c.b16 %v2084, %v2083
        %v2516 = vpack.c.b16 %v2086, %v2085
        %v2517 = vpack.c.b16 %v2088, %v2087
        %v2518 = vpack.c.b16 %v2090, %v2089
        %v2519 = vpack.c.b16 %v2092, %v2091
        %v2520 = vpack.c.b16 %v2094, %v2093
        %v2521 = vpack.c.b16 %v2096, %v2095
        %v2522 = vpack.c.b16 %v2098, %v2097
        %v2523 = vpack.c.b16 %v2100, %v2099
        %v2524 = vpack.c.b16 %v2102, %v2101
        %v2525 = vpack.c.b16 %v2104, %v2103
        %v2526 = vpack.c.b16 %v2106, %v2105
        %v2527 = vpack.c.b16 %v2108, %v2107
        %v2528 = vpack.c.b16 %v2110, %v2109
        %v2529 = vpack.c.b16 %v2112, %v2111
        %v2530 = vpack.c.b16 %v2114, %v2113
        %v2531 = vpack.c.b16 %v2116, %v2115
        %v2532 = vpack.c.b16 %v2118, %v2117
        %v2533 = vpack.c.b16 %v2120, %v2119
        %v2534 = vpack.c.b16 %v2122, %v2121
        %v2535 = vpack.c.b16 %v2124, %v2123
        %v2536 = vpack.c.b16 %v2126, %v2125
        %v2537 = vpack.c.b16 %v2128, %v2127
        %v2538 = vpack.c.b16 %v2130, %v2129
        %v2539 = vpack.c.b16 %v2132, %v2131
        %v2540 = vpack.c.b16 %v2134, %v2133
        %v2541 = vpack.c.b16 %v2136, %v2135
        %v2542 = vpack.c.b16 %v2138, %v2137
        %v2543 = vpack.c.b16 %v2140, %v2139
        %v2544 = vpack.c.b16 %v2142, %v2141
        %v2545 = vpack.c.b16 %v2144, %v2143
        %v2546 = vpack.c.b16 %v2146, %v2145
        %v2547 = vpack.c.b16 %v2148, %v2147
        %v2548 = vpack.c.b16 %v2150, %v2149
        %v2549 = vpack.c.b16 %v2152, %v2151
        %v2550 = vpack.c.b16 %v2154, %v2153
        %v2551 = vpack.c.b16 %v2156, %v2155
        %v2552 = vpack.c.b16 %v2158, %v2157
        %v2553 = vpack.c.b16 %v2160, %v2159
        %v2554 = vpack.c.b16 %v2162, %v2161
        %v2555 = vpack.c.b16 %v2164, %v2163
        %v2556 = vpack.c.b16 %v2166, %v2165
        %v2557 = vpack.c.b16 %v2168, %v2167
        %v2558 = vpack.c.b16 %v2170, %v2169
        %v2559 = vpack.c.b16 %v2172, %v2171
        %v2560 = vpack.c.b16 %v2174, %v2173
        %v2561 = vpack.c.b16 %v2176, %v2175
        %v2562 = vpack.c.b16 %v2178, %v2177
        %v2563 = vpack.c.b16 %v2180, %v2179
        %v2564 = vpack.c.b16 %v2182, %v2181
        %v2565 = vpack.c.b16 %v2184, %v2183
        %v2566 = vpack.c.b16 %v2186, %v2185
        %v2567 = vpack.c.b16 %v2188, %v2187
        %v2568 = vpack.c.b16 %v2190, %v2189
        %v2569 = vpack.c.b16 %v2192, %v2191
        %v2570 = vpack.c.b16 %v2194, %v2193
        %v2571 = vpack.c.b16 %v2196, %v2195
        %v2572 = vpack.c.b16 %v2198, %v2197
        %v2573 = vpack.c.b16 %v2200, %v2199
        %v2574 = vpack.c.b16 %v2202, %v2201
        %v2575 = vpack.c.b16 %v2204, %v2203
        %v2576 = vpack.c.b16 %v2206, %v2205
        %v2577 = vpack.c.b16 %v2208, %v2207
        %v2578 = vpack.c.b16 %v2210, %v2209
        %v2579 = vpack.c.b16 %v2212, %v2211
        %v2580 = vpack.c.b16 %v2214, %v2213
        %v2581 = vpack.c.b16 %v2216, %v2215
        %v2582 = vpack.c.b16 %v2218, %v2217
        %v2583 = vpack.c.b16 %v2220, %v2219
        %v2584 = vpack.c.b16 %v2222, %v2221
        %v2585 = vpack.c.b16 %v2224, %v2223
        %v2586 = vpack.c.b16 %v2226, %v2225
        %v2587 = vpack.c.b16 %v2228, %v2227
        %v2588 = vpack.c.b16 %v2230, %v2229
        %v2589 = vpack.c.b16 %v2232, %v2231
        %v2590 = vpack.c.b16 %v2234, %v2233
        %v2591 = vpack.c.b16 %v2236, %v2235
        %v2592 = vpack.c.b16 %v2238, %v2237
        %v2593 = vpack.c.b16 %v2240, %v2239
        %v2594 = vpack.c.b16 %v2242, %v2241
        %v2595 = vpack.c.b16 %v2244, %v2243
        %v2596 = vpack.c.b16 %v2246, %v2245
        %v2597 = vpack.c.b16 %v2248, %v2247
        %v2598 = vpack.c.b16 %v2250, %v2249
        %v2599 = vpack.c.b16 %v2252, %v2251
        %v2600 = vpack.c.b16 %v2254, %v2253
        %v2601 = vpack.c.b16 %v2256, %v2255
        %v2602 = vpack.c.b16 %v2258, %v2257
        %v2603 = vpack.c.b16 %v2260, %v2259
        %v2604 = vpack.c.b16 %v2262, %v2261
        %v2605 = vpack.c.b16 %v2264, %v2263
        %v2606 = vpack.c.b16 %v2266, %v2265
        %v2607 = vpack.c.b16 %v2268, %v2267
        %v2608 = vpack.c.b16 %v2270, %v2269
        %v2609 = vpack.c.b16 %v2272, %v2271
        %v2610 = vpack.c.b16 %v2274, %v2273
        %v2611 = vpack.c.b16 %v2276, %v2275
        %v2612 = vpack.c.b16 %v2278, %v2277
        %v2613 = vpack.c.b16 %v2280, %v2279
        %v2614 = vpack.c.b16 %v2282, %v2281
        %v2615 = vpack.c.b16 %v2284, %v2283
        %v2616 = vpack.c.b16 %v2286, %v2285
        %v2617 = vpack.c.b16 %v2288, %v2287
        %v2618 = vpack.c.b16 %v2290, %v2289
        %v2619 = vpack.c.b16 %v2292, %v2291
        %v2620 = vpack.c.b16 %v2294, %v2293
        %v2621 = vpack.c.b16 %v2296, %v2295
        %v2622 = vpack.c.b16 %v2298, %v2297
        %v2623 = vpack.c.b16 %v2300, %v2299
        %v2624 = vpack.c.b16 %v2302, %v2301
        %v2625 = vpack.c.b16 %v2304, %v2303
        %v2626 = vpack.c.b16 %v2306, %v2305
        %2947 = vmatpush.bf16.msra.mxu0 %v2314
        %2948 = vmatpush.bf16.msra.mxu0 %v2313
        %2949 = vmatpush.bf16.msra.mxu0 %v2312
        %2950 = vmatpush.bf16.msra.mxu0 %v2311
        %2951 = vmatpush.bf16.msra.mxu0 %v2310
        %2952 = vmatpush.bf16.msra.mxu0 %v2309
        %2953 = vmatpush.bf16.msra.mxu0 %v2308
        %2954 = vmatpush.bf16.msra.mxu0 %v2307
        %2955 = vmatmul.bf16.gmra.mxu0 %v939
        %v2956 = vpop.f32.mrf.mxu0
        %v2957 = vadd.f32 0.0, %v2956
        %v2958 = vpop.f32.mrf.mxu0
        %2959 = vdwg.mxu0
        %2960 = vmatpush.bf16.msra.mxu0 %v2322
        %2961 = vmatpush.bf16.msra.mxu0 %v2321
        %2962 = vmatpush.bf16.msra.mxu0 %v2320
        %2963 = vmatpush.bf16.msra.mxu0 %v2319
        %2964 = vmatpush.bf16.msra.mxu0 %v2318
        %2965 = vmatpush.bf16.msra.mxu0 %v2317
        %2966 = vmatpush.bf16.msra.mxu0 %v2316
        %2967 = vmatpush.bf16.msra.mxu0 %v2315
        %2968 = vmatmul.bf16.gmra.mxu0 %v940
        %v2969 = vpop.f32.mrf.mxu0
        %v2970 = vadd.f32 %v2957, %v2969
        %v2971 = vpop.f32.mrf.mxu0
        %2972 = vdwg.mxu0
        %2973 = vmatpush.bf16.msra.mxu0 %v2330
        %2974 = vmatpush.bf16.msra.mxu0 %v2329
        %2975 = vmatpush.bf16.msra.mxu0 %v2328
        %2976 = vmatpush.bf16.msra.mxu0 %v2327
        %2977 = vmatpush.bf16.msra.mxu0 %v2326
        %2978 = vmatpush.bf16.msra.mxu0 %v2325
        %2979 = vmatpush.bf16.msra.mxu0 %v2324
        %2980 = vmatpush.bf16.msra.mxu0 %v2323
        %2981 = vmatmul.bf16.gmra.mxu0 %v941
        %v2982 = vpop.f32.mrf.mxu0
        %v2983 = vadd.f32 %v2970, %v2982
        %v2984 = vpop.f32.mrf.mxu0
        %2985 = vdwg.mxu0
        %2986 = vmatpush.bf16.msra.mxu0 %v2338
        %2987 = vmatpush.bf16.msra.mxu0 %v2337
        %2988 = vmatpush.bf16.msra.mxu0 %v2336
        %2989 = vmatpush.bf16.msra.mxu0 %v2335
        %2990 = vmatpush.bf16.msra.mxu0 %v2334
        %2991 = vmatpush.bf16.msra.mxu0 %v2333
        %2992 = vmatpush.bf16.msra.mxu0 %v2332
        %2993 = vmatpush.bf16.msra.mxu0 %v2331
        %2994 = vmatmul.bf16.gmra.mxu0 %v942
        %v2995 = vpop.f32.mrf.mxu0
        %v2996 = vadd.f32 %v2983, %v2995
        %v2997 = vpop.f32.mrf.mxu0
        %2998 = vdwg.mxu0
        %2999 = vmatpush.bf16.msra.mxu0 %v2346
        %3000 = vmatpush.bf16.msra.mxu0 %v2345
        %3001 = vmatpush.bf16.msra.mxu0 %v2344
        %3002 = vmatpush.bf16.msra.mxu0 %v2343
        %3003 = vmatpush.bf16.msra.mxu0 %v2342
        %3004 = vmatpush.bf16.msra.mxu0 %v2341
        %3005 = vmatpush.bf16.msra.mxu0 %v2340
        %3006 = vmatpush.bf16.msra.mxu0 %v2339
        %3007 = vmatmul.bf16.gmra.mxu0 %v943
        %v3008 = vpop.f32.mrf.mxu0
        %v3009 = vadd.f32 %v2996, %v3008
        %v3010 = vpop.f32.mrf.mxu0
        %3011 = vdwg.mxu0
        %3012 = vmatpush.bf16.msra.mxu0 %v2354
        %3013 = vmatpush.bf16.msra.mxu0 %v2353
        %3014 = vmatpush.bf16.msra.mxu0 %v2352
        %3015 = vmatpush.bf16.msra.mxu0 %v2351
        %3016 = vmatpush.bf16.msra.mxu0 %v2350
        %3017 = vmatpush.bf16.msra.mxu0 %v2349
        %3018 = vmatpush.bf16.msra.mxu0 %v2348
        %3019 = vmatpush.bf16.msra.mxu0 %v2347
        %3020 = vmatmul.bf16.gmra.mxu0 %v944
        %v3021 = vpop.f32.mrf.mxu0
        %v3022 = vadd.f32 %v3009, %v3021
        %v3023 = vpop.f32.mrf.mxu0
        %3024 = vdwg.mxu0
        %3025 = vmatpush.bf16.msra.mxu0 %v2362
        %3026 = vmatpush.bf16.msra.mxu0 %v2361
        %3027 = vmatpush.bf16.msra.mxu0 %v2360
        %3028 = vmatpush.bf16.msra.mxu0 %v2359
        %3029 = vmatpush.bf16.msra.mxu0 %v2358
        %3030 = vmatpush.bf16.msra.mxu0 %v2357
        %3031 = vmatpush.bf16.msra.mxu0 %v2356
        %3032 = vmatpush.bf16.msra.mxu0 %v2355
        %3033 = vmatmul.bf16.gmra.mxu0 %v945
        %v3034 = vpop.f32.mrf.mxu0
        %v3035 = vadd.f32 %v3022, %v3034
        %v3036 = vpop.f32.mrf.mxu0
        %3037 = vdwg.mxu0
        %3038 = vmatpush.bf16.msra.mxu0 %v2370
        %3039 = vmatpush.bf16.msra.mxu0 %v2369
        %3040 = vmatpush.bf16.msra.mxu0 %v2368
        %3041 = vmatpush.bf16.msra.mxu0 %v2367
        %3042 = vmatpush.bf16.msra.mxu0 %v2366
        %3043 = vmatpush.bf16.msra.mxu0 %v2365
        %3044 = vmatpush.bf16.msra.mxu0 %v2364
        %3045 = vmatpush.bf16.msra.mxu0 %v2363
        %3046 = vmatmul.bf16.gmra.mxu0 %v946
        %v3047 = vpop.f32.mrf.mxu0
        %v3048 = vadd.f32 %v3035, %v3047
        %v3049 = vpop.f32.mrf.mxu0
        %3050 = vdwg.mxu0
        %3051 = vmatpush.bf16.msra.mxu0 %v2378
        %3052 = vmatpush.bf16.msra.mxu0 %v2377
        %3053 = vmatpush.bf16.msra.mxu0 %v2376
        %3054 = vmatpush.bf16.msra.mxu0 %v2375
        %3055 = vmatpush.bf16.msra.mxu0 %v2374
        %3056 = vmatpush.bf16.msra.mxu0 %v2373
        %3057 = vmatpush.bf16.msra.mxu0 %v2372
        %3058 = vmatpush.bf16.msra.mxu0 %v2371
        %3059 = vmatmul.bf16.gmra.mxu0 %v949
        %v3060 = vpop.f32.mrf.mxu0
        %v3061 = vadd.f32 %v3048, %v3060
        %v3062 = vpop.f32.mrf.mxu0
        %3063 = vdwg.mxu0
        %3064 = vmatpush.bf16.msra.mxu0 %v2386
        %3065 = vmatpush.bf16.msra.mxu0 %v2385
        %3066 = vmatpush.bf16.msra.mxu0 %v2384
        %3067 = vmatpush.bf16.msra.mxu0 %v2383
        %3068 = vmatpush.bf16.msra.mxu0 %v2382
        %3069 = vmatpush.bf16.msra.mxu0 %v2381
        %3070 = vmatpush.bf16.msra.mxu0 %v2380
        %3071 = vmatpush.bf16.msra.mxu0 %v2379
        %3072 = vmatmul.bf16.gmra.mxu0 %v950
        %v3073 = vpop.f32.mrf.mxu0
        %v3074 = vadd.f32 %v3061, %v3073
        %v3075 = vpop.f32.mrf.mxu0
        %3076 = vdwg.mxu0
        %3077 = vmatpush.bf16.msra.mxu0 %v2394
        %3078 = vmatpush.bf16.msra.mxu0 %v2393
        %3079 = vmatpush.bf16.msra.mxu0 %v2392
        %3080 = vmatpush.bf16.msra.mxu0 %v2391
        %3081 = vmatpush.bf16.msra.mxu0 %v2390
        %3082 = vmatpush.bf16.msra.mxu0 %v2389
        %3083 = vmatpush.bf16.msra.mxu0 %v2388
        %3084 = vmatpush.bf16.msra.mxu0 %v2387
        %3085 = vmatmul.bf16.gmra.mxu0 %v951
        %v3086 = vpop.f32.mrf.mxu0
        %v3087 = vadd.f32 %v3074, %v3086
        %v3088 = vpop.f32.mrf.mxu0
        %3089 = vdwg.mxu0
        %3090 = vmatpush.bf16.msra.mxu0 %v2402
        %3091 = vmatpush.bf16.msra.mxu0 %v2401
        %3092 = vmatpush.bf16.msra.mxu0 %v2400
        %3093 = vmatpush.bf16.msra.mxu0 %v2399
        %3094 = vmatpush.bf16.msra.mxu0 %v2398
        %3095 = vmatpush.bf16.msra.mxu0 %v2397
        %3096 = vmatpush.bf16.msra.mxu0 %v2396
        %3097 = vmatpush.bf16.msra.mxu0 %v2395
        %3098 = vmatmul.bf16.gmra.mxu0 %v952
        %v3099 = vpop.f32.mrf.mxu0
        %v3100 = vadd.f32 %v3087, %v3099
        %v3101 = vpop.f32.mrf.mxu0
        %3102 = vdwg.mxu0
        %3103 = vmatpush.bf16.msra.mxu0 %v2410
        %3104 = vmatpush.bf16.msra.mxu0 %v2409
        %3105 = vmatpush.bf16.msra.mxu0 %v2408
        %3106 = vmatpush.bf16.msra.mxu0 %v2407
        %3107 = vmatpush.bf16.msra.mxu0 %v2406
        %3108 = vmatpush.bf16.msra.mxu0 %v2405
        %3109 = vmatpush.bf16.msra.mxu0 %v2404
        %3110 = vmatpush.bf16.msra.mxu0 %v2403
        %3111 = vmatmul.bf16.gmra.mxu0 %v953
        %v3112 = vpop.f32.mrf.mxu0
        %v3113 = vadd.f32 %v3100, %v3112
        %v3114 = vpop.f32.mrf.mxu0
        %3115 = vdwg.mxu0
        %3116 = vmatpush.bf16.msra.mxu0 %v2418
        %3117 = vmatpush.bf16.msra.mxu0 %v2417
        %3118 = vmatpush.bf16.msra.mxu0 %v2416
        %3119 = vmatpush.bf16.msra.mxu0 %v2415
        %3120 = vmatpush.bf16.msra.mxu0 %v2414
        %3121 = vmatpush.bf16.msra.mxu0 %v2413
        %3122 = vmatpush.bf16.msra.mxu0 %v2412
        %3123 = vmatpush.bf16.msra.mxu0 %v2411
        %3124 = vmatmul.bf16.gmra.mxu0 %v954
        %v3125 = vpop.f32.mrf.mxu0
        %v3126 = vadd.f32 %v3113, %v3125
        %v3127 = vpop.f32.mrf.mxu0
        %3128 = vdwg.mxu0
        %3129 = vmatpush.bf16.msra.mxu0 %v2426
        %3130 = vmatpush.bf16.msra.mxu0 %v2425
        %3131 = vmatpush.bf16.msra.mxu0 %v2424
        %3132 = vmatpush.bf16.msra.mxu0 %v2423
        %3133 = vmatpush.bf16.msra.mxu0 %v2422
        %3134 = vmatpush.bf16.msra.mxu0 %v2421
        %3135 = vmatpush.bf16.msra.mxu0 %v2420
        %3136 = vmatpush.bf16.msra.mxu0 %v2419
        %3137 = vmatmul.bf16.gmra.mxu0 %v955
        %v3138 = vpop.f32.mrf.mxu0
        %v3139 = vadd.f32 %v3126, %v3138
        %v3140 = vpop.f32.mrf.mxu0
        %3141 = vdwg.mxu0
        %3142 = vmatpush.bf16.msra.mxu0 %v2434
        %3143 = vmatpush.bf16.msra.mxu0 %v2433
        %3144 = vmatpush.bf16.msra.mxu0 %v2432
        %3145 = vmatpush.bf16.msra.mxu0 %v2431
        %3146 = vmatpush.bf16.msra.mxu0 %v2430
        %3147 = vmatpush.bf16.msra.mxu0 %v2429
        %3148 = vmatpush.bf16.msra.mxu0 %v2428
        %3149 = vmatpush.bf16.msra.mxu0 %v2427
        %3150 = vmatmul.bf16.gmra.mxu0 %v956
        %v3151 = vpop.f32.mrf.mxu0
        %v3152 = vadd.f32 %v3139, %v3151
        %v3153 = vpop.f32.mrf.mxu0
        %3154 = vdwg.mxu0
        %3155 = vmatpush.bf16.msra.mxu0 %v2442
        %3156 = vmatpush.bf16.msra.mxu0 %v2441
        %3157 = vmatpush.bf16.msra.mxu0 %v2440
        %3158 = vmatpush.bf16.msra.mxu0 %v2439
        %3159 = vmatpush.bf16.msra.mxu0 %v2438
        %3160 = vmatpush.bf16.msra.mxu0 %v2437
        %3161 = vmatpush.bf16.msra.mxu0 %v2436
        %3162 = vmatpush.bf16.msra.mxu0 %v2435
        %3163 = vmatmul.bf16.gmra.mxu0 %v959
        %v3164 = vpop.f32.mrf.mxu0
        %v3165 = vadd.f32 %v3152, %v3164
        %v3166 = vpop.f32.mrf.mxu0
        %3167 = vdwg.mxu0
        %3168 = vmatpush.bf16.msra.mxu0 %v2450
        %3169 = vmatpush.bf16.msra.mxu0 %v2449
        %3170 = vmatpush.bf16.msra.mxu0 %v2448
        %3171 = vmatpush.bf16.msra.mxu0 %v2447
        %3172 = vmatpush.bf16.msra.mxu0 %v2446
        %3173 = vmatpush.bf16.msra.mxu0 %v2445
        %3174 = vmatpush.bf16.msra.mxu0 %v2444
        %3175 = vmatpush.bf16.msra.mxu0 %v2443
        %3176 = vmatmul.bf16.gmra.mxu0 %v960
        %v3177 = vpop.f32.mrf.mxu0
        %v3178 = vadd.f32 %v3165, %v3177
        %v3179 = vpop.f32.mrf.mxu0
        %3180 = vdwg.mxu0
        %3181 = vmatpush.bf16.msra.mxu0 %v2458
        %3182 = vmatpush.bf16.msra.mxu0 %v2457
        %3183 = vmatpush.bf16.msra.mxu0 %v2456
        %3184 = vmatpush.bf16.msra.mxu0 %v2455
        %3185 = vmatpush.bf16.msra.mxu0 %v2454
        %3186 = vmatpush.bf16.msra.mxu0 %v2453
        %3187 = vmatpush.bf16.msra.mxu0 %v2452
        %3188 = vmatpush.bf16.msra.mxu0 %v2451
        %3189 = vmatmul.bf16.gmra.mxu0 %v961
        %v3190 = vpop.f32.mrf.mxu0
        %v3191 = vadd.f32 %v3178, %v3190
        %v3192 = vpop.f32.mrf.mxu0
        %3193 = vdwg.mxu0
        %3194 = vmatpush.bf16.msra.mxu0 %v2466
        %3195 = vmatpush.bf16.msra.mxu0 %v2465
        %3196 = vmatpush.bf16.msra.mxu0 %v2464
        %3197 = vmatpush.bf16.msra.mxu0 %v2463
        %3198 = vmatpush.bf16.msra.mxu0 %v2462
        %3199 = vmatpush.bf16.msra.mxu0 %v2461
        %3200 = vmatpush.bf16.msra.mxu0 %v2460
        %3201 = vmatpush.bf16.msra.mxu0 %v2459
        %3202 = vmatmul.bf16.gmra.mxu0 %v962
        %v3203 = vpop.f32.mrf.mxu0
        %v3204 = vadd.f32 %v3191, %v3203
        %v3205 = vpop.f32.mrf.mxu0
        %3206 = vdwg.mxu0
        %3207 = vmatpush.bf16.msra.mxu0 %v2474
        %3208 = vmatpush.bf16.msra.mxu0 %v2473
        %3209 = vmatpush.bf16.msra.mxu0 %v2472
        %3210 = vmatpush.bf16.msra.mxu0 %v2471
        %3211 = vmatpush.bf16.msra.mxu0 %v2470
        %3212 = vmatpush.bf16.msra.mxu0 %v2469
        %3213 = vmatpush.bf16.msra.mxu0 %v2468
        %3214 = vmatpush.bf16.msra.mxu0 %v2467
        %3215 = vmatmul.bf16.gmra.mxu0 %v963
        %v3216 = vpop.f32.mrf.mxu0
        %v3217 = vadd.f32 %v3204, %v3216
        %v3218 = vpop.f32.mrf.mxu0
        %3219 = vdwg.mxu0
        %3220 = vmatpush.bf16.msra.mxu0 %v2482
        %3221 = vmatpush.bf16.msra.mxu0 %v2481
        %3222 = vmatpush.bf16.msra.mxu0 %v2480
        %3223 = vmatpush.bf16.msra.mxu0 %v2479
        %3224 = vmatpush.bf16.msra.mxu0 %v2478
        %3225 = vmatpush.bf16.msra.mxu0 %v2477
        %3226 = vmatpush.bf16.msra.mxu0 %v2476
        %3227 = vmatpush.bf16.msra.mxu0 %v2475
        %3228 = vmatmul.bf16.gmra.mxu0 %v964
        %v3229 = vpop.f32.mrf.mxu0
        %v3230 = vadd.f32 %v3217, %v3229
        %v3231 = vpop.f32.mrf.mxu0
        %3232 = vdwg.mxu0
        %3233 = vmatpush.bf16.msra.mxu0 %v2490
        %3234 = vmatpush.bf16.msra.mxu0 %v2489
        %3235 = vmatpush.bf16.msra.mxu0 %v2488
        %3236 = vmatpush.bf16.msra.mxu0 %v2487
        %3237 = vmatpush.bf16.msra.mxu0 %v2486
        %3238 = vmatpush.bf16.msra.mxu0 %v2485
        %3239 = vmatpush.bf16.msra.mxu0 %v2484
        %3240 = vmatpush.bf16.msra.mxu0 %v2483
        %3241 = vmatmul.bf16.gmra.mxu0 %v965
        %v3242 = vpop.f32.mrf.mxu0
        %v3243 = vadd.f32 %v3230, %v3242
        %v3244 = vpop.f32.mrf.mxu0
        %3245 = vdwg.mxu0
        %3246 = vmatpush.bf16.msra.mxu0 %v2498
        %3247 = vmatpush.bf16.msra.mxu0 %v2497
        %3248 = vmatpush.bf16.msra.mxu0 %v2496
        %3249 = vmatpush.bf16.msra.mxu0 %v2495
        %3250 = vmatpush.bf16.msra.mxu0 %v2494
        %3251 = vmatpush.bf16.msra.mxu0 %v2493
        %3252 = vmatpush.bf16.msra.mxu0 %v2492
        %3253 = vmatpush.bf16.msra.mxu0 %v2491
        %3254 = vmatmul.bf16.gmra.mxu0 %v966
        %v3255 = vpop.f32.mrf.mxu0
        %v3256 = vadd.f32 %v3243, %v3255
        %v3257 = vpop.f32.mrf.mxu0
        %3258 = vdwg.mxu0
        %3259 = vmatpush.bf16.msra.mxu0 %v2506
        %3260 = vmatpush.bf16.msra.mxu0 %v2505
        %3261 = vmatpush.bf16.msra.mxu0 %v2504
        %3262 = vmatpush.bf16.msra.mxu0 %v2503
        %3263 = vmatpush.bf16.msra.mxu0 %v2502
        %3264 = vmatpush.bf16.msra.mxu0 %v2501
        %3265 = vmatpush.bf16.msra.mxu0 %v2500
        %3266 = vmatpush.bf16.msra.mxu0 %v2499
        %3267 = vmatmul.bf16.gmra.mxu0 %v969
        %v3268 = vpop.f32.mrf.mxu0
        %v3269 = vadd.f32 %v3256, %v3268
        %v3270 = vpop.f32.mrf.mxu0
        %3271 = vdwg.mxu0
        %3272 = vmatpush.bf16.msra.mxu0 %v2514
        %3273 = vmatpush.bf16.msra.mxu0 %v2513
        %3274 = vmatpush.bf16.msra.mxu0 %v2512
        %3275 = vmatpush.bf16.msra.mxu0 %v2511
        %3276 = vmatpush.bf16.msra.mxu0 %v2510
        %3277 = vmatpush.bf16.msra.mxu0 %v2509
        %3278 = vmatpush.bf16.msra.mxu0 %v2508
        %3279 = vmatpush.bf16.msra.mxu0 %v2507
        %3280 = vmatmul.bf16.gmra.mxu0 %v970
        %v3281 = vpop.f32.mrf.mxu0
        %v3282 = vadd.f32 %v3269, %v3281
        %v3283 = vpop.f32.mrf.mxu0
        %3284 = vdwg.mxu0
        %3285 = vmatpush.bf16.msra.mxu0 %v2522
        %3286 = vmatpush.bf16.msra.mxu0 %v2521
        %3287 = vmatpush.bf16.msra.mxu0 %v2520
        %3288 = vmatpush.bf16.msra.mxu0 %v2519
        %3289 = vmatpush.bf16.msra.mxu0 %v2518
        %3290 = vmatpush.bf16.msra.mxu0 %v2517
        %3291 = vmatpush.bf16.msra.mxu0 %v2516
        %3292 = vmatpush.bf16.msra.mxu0 %v2515
        %3293 = vmatmul.bf16.gmra.mxu0 %v971
        %v3294 = vpop.f32.mrf.mxu0
        %v3295 = vadd.f32 %v3282, %v3294
        %v3296 = vpop.f32.mrf.mxu0
        %3297 = vdwg.mxu0
        %3298 = vmatpush.bf16.msra.mxu0 %v2530
        %3299 = vmatpush.bf16.msra.mxu0 %v2529
        %3300 = vmatpush.bf16.msra.mxu0 %v2528
        %3301 = vmatpush.bf16.msra.mxu0 %v2527
        %3302 = vmatpush.bf16.msra.mxu0 %v2526
        %3303 = vmatpush.bf16.msra.mxu0 %v2525
        %3304 = vmatpush.bf16.msra.mxu0 %v2524
        %3305 = vmatpush.bf16.msra.mxu0 %v2523
        %3306 = vmatmul.bf16.gmra.mxu0 %v972
        %v3307 = vpop.f32.mrf.mxu0
        %v3308 = vadd.f32 %v3295, %v3307
        %v3309 = vpop.f32.mrf.mxu0
        %3310 = vdwg.mxu0
        %3311 = vmatpush.bf16.msra.mxu0 %v2538
        %3312 = vmatpush.bf16.msra.mxu0 %v2537
        %3313 = vmatpush.bf16.msra.mxu0 %v2536
        %3314 = vmatpush.bf16.msra.mxu0 %v2535
        %3315 = vmatpush.bf16.msra.mxu0 %v2534
        %3316 = vmatpush.bf16.msra.mxu0 %v2533
        %3317 = vmatpush.bf16.msra.mxu0 %v2532
        %3318 = vmatpush.bf16.msra.mxu0 %v2531
        %3319 = vmatmul.bf16.gmra.mxu0 %v973
        %v3320 = vpop.f32.mrf.mxu0
        %v3321 = vadd.f32 %v3308, %v3320
        %v3322 = vpop.f32.mrf.mxu0
        %3323 = vdwg.mxu0
        %3324 = vmatpush.bf16.msra.mxu0 %v2546
        %3325 = vmatpush.bf16.msra.mxu0 %v2545
        %3326 = vmatpush.bf16.msra.mxu0 %v2544
        %3327 = vmatpush.bf16.msra.mxu0 %v2543
        %3328 = vmatpush.bf16.msra.mxu0 %v2542
        %3329 = vmatpush.bf16.msra.mxu0 %v2541
        %3330 = vmatpush.bf16.msra.mxu0 %v2540
        %3331 = vmatpush.bf16.msra.mxu0 %v2539
        %3332 = vmatmul.bf16.gmra.mxu0 %v974
        %v3333 = vpop.f32.mrf.mxu0
        %v3334 = vadd.f32 %v3321, %v3333
        %v3335 = vpop.f32.mrf.mxu0
        %3336 = vdwg.mxu0
        %3337 = vmatpush.bf16.msra.mxu0 %v2554
        %3338 = vmatpush.bf16.msra.mxu0 %v2553
        %3339 = vmatpush.bf16.msra.mxu0 %v2552
        %3340 = vmatpush.bf16.msra.mxu0 %v2551
        %3341 = vmatpush.bf16.msra.mxu0 %v2550
        %3342 = vmatpush.bf16.msra.mxu0 %v2549
        %3343 = vmatpush.bf16.msra.mxu0 %v2548
        %3344 = vmatpush.bf16.msra.mxu0 %v2547
        %3345 = vmatmul.bf16.gmra.mxu0 %v975
        %v3346 = vpop.f32.mrf.mxu0
        %v3347 = vadd.f32 %v3334, %v3346
        %v3348 = vpop.f32.mrf.mxu0
        %3349 = vdwg.mxu0
        %3350 = vmatpush.bf16.msra.mxu0 %v2562
        %3351 = vmatpush.bf16.msra.mxu0 %v2561
        %3352 = vmatpush.bf16.msra.mxu0 %v2560
        %3353 = vmatpush.bf16.msra.mxu0 %v2559
        %3354 = vmatpush.bf16.msra.mxu0 %v2558
        %3355 = vmatpush.bf16.msra.mxu0 %v2557
        %3356 = vmatpush.bf16.msra.mxu0 %v2556
        %3357 = vmatpush.bf16.msra.mxu0 %v2555
        %3358 = vmatmul.bf16.gmra.mxu0 %v976
        %v3359 = vpop.f32.mrf.mxu0
        %v3360 = vadd.f32 %v3347, %v3359
        %v3361 = vpop.f32.mrf.mxu0
        %3362 = vdwg.mxu0
        %3363 = vmatpush.bf16.msra.mxu0 %v2570
        %3364 = vmatpush.bf16.msra.mxu0 %v2569
        %3365 = vmatpush.bf16.msra.mxu0 %v2568
        %3366 = vmatpush.bf16.msra.mxu0 %v2567
        %3367 = vmatpush.bf16.msra.mxu0 %v2566
        %3368 = vmatpush.bf16.msra.mxu0 %v2565
        %3369 = vmatpush.bf16.msra.mxu0 %v2564
        %3370 = vmatpush.bf16.msra.mxu0 %v2563
        %3371 = vmatmul.bf16.gmra.mxu0 %v979
        %v3372 = vpop.f32.mrf.mxu0
        %v3373 = vadd.f32 %v3360, %v3372
        %v3374 = vpop.f32.mrf.mxu0
        %3375 = vdwg.mxu0
        %3376 = vmatpush.bf16.msra.mxu0 %v2578
        %3377 = vmatpush.bf16.msra.mxu0 %v2577
        %3378 = vmatpush.bf16.msra.mxu0 %v2576
        %3379 = vmatpush.bf16.msra.mxu0 %v2575
        %3380 = vmatpush.bf16.msra.mxu0 %v2574
        %3381 = vmatpush.bf16.msra.mxu0 %v2573
        %3382 = vmatpush.bf16.msra.mxu0 %v2572
        %3383 = vmatpush.bf16.msra.mxu0 %v2571
        %3384 = vmatmul.bf16.gmra.mxu0 %v980
        %v3385 = vpop.f32.mrf.mxu0
        %v3386 = vadd.f32 %v3373, %v3385
        %v3387 = vpop.f32.mrf.mxu0
        %3388 = vdwg.mxu0
        %3389 = vmatpush.bf16.msra.mxu0 %v2586
        %3390 = vmatpush.bf16.msra.mxu0 %v2585
        %3391 = vmatpush.bf16.msra.mxu0 %v2584
        %3392 = vmatpush.bf16.msra.mxu0 %v2583
        %3393 = vmatpush.bf16.msra.mxu0 %v2582
        %3394 = vmatpush.bf16.msra.mxu0 %v2581
        %3395 = vmatpush.bf16.msra.mxu0 %v2580
        %3396 = vmatpush.bf16.msra.mxu0 %v2579
        %3397 = vmatmul.bf16.gmra.mxu0 %v981
        %v3398 = vpop.f32.mrf.mxu0
        %v3399 = vadd.f32 %v3386, %v3398
        %v3400 = vpop.f32.mrf.mxu0
        %3401 = vdwg.mxu0
        %3402 = vmatpush.bf16.msra.mxu0 %v2594
        %3403 = vmatpush.bf16.msra.mxu0 %v2593
        %3404 = vmatpush.bf16.msra.mxu0 %v2592
        %3405 = vmatpush.bf16.msra.mxu0 %v2591
        %3406 = vmatpush.bf16.msra.mxu0 %v2590
        %3407 = vmatpush.bf16.msra.mxu0 %v2589
        %3408 = vmatpush.bf16.msra.mxu0 %v2588
        %3409 = vmatpush.bf16.msra.mxu0 %v2587
        %3410 = vmatmul.bf16.gmra.mxu0 %v982
        %v3411 = vpop.f32.mrf.mxu0
        %v3412 = vadd.f32 %v3399, %v3411
        %v3413 = vpop.f32.mrf.mxu0
        %3414 = vdwg.mxu0
        %3415 = vmatpush.bf16.msra.mxu0 %v2602
        %3416 = vmatpush.bf16.msra.mxu0 %v2601
        %3417 = vmatpush.bf16.msra.mxu0 %v2600
        %3418 = vmatpush.bf16.msra.mxu0 %v2599
        %3419 = vmatpush.bf16.msra.mxu0 %v2598
        %3420 = vmatpush.bf16.msra.mxu0 %v2597
        %3421 = vmatpush.bf16.msra.mxu0 %v2596
        %3422 = vmatpush.bf16.msra.mxu0 %v2595
        %3423 = vmatmul.bf16.gmra.mxu0 %v983
        %v3424 = vpop.f32.mrf.mxu0
        %v3425 = vadd.f32 %v3412, %v3424
        %v3426 = vpop.f32.mrf.mxu0
        %3427 = vdwg.mxu0
        %3428 = vmatpush.bf16.msra.mxu0 %v2610
        %3429 = vmatpush.bf16.msra.mxu0 %v2609
        %3430 = vmatpush.bf16.msra.mxu0 %v2608
        %3431 = vmatpush.bf16.msra.mxu0 %v2607
        %3432 = vmatpush.bf16.msra.mxu0 %v2606
        %3433 = vmatpush.bf16.msra.mxu0 %v2605
        %3434 = vmatpush.bf16.msra.mxu0 %v2604
        %3435 = vmatpush.bf16.msra.mxu0 %v2603
        %3436 = vmatmul.bf16.gmra.mxu0 %v984
        %v3437 = vpop.f32.mrf.mxu0
        %v3438 = vadd.f32 %v3425, %v3437
        %v3439 = vpop.f32.mrf.mxu0
        %3440 = vdwg.mxu0
        %3441 = vmatpush.bf16.msra.mxu0 %v2618
        %3442 = vmatpush.bf16.msra.mxu0 %v2617
        %3443 = vmatpush.bf16.msra.mxu0 %v2616
        %3444 = vmatpush.bf16.msra.mxu0 %v2615
        %3445 = vmatpush.bf16.msra.mxu0 %v2614
        %3446 = vmatpush.bf16.msra.mxu0 %v2613
        %3447 = vmatpush.bf16.msra.mxu0 %v2612
        %3448 = vmatpush.bf16.msra.mxu0 %v2611
        %3449 = vmatmul.bf16.gmra.mxu0 %v985
        %v3450 = vpop.f32.mrf.mxu0
        %v3451 = vadd.f32 %v3438, %v3450
        %v3452 = vpop.f32.mrf.mxu0
        %3453 = vdwg.mxu0
        %3454 = vmatpush.bf16.msra.mxu0 %v2626
        %3455 = vmatpush.bf16.msra.mxu0 %v2625
        %3456 = vmatpush.bf16.msra.mxu0 %v2624
        %3457 = vmatpush.bf16.msra.mxu0 %v2623
        %3458 = vmatpush.bf16.msra.mxu0 %v2622
        %3459 = vmatpush.bf16.msra.mxu0 %v2621
        %3460 = vmatpush.bf16.msra.mxu0 %v2620
        %3461 = vmatpush.bf16.msra.mxu0 %v2619
        %3462 = vmatmul.bf16.gmra.mxu0 %v986
        %v3463 = vpop.f32.mrf.mxu0
        %v3464 = vadd.f32 %v3451, %v3463
        %v3465 = vpop.f32.mrf.mxu0
        %3466 = vdwg.mxu0
        %v3467 = vadd.f32 %v291, %v3464
        %3468 = vst [vmem:[#allocation2] sm:$0x3] %v3467
        %p3469 = scmp.eq.s32.totalorder %s19, 1
        // Predicated region
        $region53: #{forward.5} parent=47 // pred_check
          %p3470 = pneg %p3469
        $region54: #{forward.5} parent=47 // pred_check_branch
          %3472 = sbr.rel (%p3470) target = $region56
        $region55: #{forward.5} parent=47 // pred_region
          %v3473 = vld [vmem:[#allocation2] sm:$0x3]
          %v3474 = vld [vmem:[%s2] sm:$0x1]
          %v3476 = vperm.slane %v3474, 0
          %v3478 = vadd.f32 %v3473, %v3476
          %v3479 = vmax.f32 %v3478, 0.0
          %v3480 = vld [vmem:[%s3] sm:$0xff]
          %v3481 = vld [vmem:[%s3 + $0x8] sm:$0xff]
          %v3482 = vld [vmem:[%s3 + $0x10] sm:$0xff]
          %v3483 = vld [vmem:[%s3 + $0x18] sm:$0xff]
          %v3484 = vld [vmem:[%s3 + $0x20] sm:$0xff]
          %v3485 = vld [vmem:[%s3 + $0x28] sm:$0xff]
          %v3486 = vld [vmem:[%s3 + $0x30] sm:$0xff]
          %v3487 = vld [vmem:[%s3 + $0x38] sm:$0xff]
          %v3488 = vld [vmem:[%s3 + $0x40] sm:$0xff]
          %v3489 = vld [vmem:[%s3 + $0x48] sm:$0xff]
          %v3490 = vld [vmem:[%s3 + $0x50] sm:$0xff]
          %v3491 = vld [vmem:[%s3 + $0x58] sm:$0xff]
          %v3492 = vld [vmem:[%s3 + $0x60] sm:$0xff]
          %v3493 = vld [vmem:[%s3 + $0x68] sm:$0xff]
          %v3494 = vld [vmem:[%s3 + $0x70] sm:$0xff]
          %v3495 = vld [vmem:[%s3 + $0x78] sm:$0xff]
          %v3496 = vld [vmem:[%s4] sm:$0x1]
          %v3498 = vperm.slane %v3496, 0
          %3500 = vmatpush.msra.mxu0 %v3495
          %3501 = vmatpush.msra.mxu0 %v3494
          %3502 = vmatpush.msra.mxu0 %v3493
          %3503 = vmatpush.msra.mxu0 %v3492
          %3504 = vmatpush.msra.mxu0 %v3491
          %3505 = vmatpush.msra.mxu0 %v3490
          %3506 = vmatpush.msra.mxu0 %v3489
          %3507 = vmatpush.msra.mxu0 %v3488
          %3508 = vmatpush.msra.mxu0 %v3487
          %3509 = vmatpush.msra.mxu0 %v3486
          %3510 = vmatpush.msra.mxu0 %v3485
          %3511 = vmatpush.msra.mxu0 %v3484
          %3512 = vmatpush.msra.mxu0 %v3483
          %3513 = vmatpush.msra.mxu0 %v3482
          %3514 = vmatpush.msra.mxu0 %v3481
          %3515 = vmatpush.msra.mxu0 %v3480
          %3516 = vmatmul.f32.gmra.mxu0 %v3479
          %v3517 = vpop.f32.mrf.mxu0
          %v3518 = vadd.f32 %v3498, %v3517
          %3519 = vdwg.mxu0
          %v3520 = vmax.f32 %v3518, 0.0
          %v3521 = vld [vmem:[%s5] sm:$0xff]
          %v3522 = vld [vmem:[%s5 + $0x8] sm:$0xff]
          %v3523 = vld [vmem:[%s5 + $0x10] sm:$0xff]
          %v3524 = vld [vmem:[%s5 + $0x18] sm:$0xff]
          %v3525 = vld [vmem:[%s5 + $0x20] sm:$0xff]
          %v3526 = vld [vmem:[%s5 + $0x28] sm:$0xff]
          %v3527 = vld [vmem:[%s5 + $0x30] sm:$0xff]
          %v3528 = vld [vmem:[%s5 + $0x38] sm:$0xff]
          %v3529 = vld [vmem:[%s6] sm:$0x1]
          %v3531 = vperm.slane %v3529, 0
          %vm3533 = vcmask 523264
          %v3535 = vsel %vm3533, %v3520, 0
          %3537 = vmatpush.msra.mxu0 0.0
          %3538 = vmatpush.msra.mxu0 0.0
          %3539 = vmatpush.msra.mxu0 0.0
          %3540 = vmatpush.msra.mxu0 0.0
          %3541 = vmatpush.msra.mxu0 0.0
          %3542 = vmatpush.msra.mxu0 0.0
          %3543 = vmatpush.msra.mxu0 0.0
          %3544 = vmatpush.msra.mxu0 0.0
          %3545 = vmatpush.msra.mxu0 %v3528
          %3546 = vmatpush.msra.mxu0 %v3527
          %3547 = vmatpush.msra.mxu0 %v3526
          %3548 = vmatpush.msra.mxu0 %v3525
          %3549 = vmatpush.msra.mxu0 %v3524
          %3550 = vmatpush.msra.mxu0 %v3523
          %3551 = vmatpush.msra.mxu0 %v3522
          %3552 = vmatpush.msra.mxu0 %v3521
          %3553 = vmatmul.f32.gmra.mxu0 %v3535
          %v3554 = vpop.f32.mrf.mxu0
          %v3555 = vadd.f32 %v3531, %v3554
          %3556 = vdwg.mxu0
          %vm3557 = vcmask 25600
          %v3558 = vsel %vm3557, %v3555, -inf
          %3559 = vmax.xlane.f32.xlu0 %v3558
          %v3560 = vpop.xlane.xlu0 %3559
          %v3561 = vsub.f32 %v3555, %v3560
          %v3562 = vmul.f32 %v3561, 1.442695
          %v3563 = vpow.pop %v3562
          %v3564 = vsel %vm3557, %v3563, 0.0
          %3565 = vadd.xlane.f32.xlu0 %v3564
          %v3566 = vpop.xlane.xlu0 %3565
          %v3567 = vlog2.pop %v3566
          %v3568 = vmul.f32 %v3567, 0.6931472
          %v3569 = vsub.f32 %v3561, %v3568
          %3570 = vst.msk [vmem:[#allocation3] sm:$0x3] %vm3557, %v3569
        $region56: #{forward.5} parent=47 // pred_fallthru
          _
        // Predicated region
        $region57: #{forward.5} parent=47 // pred_check
          %p3571 = pneg %p189
        $region58: #{forward.5} parent=47 // pred_check_branch
          %3573 = sbr.rel (%p3571) target = $region60
        $region59: #{forward.5} parent=47 // pred_region
          %3575 = vsyncadd [#allocation4], 0
          %s3577 = sshll.u32 [#allocation3], 4
          %s3578 = int_to_ptr.vmem [resolvable:$true] %s3577
          %s3579 = sshll.u32 %s7, 4
          %s3580 = int_to_ptr.hbm [resolvable:$true] %s3579
          %3582 = dma.vmem_to_hbm [thread:$0]  %s3578, 32, %s3580, [#allocation4]
        $region60: #{forward.5} parent=47 // pred_fallthru
          _
        // Predicated region
        $region61: #{forward.5} parent=47 // pred_check
          %p3583 = pneg %p189
        $region62: #{forward.5} parent=47 // pred_check_branch
          %3585 = sbr.rel (%p3583) target = $region64
        $region63: #{forward.5} parent=47 // pred_region
          %3587 = dma.done [#allocation4], 32
        $region64: #{forward.5} parent=47 // pred_fallthru
          _
      $region48: #{forward.5} parent=5 // pred_fallthru
        _
      %p3588 = scmp.le.s32.totalorder 2, %s14
      // Predicated region
      $region65: #{forward.5} parent=5 // pred_check
        %p3589 = pneg %p3588
      $region66: #{forward.5} parent=5 // pred_check_branch
        %3591 = sbr.rel (%p3589) target = $region68
      $region67: #{forward.5} parent=5 // pred_region
        %s3592 = ssub.s32 %s14, 2
      $region68: #{forward.5} parent=5 // pred_fallthru
        _
    $region6: #{forward.5} parent=1 // loop_footer
      %s18 = sadd.s32 1, %s14
    $region7: #{forward.5} parent=1 // loop_footer_branch
      %13 = sbr.rel target = $region3
    $region8: #{forward.5} parent=1 // loop_exit
      _
    %3593 = vsyncpa [#allocation4], 1
    %s3594 = scalar_lea.sflag [#allocation4], 1
    %3595 = vsyncpa %s3594, 1

</llo_original>
